<compile_context>
chip_gen: v6e
topology: v6e:2x2x1
jax: 0.10.0
libtpu: 0.0.40
codegen_flags: <defaults>
</compile_context>

<pallas_src>
import jax
import jax.numpy as jnp
import numpy as np
from jax import lax
from jax.experimental import pallas as pl
from jax.experimental.pallas import tpu as pltpu

# --- hyperparameters (match the PyTorch module) ---
N_EMBD = 80
N_HEAD = 10
HEAD_SIZE = N_EMBD // N_HEAD      # 8
CHAT_SIZE = 6                     # T
RAW_EMB = 1536
EPS = 1e-5                        # nn.LayerNorm default
NEG_BIG = -1e30


# ---------- in-kernel helpers ----------
def _layernorm_lastdim(x, g, b):
    mu = jnp.mean(x, axis=-1, keepdims=True)
    var = jnp.mean((x - mu) ** 2, axis=-1, keepdims=True)
    return (x - mu) * lax.rsqrt(var + EPS) * g + b


def _softmax_lastdim(x):
    m = jnp.max(x, axis=-1, keepdims=True)
    e = jnp.exp(x - m)
    return e / jnp.sum(e, axis=-1, keepdims=True)


def _dot_nt(a, b):
    # a @ b.T without an explicit transpose
    return lax.dot_general(a, b, (((1,), (1,)), ((), ())),
                           preferred_element_type=jnp.float32)


# ---------- the fused kernel (one grid step = Bt examples = M = Bt*T rows) ----------
def bigram_kernel(
    raw_ref,                       # (M, RAW_EMB) bf16
    w_lin2_ref, b_lin2_ref,        # (RAW_EMB, 80) bf16, (1, 80) f32
    pos_ref,                       # (M, 80) positional emb pre-tiled over the batch tile
    ln1_g_ref, ln1_b_ref,          # (1, 80)
    wk_ref, wq_ref, wv_ref,        # (80, 80) per-head columns packed
    wp_ref, bp_ref,                # (80, 80), (1, 80)
    ln2_g_ref, ln2_b_ref,          # (1, 80)
    w1_ref, b1_ref,                # (80, 320), (1, 320)
    w2_ref, b2_ref,                # (320, 80), (1, 80)
    wkf_ref, wqf_ref,              # (80, 80)
    wa_ref, ba_ref,                # (36, 6) with LN((6,6)) gamma folded in, (1, 6) beta folded
    wb_ref, bb_ref,                # (6, 6), (1, 6)
    lnf_g_ref, lnf_b_ref,          # (1, 6)
    headmask_ref,                  # (H*M, 80) 0/1: row h*M+r keeps head h's columns
    attn_bias_ref,                 # (H*M, M)  0 within own example, -1e30 cross-example
    bm2_ref,                       # (M, M)    0/1 same-example mask
    ssel_ref,                      # (M, T)    ssel[c, s] = (c % T == s)
    tsel_ref,                      # (M, T*T)  tsel[r, t*T+s] = (r % T == t)
    csum_ref,                      # (Bt, M)   csum[b, r] = (r // T == b)
    out_ref,                       # (Bt, T)
):
    T = CHAT_SIZE
    M = raw_ref.shape[0]                     # Bt * T rows in this tile
    scale = 1.0 / (N_EMBD ** 0.5)            # C ** -0.5 with C = n_embd (as in PyTorch)

    # ---- Zero block (returned value): mes = linear_2(raw); bf16 in, f32 accumulate ----
    mes = jnp.dot(raw_ref[...], w_lin2_ref[...],
                  preferred_element_type=jnp.float32) + b_lin2_ref[...]
    x = mes + pos_ref[...]                                    # (M, 80) f32

    # ---- Block (block_2): x = x + SA(LN1(x)); x = x + FF(LN2(x)) ----
    h = _layernorm_lastdim(x, ln1_g_ref[...], ln1_b_ref[...])
    k = jnp.dot(h, wk_ref[...], preferred_element_type=jnp.float32)
    q = jnp.dot(h, wq_ref[...], preferred_element_type=jnp.float32)
    v = jnp.dot(h, wv_ref[...], preferred_element_type=jnp.float32)

    # All heads & all examples at once via a block-diagonal head expansion over rows:
    # row (hi*M + r) of qexp holds q[r] restricted to head hi's 8 columns, so
    # qexp @ k.T gives every head's scores; the additive bias kills cross-example terms.
    headmask = headmask_ref[...]                              # (H*M, 80)
    qexp = jnp.concatenate([q] * N_HEAD, axis=0) * headmask   # (H*M, 80)
    logits = _dot_nt(qexp, k) * scale + attn_bias_ref[...]    # (H*M, M)
    wei = _softmax_lastdim(logits)                            # per-example softmax
    out_all = jnp.dot(wei, v, preferred_element_type=jnp.float32) * headmask  # (H*M, 80)
    # Concatenation over heads == sum of the head-masked row blocks.
    sa = out_all[0:M, :]
    for hi in range(1, N_HEAD):
        sa = sa + out_all[hi * M:(hi + 1) * M, :]
    sa = jnp.dot(sa, wp_ref[...], preferred_element_type=jnp.float32) + bp_ref[...]
    x = x + sa

    h2 = _layernorm_lastdim(x, ln2_g_ref[...], ln2_b_ref[...])
    ff = jnp.maximum(
        jnp.dot(h2, w1_ref[...], preferred_element_type=jnp.float32) + b1_ref[...], 0.0)
    ff = jnp.dot(ff, w2_ref[...], preferred_element_type=jnp.float32) + b2_ref[...]
    x = x + ff

    # ---- Final block ----
    kf = jnp.dot(x, wkf_ref[...], preferred_element_type=jnp.float32)
    qf = jnp.dot(x, wqf_ref[...], preferred_element_type=jnp.float32)
    bm2 = bm2_ref[...]
    full = _dot_nt(qf, kf) * scale * bm2                      # (M, M), zero off own example
    # Compact per-example scores: wc[b*T+t, s] = qf[b,t] . kf[b,s] * scale
    wc = jnp.dot(full, ssel_ref[...], preferred_element_type=jnp.float32)   # (M, T)

    # LayerNorm over each example's (T, T) block (affine already folded into wa/ba).
    inv_tt = 1.0 / float(T * T)
    s1 = jnp.sum(wc, axis=-1, keepdims=True)                  # (M, 1)
    s2 = jnp.sum(wc * wc, axis=-1, keepdims=True)             # (M, 1)
    mu = jnp.dot(bm2, s1, preferred_element_type=jnp.float32) * inv_tt
    ex2 = jnp.dot(bm2, s2, preferred_element_type=jnp.float32) * inv_tt
    var = jnp.maximum(ex2 - mu * mu, 0.0)
    wn = (wc - mu) * lax.rsqrt(var + EPS)                     # (M, T)

    # FinalFeedForward layer 1:  flat(36) @ Wa  as one matmul, via a row-phase expansion
    # wn_wide[r, t*T+s] = wn[r, s] if (r % T == t) else 0, then example-sum with csum.
    wn_wide = jnp.concatenate([wn] * T, axis=1) * tsel_ref[...]        # (M, 36)
    contrib = jnp.dot(wn_wide, wa_ref[...], preferred_element_type=jnp.float32)  # (M, 6)
    a1 = jnp.maximum(
        jnp.dot(csum_ref[...], contrib, preferred_element_type=jnp.float32)
        + ba_ref[...], 0.0)                                   # (Bt, 6)
    o = jnp.maximum(
        jnp.dot(a1, wb_ref[...], preferred_element_type=jnp.float32) + bb_ref[...], 0.0)
    o = _layernorm_lastdim(o, lnf_g_ref[...], lnf_b_ref[...])
    out_ref[...] = _softmax_lastdim(o)                        # (Bt, T)


# ---------- parameter init (deterministic, PyTorch-like shapes) ----------
def init_params(key):
    ks = jax.random.split(key, 16)

    def lin(k, fan_in, fan_out, bias=True):
        bound = 1.0 / (fan_in ** 0.5)
        kw, kb = jax.random.split(k)
        w = jax.random.uniform(kw, (fan_in, fan_out), jnp.float32, -bound, bound)
        if not bias:
            return w
        b = jax.random.uniform(kb, (1, fan_out), jnp.float32, -bound, bound)
        return w, b

    def ln_affine(k, shape):
        # Mildly randomized LayerNorm affine so the folded paths are actually exercised.
        kg, kb = jax.random.split(k)
        g = 1.0 + 0.1 * jax.random.normal(kg, shape, jnp.float32)
        b = 0.1 * jax.random.normal(kb, shape, jnp.float32)
        return g, b

    p = {}
    p["w_lin2"], p["b_lin2"] = lin(ks[0], RAW_EMB, N_EMBD)           # Zero_block.linear_2
    p["pos"] = jax.random.normal(ks[1], (CHAT_SIZE, N_EMBD), jnp.float32)
    p["ln1_g"], p["ln1_b"] = ln_affine(ks[2], (1, N_EMBD))
    # per-head K/Q/V weights packed column-wise: head hi -> columns [hi*8, hi*8+8)
    p["wk"] = lin(ks[3], N_EMBD, N_EMBD, bias=False)
    p["wq"] = lin(ks[4], N_EMBD, N_EMBD, bias=False)
    p["wv"] = lin(ks[5], N_EMBD, N_EMBD, bias=False)
    p["wp"], p["bp"] = lin(ks[6], N_EMBD, N_EMBD)                    # MHA output proj
    p["ln2_g"], p["ln2_b"] = ln_affine(ks[7], (1, N_EMBD))
    p["w1"], p["b1"] = lin(ks[8], N_EMBD, 4 * N_EMBD)                # FeedForward
    p["w2"], p["b2"] = lin(ks[9], 4 * N_EMBD, N_EMBD)
    p["wkf"] = lin(ks[10], N_EMBD, N_EMBD, bias=False)               # Final_block key/query
    p["wqf"] = lin(ks[11], N_EMBD, N_EMBD, bias=False)
    p["lnw1"], p["lnb1"] = ln_affine(ks[12], (CHAT_SIZE, CHAT_SIZE)) # LayerNorm((6,6))
    p["wa"], p["ba"] = lin(ks[13], CHAT_SIZE * CHAT_SIZE, CHAT_SIZE) # FinalFeedForward
    p["wb"], p["bb"] = lin(ks[14], CHAT_SIZE, CHAT_SIZE)
    p["lnf_g"], p["lnf_b"] = ln_affine(ks[15], (1, CHAT_SIZE))       # LayerNorm(6)
    return p


def _ceil_to(x, m):
    return -(-x // m) * m


# ---------- wrapper ----------
def bigram_forward(params, raw_mes_embs, graph_adjacenties, targets=None,
                   max_block_batch=24):
    B, T, C = raw_mes_embs.shape
    assert T == CHAT_SIZE and C == RAW_EMB
    # graph_adjacenties only feeds Zero_block's dead (unreturned) branch.
    del graph_adjacenties

    # Batch tile: Bt examples per grid step.  Bt multiple of 4 => Bt*T multiple of 8.
    Bt = min(max_block_batch, _ceil_to(B, 4))
    Bt = max(4, (Bt // 4) * 4)
    n_steps = -(-B // Bt)
    B_pad = n_steps * Bt
    M = Bt * T
    HM = N_HEAD * M
    f32 = jnp.float32

    # ---- fold / pre-tile constants (host/XLA side, tiny) ----
    pos_t = jnp.tile(params["pos"], (Bt, 1)).astype(f32)                       # (M, 80)

    rows_hm = np.arange(HM)
    cols_c = np.arange(N_EMBD)
    cols_m = np.arange(M)
    rows_m = np.arange(M)
    headmask = jnp.asarray(
        (rows_hm[:, None] // M) == (cols_c[None, :] // HEAD_SIZE), dtype=f32)  # (HM, 80)
    attn_bias = jnp.asarray(
        np.where(((rows_hm % M)[:, None] // T) == (cols_m[None, :] // T),
                 0.0, NEG_BIG), dtype=f32)                                     # (HM, M)
    bm2 = jnp.asarray((rows_m[:, None] // T) == (cols_m[None, :] // T), f32)   # (M, M)
    ssel = jnp.asarray((cols_m[:, None] % T) == np.arange(T)[None, :], f32)    # (M, T)
    tsel = jnp.asarray(
        (rows_m[:, None] % T) == (np.arange(T * T)[None, :] // T), f32)        # (M, 36)
    csum = jnp.asarray((rows_m[None, :] // T) == np.arange(Bt)[:, None], f32)  # (Bt, M)

    # Fold LayerNorm((6,6)) affine into the first FinalFeedForward linear.
    wa_eff = (params["wa"] * params["lnw1"].reshape(T * T, 1)).astype(f32)     # (36, 6)
    ba_eff = (params["ba"]
              + jnp.dot(params["lnb1"].reshape(1, T * T), params["wa"],
                        precision=jax.lax.Precision.HIGHEST)).astype(f32)      # (1, 6)

    # Pre-flatten / pad raw and cast the dominant gemm's operands to bf16.
    raw_p = jnp.pad(raw_mes_embs, ((0, B_pad - B), (0, 0), (0, 0)))
    raw_flat = raw_p.reshape(B_pad * T, RAW_EMB).astype(jnp.bfloat16)
    w_lin2_bf16 = params["w_lin2"].astype(jnp.bfloat16)

    weights = [
        w_lin2_bf16, params["b_lin2"], pos_t,
        params["ln1_g"], params["ln1_b"],
        params["wk"], params["wq"], params["wv"],
        params["wp"], params["bp"],
        params["ln2_g"], params["ln2_b"],
        params["w1"], params["b1"], params["w2"], params["b2"],
        params["wkf"], params["wqf"],
        wa_eff, ba_eff, params["wb"], params["bb"],
        params["lnf_g"], params["lnf_b"],
        headmask, attn_bias, bm2, ssel, tsel, csum,
    ]

    def const_spec(a):
        nd = a.ndim
        return pl.BlockSpec(a.shape, lambda i, _nd=nd: (0,) * _nd)

    in_specs = ([pl.BlockSpec((M, RAW_EMB), lambda i: (i, 0))]
                + [const_spec(w) for w in weights])
    out_spec = pl.BlockSpec((Bt, CHAT_SIZE), lambda i: (i, 0))

    out = pl.pallas_call(
        bigram_kernel,
        out_shape=jax.ShapeDtypeStruct((B_pad, CHAT_SIZE), jnp.float32),
        grid_spec=pltpu.PrefetchScalarGridSpec(
            num_scalar_prefetch=0,
            grid=(n_steps,),
            in_specs=in_specs,
            out_specs=out_spec),
        compiler_params=pltpu.CompilerParams(
            dimension_semantics=("parallel",),          # batch tiles are independent
            vmem_limit_bytes=32 * 1024 * 1024),
    )(raw_flat, *weights)

    loss = None
    # TODO(synk): loss branch (targets != None: mse_loss + cross_entropy/5) not implemented.
    return out[:B], loss


# ---------- pure-JAX reference (for verification only) ----------
def bigram_reference(params, raw, quantize_first_gemm=False):
    def ln(x, g, b, axes):
        mu = jnp.mean(x, axis=axes, keepdims=True)
        var = jnp.mean((x - mu) ** 2, axis=axes, keepdims=True)
        return (x - mu) / jnp.sqrt(var + EPS) * g + b

    B, T, _ = raw.shape
    w_lin2 = params["w_lin2"]
    if quantize_first_gemm:
        # Match the kernel's bf16 storage of the 1536-deep gemm operands.
        raw = raw.astype(jnp.bfloat16).astype(jnp.float32)
        w_lin2 = w_lin2.astype(jnp.bfloat16).astype(jnp.float32)
    mes = raw @ w_lin2 + params["b_lin2"]
    x = mes + params["pos"]
    h = ln(x, params["ln1_g"], params["ln1_b"], -1)
    k = (h @ params["wk"]).reshape(B, T, N_HEAD, HEAD_SIZE)
    q = (h @ params["wq"]).reshape(B, T, N_HEAD, HEAD_SIZE)
    v = (h @ params["wv"]).reshape(B, T, N_HEAD, HEAD_SIZE)
    wei = jnp.einsum("bthd,bshd->bhts", q, k) * (N_EMBD ** -0.5)
    wei = jax.nn.softmax(wei, axis=-1)
    o = jnp.einsum("bhts,bshd->bthd", wei, v).reshape(B, T, N_EMBD)
    x = x + o @ params["wp"] + params["bp"]
    h2 = ln(x, params["ln2_g"], params["ln2_b"], -1)
    ff = jax.nn.relu(h2 @ params["w1"] + params["b1"]) @ params["w2"] + params["b2"]
    x = x + ff
    kf = x @ params["wkf"]
    qf = x @ params["wqf"]
    w = jnp.einsum("btc,bsc->bts", qf, kf) * (N_EMBD ** -0.5)
    w = ln(w, params["lnw1"], params["lnb1"], (-2, -1))
    flat = w.reshape(B, T * T)
    a = jax.nn.relu(flat @ params["wa"] + params["ba"])
    o2 = jax.nn.relu(a @ params["wb"] + params["bb"])
    o2 = ln(o2, params["lnf_g"], params["lnf_b"], -1)
    return jax.nn.softmax(o2, axis=-1)


if __name__ == "__main__":
    key = jax.random.PRNGKey(0)
    kp, kx, ka = jax.random.split(key, 3)
    params = init_params(kp)

    B, G = 2, 2                                   # G <= n_head - 8 per Zero_block assert
    raw_mes_embs = jax.random.normal(kx, (B, CHAT_SIZE, RAW_EMB), jnp.float32)
    graph_adjacenties = (jax.random.uniform(ka, (B, G, CHAT_SIZE, CHAT_SIZE))
                         > 0.5).astype(jnp.float32)

    out, loss = bigram_forward(params, raw_mes_embs, graph_adjacenties)
    out = jax.block_until_ready(out)

    with jax.default_matmul_precision("highest"):
        ref_f32 = bigram_reference(params, raw_mes_embs)
        ref_q = bigram_reference(params, raw_mes_embs, quantize_first_gemm=True)
    ref_f32 = jax.block_until_ready(ref_f32)
    ref_q = jax.block_until_ready(ref_q)

    assert out.shape == (B, CHAT_SIZE)
    assert bool(jnp.all(jnp.isfinite(out)))
    assert loss is None
    # Tight check vs. a reference sharing the kernel's bf16 rounding of the first gemm
    # (isolates kernel correctness from the deliberate bf16 storage choice).
    assert float(jnp.max(jnp.abs(out - ref_q))) < 5e-3
    # Loose check vs. the full-f32 reference (only the 1536-deep gemm is stored bf16).
    assert float(jnp.max(jnp.abs(out - ref_f32))) < 5e-2
    print("KERNEL_OK")
</pallas_src>

<mosaic_0001>
module attributes {stable_mosaic.version = 11 : i64} {
  func.func @bigram_kernel(%arg0: i32, %arg1: memref<24x1536xbf16, #tpu.memory_space<vmem>>, %arg2: memref<1536x80xbf16, #tpu.memory_space<vmem>>, %arg3: memref<1x80xf32, #tpu.memory_space<vmem>>, %arg4: memref<24x80xf32, #tpu.memory_space<vmem>>, %arg5: memref<1x80xf32, #tpu.memory_space<vmem>>, %arg6: memref<1x80xf32, #tpu.memory_space<vmem>>, %arg7: memref<80x80xf32, #tpu.memory_space<vmem>>, %arg8: memref<80x80xf32, #tpu.memory_space<vmem>>, %arg9: memref<80x80xf32, #tpu.memory_space<vmem>>, %arg10: memref<80x80xf32, #tpu.memory_space<vmem>>, %arg11: memref<1x80xf32, #tpu.memory_space<vmem>>, %arg12: memref<1x80xf32, #tpu.memory_space<vmem>>, %arg13: memref<1x80xf32, #tpu.memory_space<vmem>>, %arg14: memref<80x320xf32, #tpu.memory_space<vmem>>, %arg15: memref<1x320xf32, #tpu.memory_space<vmem>>, %arg16: memref<320x80xf32, #tpu.memory_space<vmem>>, %arg17: memref<1x80xf32, #tpu.memory_space<vmem>>, %arg18: memref<80x80xf32, #tpu.memory_space<vmem>>, %arg19: memref<80x80xf32, #tpu.memory_space<vmem>>, %arg20: memref<36x6xf32, #tpu.memory_space<vmem>>, %arg21: memref<1x6xf32, #tpu.memory_space<vmem>>, %arg22: memref<6x6xf32, #tpu.memory_space<vmem>>, %arg23: memref<1x6xf32, #tpu.memory_space<vmem>>, %arg24: memref<1x6xf32, #tpu.memory_space<vmem>>, %arg25: memref<1x6xf32, #tpu.memory_space<vmem>>, %arg26: memref<240x80xf32, #tpu.memory_space<vmem>>, %arg27: memref<240x24xf32, #tpu.memory_space<vmem>>, %arg28: memref<24x24xf32, #tpu.memory_space<vmem>>, %arg29: memref<24x6xf32, #tpu.memory_space<vmem>>, %arg30: memref<24x36xf32, #tpu.memory_space<vmem>>, %arg31: memref<4x24xf32, #tpu.memory_space<vmem>>, %arg32: memref<4x6xf32, #tpu.memory_space<vmem>>) attributes {dimension_semantics = [#tpu.dimension_semantics<parallel>], iteration_bounds = array<i64: 1>, scalar_prefetch = 0 : i64, scratch_operands = 0 : i64, tpu.core_type = #tpu.core_type<tc>, window_params = [{transform_indices = @transform_0, window_bounds = array<i64: 24, 1536>}, {pipeline_mode = #tpu.pipeline_mode<synchronous>, transform_indices = @transform_1, window_bounds = array<i64: 1536, 80>}, {pipeline_mode = #tpu.pipeline_mode<synchronous>, transform_indices = @transform_2, window_bounds = array<i64: 1, 80>}, {pipeline_mode = #tpu.pipeline_mode<synchronous>, transform_indices = @transform_3, window_bounds = array<i64: 24, 80>}, {pipeline_mode = #tpu.pipeline_mode<synchronous>, transform_indices = @transform_4, window_bounds = array<i64: 1, 80>}, {pipeline_mode = #tpu.pipeline_mode<synchronous>, transform_indices = @transform_5, window_bounds = array<i64: 1, 80>}, {pipeline_mode = #tpu.pipeline_mode<synchronous>, transform_indices = @transform_6, window_bounds = array<i64: 80, 80>}, {pipeline_mode = #tpu.pipeline_mode<synchronous>, transform_indices = @transform_7, window_bounds = array<i64: 80, 80>}, {pipeline_mode = #tpu.pipeline_mode<synchronous>, transform_indices = @transform_8, window_bounds = array<i64: 80, 80>}, {pipeline_mode = #tpu.pipeline_mode<synchronous>, transform_indices = @transform_9, window_bounds = array<i64: 80, 80>}, {pipeline_mode = #tpu.pipeline_mode<synchronous>, transform_indices = @transform_10, window_bounds = array<i64: 1, 80>}, {pipeline_mode = #tpu.pipeline_mode<synchronous>, transform_indices = @transform_11, window_bounds = array<i64: 1, 80>}, {pipeline_mode = #tpu.pipeline_mode<synchronous>, transform_indices = @transform_12, window_bounds = array<i64: 1, 80>}, {pipeline_mode = #tpu.pipeline_mode<synchronous>, transform_indices = @transform_13, window_bounds = array<i64: 80, 320>}, {pipeline_mode = #tpu.pipeline_mode<synchronous>, transform_indices = @transform_14, window_bounds = array<i64: 1, 320>}, {pipeline_mode = #tpu.pipeline_mode<synchronous>, transform_indices = @transform_15, window_bounds = array<i64: 320, 80>}, {pipeline_mode = #tpu.pipeline_mode<synchronous>, transform_indices = @transform_16, window_bounds = array<i64: 1, 80>}, {pipeline_mode = #tpu.pipeline_mode<synchronous>, transform_indices = @transform_17, window_bounds = array<i64: 80, 80>}, {pipeline_mode = #tpu.pipeline_mode<synchronous>, transform_indices = @transform_18, window_bounds = array<i64: 80, 80>}, {pipeline_mode = #tpu.pipeline_mode<synchronous>, transform_indices = @transform_19, window_bounds = array<i64: 36, 6>}, {pipeline_mode = #tpu.pipeline_mode<synchronous>, transform_indices = @transform_20, window_bounds = array<i64: 1, 6>}, {pipeline_mode = #tpu.pipeline_mode<synchronous>, transform_indices = @transform_21, window_bounds = array<i64: 6, 6>}, {pipeline_mode = #tpu.pipeline_mode<synchronous>, transform_indices = @transform_22, window_bounds = array<i64: 1, 6>}, {pipeline_mode = #tpu.pipeline_mode<synchronous>, transform_indices = @transform_23, window_bounds = array<i64: 1, 6>}, {pipeline_mode = #tpu.pipeline_mode<synchronous>, transform_indices = @transform_24, window_bounds = array<i64: 1, 6>}, {pipeline_mode = #tpu.pipeline_mode<synchronous>, transform_indices = @transform_25, window_bounds = array<i64: 240, 80>}, {pipeline_mode = #tpu.pipeline_mode<synchronous>, transform_indices = @transform_26, window_bounds = array<i64: 240, 24>}, {pipeline_mode = #tpu.pipeline_mode<synchronous>, transform_indices = @transform_27, window_bounds = array<i64: 24, 24>}, {pipeline_mode = #tpu.pipeline_mode<synchronous>, transform_indices = @transform_28, window_bounds = array<i64: 24, 6>}, {pipeline_mode = #tpu.pipeline_mode<synchronous>, transform_indices = @transform_29, window_bounds = array<i64: 24, 36>}, {pipeline_mode = #tpu.pipeline_mode<synchronous>, transform_indices = @transform_30, window_bounds = array<i64: 4, 24>}, {transform_indices = @transform_31, window_bounds = array<i64: 4, 6>}]} {
    %c0 = arith.constant 0 : index
    %c0_0 = arith.constant 0 : index
    %0 = vector.load %arg1[%c0, %c0_0] : memref<24x1536xbf16, #tpu.memory_space<vmem>>, vector<24x1536xbf16>
    %c0_1 = arith.constant 0 : index
    %c0_2 = arith.constant 0 : index
    %1 = vector.load %arg2[%c0_1, %c0_2] : memref<1536x80xbf16, #tpu.memory_space<vmem>>, vector<1536x80xbf16>
    %cst = arith.constant dense<0.000000e+00> : vector<24x80xf32>
    %2 = tpu.matmul %0, %1, %cst {dimension_numbers = #tpu.dot_dimension_numbers<[1], [0], [0], [1], [0, 0, 1, 1], [], []>} : vector<24x1536xbf16>, vector<1536x80xbf16>, vector<24x80xf32> -> vector<24x80xf32>
    %c0_3 = arith.constant 0 : index
    %c0_4 = arith.constant 0 : index
    %3 = vector.load %arg3[%c0_3, %c0_4] : memref<1x80xf32, #tpu.memory_space<vmem>>, vector<1x80xf32>
    %4 = vector.broadcast %3 : vector<1x80xf32> to vector<24x80xf32>
    %5 = arith.addf %2, %4 : vector<24x80xf32>
    %c0_5 = arith.constant 0 : index
    %c0_6 = arith.constant 0 : index
    %6 = vector.load %arg4[%c0_5, %c0_6] : memref<24x80xf32, #tpu.memory_space<vmem>>, vector<24x80xf32>
    %7 = arith.addf %5, %6 : vector<24x80xf32>
    %c0_7 = arith.constant 0 : index
    %c0_8 = arith.constant 0 : index
    %8 = vector.load %arg5[%c0_7, %c0_8] : memref<1x80xf32, #tpu.memory_space<vmem>>, vector<1x80xf32>
    %c0_9 = arith.constant 0 : index
    %c0_10 = arith.constant 0 : index
    %9 = vector.load %arg6[%c0_9, %c0_10] : memref<1x80xf32, #tpu.memory_space<vmem>>, vector<1x80xf32>
    %cst_11 = arith.constant dense<0.000000e+00> : vector<24xf32>
    %10 = vector.multi_reduction <add>, %7, %cst_11 [1] : vector<24x80xf32> to vector<24xf32>
    %11 = vector.shape_cast %10 : vector<24xf32> to vector<24x1xf32>
    %cst_12 = arith.constant 8.000000e+01 : f32
    %12 = vector.broadcast %cst_12 : f32 to vector<24x1xf32>
    %13 = arith.divf %11, %12 : vector<24x1xf32>
    %14 = vector.broadcast %13 : vector<24x1xf32> to vector<24x80xf32>
    %15 = arith.subf %7, %14 : vector<24x80xf32>
    %16 = arith.mulf %15, %15 : vector<24x80xf32>
    %cst_13 = arith.constant dense<0.000000e+00> : vector<24xf32>
    %17 = vector.multi_reduction <add>, %16, %cst_13 [1] : vector<24x80xf32> to vector<24xf32>
    %18 = vector.shape_cast %17 : vector<24xf32> to vector<24x1xf32>
    %cst_14 = arith.constant 8.000000e+01 : f32
    %19 = vector.broadcast %cst_14 : f32 to vector<24x1xf32>
    %20 = arith.divf %18, %19 : vector<24x1xf32>
    %21 = vector.broadcast %13 : vector<24x1xf32> to vector<24x80xf32>
    %22 = arith.subf %7, %21 : vector<24x80xf32>
    %cst_15 = arith.constant 9.99999974E-6 : f32
    %23 = vector.broadcast %cst_15 : f32 to vector<24x1xf32>
    %24 = arith.addf %20, %23 : vector<24x1xf32>
    %25 = math.rsqrt %24 : vector<24x1xf32>
    %26 = vector.broadcast %25 : vector<24x1xf32> to vector<24x80xf32>
    %27 = arith.mulf %22, %26 : vector<24x80xf32>
    %28 = vector.broadcast %8 : vector<1x80xf32> to vector<24x80xf32>
    %29 = arith.mulf %27, %28 : vector<24x80xf32>
    %30 = vector.broadcast %9 : vector<1x80xf32> to vector<24x80xf32>
    %31 = arith.addf %29, %30 : vector<24x80xf32>
    %c0_16 = arith.constant 0 : index
    %c0_17 = arith.constant 0 : index
    %32 = vector.load %arg7[%c0_16, %c0_17] : memref<80x80xf32, #tpu.memory_space<vmem>>, vector<80x80xf32>
    %cst_18 = arith.constant dense<0.000000e+00> : vector<24x80xf32>
    %33 = tpu.matmul %31, %32, %cst_18 {dimension_numbers = #tpu.dot_dimension_numbers<[1], [0], [0], [1], [0, 0, 1, 1], [], []>} : vector<24x80xf32>, vector<80x80xf32>, vector<24x80xf32> -> vector<24x80xf32>
    %c0_19 = arith.constant 0 : index
    %c0_20 = arith.constant 0 : index
    %34 = vector.load %arg8[%c0_19, %c0_20] : memref<80x80xf32, #tpu.memory_space<vmem>>, vector<80x80xf32>
    %cst_21 = arith.constant dense<0.000000e+00> : vector<24x80xf32>
    %35 = tpu.matmul %31, %34, %cst_21 {dimension_numbers = #tpu.dot_dimension_numbers<[1], [0], [0], [1], [0, 0, 1, 1], [], []>} : vector<24x80xf32>, vector<80x80xf32>, vector<24x80xf32> -> vector<24x80xf32>
    %c0_22 = arith.constant 0 : index
    %c0_23 = arith.constant 0 : index
    %36 = vector.load %arg9[%c0_22, %c0_23] : memref<80x80xf32, #tpu.memory_space<vmem>>, vector<80x80xf32>
    %cst_24 = arith.constant dense<0.000000e+00> : vector<24x80xf32>
    %37 = tpu.matmul %31, %36, %cst_24 {dimension_numbers = #tpu.dot_dimension_numbers<[1], [0], [0], [1], [0, 0, 1, 1], [], []>} : vector<24x80xf32>, vector<80x80xf32>, vector<24x80xf32> -> vector<24x80xf32>
    %c0_25 = arith.constant 0 : index
    %c0_26 = arith.constant 0 : index
    %38 = vector.load %arg26[%c0_25, %c0_26] : memref<240x80xf32, #tpu.memory_space<vmem>>, vector<240x80xf32>
    %39 = tpu.concatenate %35, %35, %35, %35, %35, %35, %35, %35, %35, %35 in 0 : vector<24x80xf32>, vector<24x80xf32>, vector<24x80xf32>, vector<24x80xf32>, vector<24x80xf32>, vector<24x80xf32>, vector<24x80xf32>, vector<24x80xf32>, vector<24x80xf32>, vector<24x80xf32> -> vector<240x80xf32>
    %40 = arith.mulf %39, %38 : vector<240x80xf32>
    %cst_27 = arith.constant dense<0.000000e+00> : vector<240x24xf32>
    %41 = tpu.matmul %40, %33, %cst_27 {dimension_numbers = #tpu.dot_dimension_numbers<[1], [1], [0], [0], [0, 0, 1, 0], [], []>} : vector<240x80xf32>, vector<24x80xf32>, vector<240x24xf32> -> vector<240x24xf32>
    %cst_28 = arith.constant 0.111803398 : f32
    %42 = vector.broadcast %cst_28 : f32 to vector<240x24xf32>
    %43 = arith.mulf %41, %42 : vector<240x24xf32>
    %c0_29 = arith.constant 0 : index
    %c0_30 = arith.constant 0 : index
    %44 = vector.load %arg27[%c0_29, %c0_30] : memref<240x24xf32, #tpu.memory_space<vmem>>, vector<240x24xf32>
    %45 = arith.addf %43, %44 : vector<240x24xf32>
    %cst_31 = arith.constant dense<0xFF800000> : vector<240xf32>
    %46 = vector.multi_reduction <maximumf>, %45, %cst_31 [1] : vector<240x24xf32> to vector<240xf32>
    %47 = vector.shape_cast %46 : vector<240xf32> to vector<240x1xf32>
    %48 = vector.broadcast %47 : vector<240x1xf32> to vector<240x24xf32>
    %49 = arith.subf %45, %48 : vector<240x24xf32>
    %50 = math.exp %49 : vector<240x24xf32>
    %cst_32 = arith.constant dense<0.000000e+00> : vector<240xf32>
    %51 = vector.multi_reduction <add>, %50, %cst_32 [1] : vector<240x24xf32> to vector<240xf32>
    %52 = vector.shape_cast %51 : vector<240xf32> to vector<240x1xf32>
    %53 = vector.broadcast %52 : vector<240x1xf32> to vector<240x24xf32>
    %54 = arith.divf %50, %53 : vector<240x24xf32>
    %cst_33 = arith.constant dense<0.000000e+00> : vector<240x80xf32>
    %55 = tpu.matmul %54, %37, %cst_33 {dimension_numbers = #tpu.dot_dimension_numbers<[1], [0], [0], [1], [0, 0, 1, 1], [], []>} : vector<240x24xf32>, vector<24x80xf32>, vector<240x80xf32> -> vector<240x80xf32>
    %56 = arith.mulf %55, %38 : vector<240x80xf32>
    %57 = vector.extract_strided_slice %56 {offsets = [0, 0], sizes = [24, 80], strides = [1, 1]} : vector<240x80xf32> to vector<24x80xf32>
    %58 = vector.extract_strided_slice %56 {offsets = [24, 0], sizes = [24, 80], strides = [1, 1]} : vector<240x80xf32> to vector<24x80xf32>
    %59 = arith.addf %57, %58 : vector<24x80xf32>
    %60 = vector.extract_strided_slice %56 {offsets = [48, 0], sizes = [24, 80], strides = [1, 1]} : vector<240x80xf32> to vector<24x80xf32>
    %61 = arith.addf %59, %60 : vector<24x80xf32>
    %62 = vector.extract_strided_slice %56 {offsets = [72, 0], sizes = [24, 80], strides = [1, 1]} : vector<240x80xf32> to vector<24x80xf32>
    %63 = arith.addf %61, %62 : vector<24x80xf32>
    %64 = vector.extract_strided_slice %56 {offsets = [96, 0], sizes = [24, 80], strides = [1, 1]} : vector<240x80xf32> to vector<24x80xf32>
    %65 = arith.addf %63, %64 : vector<24x80xf32>
    %66 = vector.extract_strided_slice %56 {offsets = [120, 0], sizes = [24, 80], strides = [1, 1]} : vector<240x80xf32> to vector<24x80xf32>
    %67 = arith.addf %65, %66 : vector<24x80xf32>
    %68 = vector.extract_strided_slice %56 {offsets = [144, 0], sizes = [24, 80], strides = [1, 1]} : vector<240x80xf32> to vector<24x80xf32>
    %69 = arith.addf %67, %68 : vector<24x80xf32>
    %70 = vector.extract_strided_slice %56 {offsets = [168, 0], sizes = [24, 80], strides = [1, 1]} : vector<240x80xf32> to vector<24x80xf32>
    %71 = arith.addf %69, %70 : vector<24x80xf32>
    %72 = vector.extract_strided_slice %56 {offsets = [192, 0], sizes = [24, 80], strides = [1, 1]} : vector<240x80xf32> to vector<24x80xf32>
    %73 = arith.addf %71, %72 : vector<24x80xf32>
    %74 = vector.extract_strided_slice %56 {offsets = [216, 0], sizes = [24, 80], strides = [1, 1]} : vector<240x80xf32> to vector<24x80xf32>
    %75 = arith.addf %73, %74 : vector<24x80xf32>
    %c0_34 = arith.constant 0 : index
    %c0_35 = arith.constant 0 : index
    %76 = vector.load %arg10[%c0_34, %c0_35] : memref<80x80xf32, #tpu.memory_space<vmem>>, vector<80x80xf32>
    %cst_36 = arith.constant dense<0.000000e+00> : vector<24x80xf32>
    %77 = tpu.matmul %75, %76, %cst_36 {dimension_numbers = #tpu.dot_dimension_numbers<[1], [0], [0], [1], [0, 0, 1, 1], [], []>} : vector<24x80xf32>, vector<80x80xf32>, vector<24x80xf32> -> vector<24x80xf32>
    %c0_37 = arith.constant 0 : index
    %c0_38 = arith.constant 0 : index
    %78 = vector.load %arg11[%c0_37, %c0_38] : memref<1x80xf32, #tpu.memory_space<vmem>>, vector<1x80xf32>
    %79 = vector.broadcast %78 : vector<1x80xf32> to vector<24x80xf32>
    %80 = arith.addf %77, %79 : vector<24x80xf32>
    %81 = arith.addf %7, %80 : vector<24x80xf32>
    %c0_39 = arith.constant 0 : index
    %c0_40 = arith.constant 0 : index
    %82 = vector.load %arg12[%c0_39, %c0_40] : memref<1x80xf32, #tpu.memory_space<vmem>>, vector<1x80xf32>
    %c0_41 = arith.constant 0 : index
    %c0_42 = arith.constant 0 : index
    %83 = vector.load %arg13[%c0_41, %c0_42] : memref<1x80xf32, #tpu.memory_space<vmem>>, vector<1x80xf32>
    %cst_43 = arith.constant dense<0.000000e+00> : vector<24xf32>
    %84 = vector.multi_reduction <add>, %81, %cst_43 [1] : vector<24x80xf32> to vector<24xf32>
    %85 = vector.shape_cast %84 : vector<24xf32> to vector<24x1xf32>
    %cst_44 = arith.constant 8.000000e+01 : f32
    %86 = vector.broadcast %cst_44 : f32 to vector<24x1xf32>
    %87 = arith.divf %85, %86 : vector<24x1xf32>
    %88 = vector.broadcast %87 : vector<24x1xf32> to vector<24x80xf32>
    %89 = arith.subf %81, %88 : vector<24x80xf32>
    %90 = arith.mulf %89, %89 : vector<24x80xf32>
    %cst_45 = arith.constant dense<0.000000e+00> : vector<24xf32>
    %91 = vector.multi_reduction <add>, %90, %cst_45 [1] : vector<24x80xf32> to vector<24xf32>
    %92 = vector.shape_cast %91 : vector<24xf32> to vector<24x1xf32>
    %cst_46 = arith.constant 8.000000e+01 : f32
    %93 = vector.broadcast %cst_46 : f32 to vector<24x1xf32>
    %94 = arith.divf %92, %93 : vector<24x1xf32>
    %95 = vector.broadcast %87 : vector<24x1xf32> to vector<24x80xf32>
    %96 = arith.subf %81, %95 : vector<24x80xf32>
    %cst_47 = arith.constant 9.99999974E-6 : f32
    %97 = vector.broadcast %cst_47 : f32 to vector<24x1xf32>
    %98 = arith.addf %94, %97 : vector<24x1xf32>
    %99 = math.rsqrt %98 : vector<24x1xf32>
    %100 = vector.broadcast %99 : vector<24x1xf32> to vector<24x80xf32>
    %101 = arith.mulf %96, %100 : vector<24x80xf32>
    %102 = vector.broadcast %82 : vector<1x80xf32> to vector<24x80xf32>
    %103 = arith.mulf %101, %102 : vector<24x80xf32>
    %104 = vector.broadcast %83 : vector<1x80xf32> to vector<24x80xf32>
    %105 = arith.addf %103, %104 : vector<24x80xf32>
    %c0_48 = arith.constant 0 : index
    %c0_49 = arith.constant 0 : index
    %106 = vector.load %arg14[%c0_48, %c0_49] : memref<80x320xf32, #tpu.memory_space<vmem>>, vector<80x320xf32>
    %cst_50 = arith.constant dense<0.000000e+00> : vector<24x320xf32>
    %107 = tpu.matmul %105, %106, %cst_50 {dimension_numbers = #tpu.dot_dimension_numbers<[1], [0], [0], [1], [0, 0, 1, 1], [], []>} : vector<24x80xf32>, vector<80x320xf32>, vector<24x320xf32> -> vector<24x320xf32>
    %c0_51 = arith.constant 0 : index
    %c0_52 = arith.constant 0 : index
    %108 = vector.load %arg15[%c0_51, %c0_52] : memref<1x320xf32, #tpu.memory_space<vmem>>, vector<1x320xf32>
    %109 = vector.broadcast %108 : vector<1x320xf32> to vector<24x320xf32>
    %110 = arith.addf %107, %109 : vector<24x320xf32>
    %cst_53 = arith.constant 0.000000e+00 : f32
    %111 = vector.broadcast %cst_53 : f32 to vector<24x320xf32>
    %112 = arith.maximumf %110, %111 : vector<24x320xf32>
    %c0_54 = arith.constant 0 : index
    %c0_55 = arith.constant 0 : index
    %113 = vector.load %arg16[%c0_54, %c0_55] : memref<320x80xf32, #tpu.memory_space<vmem>>, vector<320x80xf32>
    %cst_56 = arith.constant dense<0.000000e+00> : vector<24x80xf32>
    %114 = tpu.matmul %112, %113, %cst_56 {dimension_numbers = #tpu.dot_dimension_numbers<[1], [0], [0], [1], [0, 0, 1, 1], [], []>} : vector<24x320xf32>, vector<320x80xf32>, vector<24x80xf32> -> vector<24x80xf32>
    %c0_57 = arith.constant 0 : index
    %c0_58 = arith.constant 0 : index
    %115 = vector.load %arg17[%c0_57, %c0_58] : memref<1x80xf32, #tpu.memory_space<vmem>>, vector<1x80xf32>
    %116 = vector.broadcast %115 : vector<1x80xf32> to vector<24x80xf32>
    %117 = arith.addf %114, %116 : vector<24x80xf32>
    %118 = arith.addf %81, %117 : vector<24x80xf32>
    %c0_59 = arith.constant 0 : index
    %c0_60 = arith.constant 0 : index
    %119 = vector.load %arg18[%c0_59, %c0_60] : memref<80x80xf32, #tpu.memory_space<vmem>>, vector<80x80xf32>
    %cst_61 = arith.constant dense<0.000000e+00> : vector<24x80xf32>
    %120 = tpu.matmul %118, %119, %cst_61 {dimension_numbers = #tpu.dot_dimension_numbers<[1], [0], [0], [1], [0, 0, 1, 1], [], []>} : vector<24x80xf32>, vector<80x80xf32>, vector<24x80xf32> -> vector<24x80xf32>
    %c0_62 = arith.constant 0 : index
    %c0_63 = arith.constant 0 : index
    %121 = vector.load %arg19[%c0_62, %c0_63] : memref<80x80xf32, #tpu.memory_space<vmem>>, vector<80x80xf32>
    %cst_64 = arith.constant dense<0.000000e+00> : vector<24x80xf32>
    %122 = tpu.matmul %118, %121, %cst_64 {dimension_numbers = #tpu.dot_dimension_numbers<[1], [0], [0], [1], [0, 0, 1, 1], [], []>} : vector<24x80xf32>, vector<80x80xf32>, vector<24x80xf32> -> vector<24x80xf32>
    %c0_65 = arith.constant 0 : index
    %c0_66 = arith.constant 0 : index
    %123 = vector.load %arg28[%c0_65, %c0_66] : memref<24x24xf32, #tpu.memory_space<vmem>>, vector<24x24xf32>
    %cst_67 = arith.constant dense<0.000000e+00> : vector<24x24xf32>
    %124 = tpu.matmul %122, %120, %cst_67 {dimension_numbers = #tpu.dot_dimension_numbers<[1], [1], [0], [0], [0, 0, 1, 0], [], []>} : vector<24x80xf32>, vector<24x80xf32>, vector<24x24xf32> -> vector<24x24xf32>
    %cst_68 = arith.constant 0.111803398 : f32
    %125 = vector.broadcast %cst_68 : f32 to vector<24x24xf32>
    %126 = arith.mulf %124, %125 : vector<24x24xf32>
    %127 = arith.mulf %126, %123 : vector<24x24xf32>
    %c0_69 = arith.constant 0 : index
    %c0_70 = arith.constant 0 : index
    %128 = vector.load %arg29[%c0_69, %c0_70] : memref<24x6xf32, #tpu.memory_space<vmem>>, vector<24x6xf32>
    %cst_71 = arith.constant dense<0.000000e+00> : vector<24x6xf32>
    %129 = tpu.matmul %127, %128, %cst_71 {dimension_numbers = #tpu.dot_dimension_numbers<[1], [0], [0], [1], [0, 0, 1, 1], [], []>} : vector<24x24xf32>, vector<24x6xf32>, vector<24x6xf32> -> vector<24x6xf32>
    %cst_72 = arith.constant dense<0.000000e+00> : vector<24xf32>
    %130 = vector.multi_reduction <add>, %129, %cst_72 [1] : vector<24x6xf32> to vector<24xf32>
    %131 = vector.shape_cast %130 : vector<24xf32> to vector<24x1xf32>
    %132 = arith.mulf %129, %129 : vector<24x6xf32>
    %cst_73 = arith.constant dense<0.000000e+00> : vector<24xf32>
    %133 = vector.multi_reduction <add>, %132, %cst_73 [1] : vector<24x6xf32> to vector<24xf32>
    %134 = vector.shape_cast %133 : vector<24xf32> to vector<24x1xf32>
    %cst_74 = arith.constant dense<0.000000e+00> : vector<24x1xf32>
    %135 = tpu.matmul %123, %131, %cst_74 {dimension_numbers = #tpu.dot_dimension_numbers<[1], [0], [0], [1], [0, 0, 1, 1], [], []>} : vector<24x24xf32>, vector<24x1xf32>, vector<24x1xf32> -> vector<24x1xf32>
    %cst_75 = arith.constant 0.027777778 : f32
    %136 = vector.broadcast %cst_75 : f32 to vector<24x1xf32>
    %137 = arith.mulf %135, %136 : vector<24x1xf32>
    %cst_76 = arith.constant dense<0.000000e+00> : vector<24x1xf32>
    %138 = tpu.matmul %123, %134, %cst_76 {dimension_numbers = #tpu.dot_dimension_numbers<[1], [0], [0], [1], [0, 0, 1, 1], [], []>} : vector<24x24xf32>, vector<24x1xf32>, vector<24x1xf32> -> vector<24x1xf32>
    %cst_77 = arith.constant 0.027777778 : f32
    %139 = vector.broadcast %cst_77 : f32 to vector<24x1xf32>
    %140 = arith.mulf %138, %139 : vector<24x1xf32>
    %141 = arith.mulf %137, %137 : vector<24x1xf32>
    %142 = arith.subf %140, %141 : vector<24x1xf32>
    %cst_78 = arith.constant 0.000000e+00 : f32
    %143 = vector.broadcast %cst_78 : f32 to vector<24x1xf32>
    %144 = arith.maximumf %142, %143 : vector<24x1xf32>
    %145 = vector.broadcast %137 : vector<24x1xf32> to vector<24x6xf32>
    %146 = arith.subf %129, %145 : vector<24x6xf32>
    %cst_79 = arith.constant 9.99999974E-6 : f32
    %147 = vector.broadcast %cst_79 : f32 to vector<24x1xf32>
    %148 = arith.addf %144, %147 : vector<24x1xf32>
    %149 = math.rsqrt %148 : vector<24x1xf32>
    %150 = vector.broadcast %149 : vector<24x1xf32> to vector<24x6xf32>
    %151 = arith.mulf %146, %150 : vector<24x6xf32>
    %152 = tpu.concatenate %151, %151, %151, %151, %151, %151 in 1 : vector<24x6xf32>, vector<24x6xf32>, vector<24x6xf32>, vector<24x6xf32>, vector<24x6xf32>, vector<24x6xf32> -> vector<24x36xf32>
    %c0_80 = arith.constant 0 : index
    %c0_81 = arith.constant 0 : index
    %153 = vector.load %arg30[%c0_80, %c0_81] : memref<24x36xf32, #tpu.memory_space<vmem>>, vector<24x36xf32>
    %154 = arith.mulf %152, %153 : vector<24x36xf32>
    %c0_82 = arith.constant 0 : index
    %c0_83 = arith.constant 0 : index
    %155 = vector.load %arg20[%c0_82, %c0_83] : memref<36x6xf32, #tpu.memory_space<vmem>>, vector<36x6xf32>
    %cst_84 = arith.constant dense<0.000000e+00> : vector<24x6xf32>
    %156 = tpu.matmul %154, %155, %cst_84 {dimension_numbers = #tpu.dot_dimension_numbers<[1], [0], [0], [1], [0, 0, 1, 1], [], []>} : vector<24x36xf32>, vector<36x6xf32>, vector<24x6xf32> -> vector<24x6xf32>
    %c0_85 = arith.constant 0 : index
    %c0_86 = arith.constant 0 : index
    %157 = vector.load %arg31[%c0_85, %c0_86] : memref<4x24xf32, #tpu.memory_space<vmem>>, vector<4x24xf32>
    %cst_87 = arith.constant dense<0.000000e+00> : vector<4x6xf32>
    %158 = tpu.matmul %157, %156, %cst_87 {dimension_numbers = #tpu.dot_dimension_numbers<[1], [0], [0], [1], [0, 0, 1, 1], [], []>} : vector<4x24xf32>, vector<24x6xf32>, vector<4x6xf32> -> vector<4x6xf32>
    %c0_88 = arith.constant 0 : index
    %c0_89 = arith.constant 0 : index
    %159 = vector.load %arg21[%c0_88, %c0_89] : memref<1x6xf32, #tpu.memory_space<vmem>>, vector<1x6xf32>
    %160 = vector.broadcast %159 : vector<1x6xf32> to vector<4x6xf32>
    %161 = arith.addf %158, %160 : vector<4x6xf32>
    %cst_90 = arith.constant 0.000000e+00 : f32
    %162 = vector.broadcast %cst_90 : f32 to vector<4x6xf32>
    %163 = arith.maximumf %161, %162 : vector<4x6xf32>
    %c0_91 = arith.constant 0 : index
    %c0_92 = arith.constant 0 : index
    %164 = vector.load %arg22[%c0_91, %c0_92] : memref<6x6xf32, #tpu.memory_space<vmem>>, vector<6x6xf32>
    %cst_93 = arith.constant dense<0.000000e+00> : vector<4x6xf32>
    %165 = tpu.matmul %163, %164, %cst_93 {dimension_numbers = #tpu.dot_dimension_numbers<[1], [0], [0], [1], [0, 0, 1, 1], [], []>} : vector<4x6xf32>, vector<6x6xf32>, vector<4x6xf32> -> vector<4x6xf32>
    %c0_94 = arith.constant 0 : index
    %c0_95 = arith.constant 0 : index
    %166 = vector.load %arg23[%c0_94, %c0_95] : memref<1x6xf32, #tpu.memory_space<vmem>>, vector<1x6xf32>
    %167 = vector.broadcast %166 : vector<1x6xf32> to vector<4x6xf32>
    %168 = arith.addf %165, %167 : vector<4x6xf32>
    %cst_96 = arith.constant 0.000000e+00 : f32
    %169 = vector.broadcast %cst_96 : f32 to vector<4x6xf32>
    %170 = arith.maximumf %168, %169 : vector<4x6xf32>
    %c0_97 = arith.constant 0 : index
    %c0_98 = arith.constant 0 : index
    %171 = vector.load %arg24[%c0_97, %c0_98] : memref<1x6xf32, #tpu.memory_space<vmem>>, vector<1x6xf32>
    %c0_99 = arith.constant 0 : index
    %c0_100 = arith.constant 0 : index
    %172 = vector.load %arg25[%c0_99, %c0_100] : memref<1x6xf32, #tpu.memory_space<vmem>>, vector<1x6xf32>
    %cst_101 = arith.constant dense<0.000000e+00> : vector<4xf32>
    %173 = vector.multi_reduction <add>, %170, %cst_101 [1] : vector<4x6xf32> to vector<4xf32>
    %174 = vector.shape_cast %173 : vector<4xf32> to vector<4x1xf32>
    %cst_102 = arith.constant 6.000000e+00 : f32
    %175 = vector.broadcast %cst_102 : f32 to vector<4x1xf32>
    %176 = arith.divf %174, %175 : vector<4x1xf32>
    %177 = vector.broadcast %176 : vector<4x1xf32> to vector<4x6xf32>
    %178 = arith.subf %170, %177 : vector<4x6xf32>
    %179 = arith.mulf %178, %178 : vector<4x6xf32>
    %cst_103 = arith.constant dense<0.000000e+00> : vector<4xf32>
    %180 = vector.multi_reduction <add>, %179, %cst_103 [1] : vector<4x6xf32> to vector<4xf32>
    %181 = vector.shape_cast %180 : vector<4xf32> to vector<4x1xf32>
    %cst_104 = arith.constant 6.000000e+00 : f32
    %182 = vector.broadcast %cst_104 : f32 to vector<4x1xf32>
    %183 = arith.divf %181, %182 : vector<4x1xf32>
    %184 = vector.broadcast %176 : vector<4x1xf32> to vector<4x6xf32>
    %185 = arith.subf %170, %184 : vector<4x6xf32>
    %cst_105 = arith.constant 9.99999974E-6 : f32
    %186 = vector.broadcast %cst_105 : f32 to vector<4x1xf32>
    %187 = arith.addf %183, %186 : vector<4x1xf32>
    %188 = math.rsqrt %187 : vector<4x1xf32>
    %189 = vector.broadcast %188 : vector<4x1xf32> to vector<4x6xf32>
    %190 = arith.mulf %185, %189 : vector<4x6xf32>
    %191 = vector.broadcast %171 : vector<1x6xf32> to vector<4x6xf32>
    %192 = arith.mulf %190, %191 : vector<4x6xf32>
    %193 = vector.broadcast %172 : vector<1x6xf32> to vector<4x6xf32>
    %194 = arith.addf %192, %193 : vector<4x6xf32>
    %cst_106 = arith.constant dense<0xFF800000> : vector<4xf32>
    %195 = vector.multi_reduction <maximumf>, %194, %cst_106 [1] : vector<4x6xf32> to vector<4xf32>
    %196 = vector.shape_cast %195 : vector<4xf32> to vector<4x1xf32>
    %197 = vector.broadcast %196 : vector<4x1xf32> to vector<4x6xf32>
    %198 = arith.subf %194, %197 : vector<4x6xf32>
    %199 = math.exp %198 : vector<4x6xf32>
    %cst_107 = arith.constant dense<0.000000e+00> : vector<4xf32>
    %200 = vector.multi_reduction <add>, %199, %cst_107 [1] : vector<4x6xf32> to vector<4xf32>
    %201 = vector.shape_cast %200 : vector<4xf32> to vector<4x1xf32>
    %202 = vector.broadcast %201 : vector<4x1xf32> to vector<4x6xf32>
    %203 = arith.divf %199, %202 : vector<4x6xf32>
    %c0_108 = arith.constant 0 : index
    %c0_109 = arith.constant 0 : index
    %204 = vector.load %arg32[%c0_108, %c0_109] : memref<4x6xf32, #tpu.memory_space<vmem>>, vector<4x6xf32>
    tpu.vector_store %arg32[%c0_108, %c0_109], %203 {strides = array<i32>} : memref<4x6xf32, #tpu.memory_space<vmem>>, vector<4x6xf32>,
    return
  }
  func.func @transform_0(%arg0: i32) -> (i32, i32) {
    %c0_i32 = arith.constant 0 : i32
    %c0_i32_0 = arith.constant 0 : i32
    return %arg0, %c0_i32 : i32, i32
  }
  func.func @transform_1(%arg0: i32) -> (i32, i32) {
    %c0_i32 = arith.constant 0 : i32
    %c0_i32_0 = arith.constant 0 : i32
    %c0_i32_1 = arith.constant 0 : i32
    return %c0_i32, %c0_i32_0 : i32, i32
  }
  func.func @transform_2(%arg0: i32) -> (i32, i32) {
    %c0_i32 = arith.constant 0 : i32
    %c0_i32_0 = arith.constant 0 : i32
    %c0_i32_1 = arith.constant 0 : i32
    return %c0_i32, %c0_i32_0 : i32, i32
  }
  func.func @transform_3(%arg0: i32) -> (i32, i32) {
    %c0_i32 = arith.constant 0 : i32
    %c0_i32_0 = arith.constant 0 : i32
    %c0_i32_1 = arith.constant 0 : i32
    return %c0_i32, %c0_i32_0 : i32, i32
  }
  func.func @transform_4(%arg0: i32) -> (i32, i32) {
    %c0_i32 = arith.constant 0 : i32
    %c0_i32_0 = arith.constant 0 : i32
    %c0_i32_1 = arith.constant 0 : i32
    return %c0_i32, %c0_i32_0 : i32, i32
  }
  func.func @transform_5(%arg0: i32) -> (i32, i32) {
    %c0_i32 = arith.constant 0 : i32
    %c0_i32_0 = arith.constant 0 : i32
    %c0_i32_1 = arith.constant 0 : i32
    return %c0_i32, %c0_i32_0 : i32, i32
  }
  func.func @transform_6(%arg0: i32) -> (i32, i32) {
    %c0_i32 = arith.constant 0 : i32
    %c0_i32_0 = arith.constant 0 : i32
    %c0_i32_1 = arith.constant 0 : i32
    return %c0_i32, %c0_i32_0 : i32, i32
  }
  func.func @transform_7(%arg0: i32) -> (i32, i32) {
    %c0_i32 = arith.constant 0 : i32
    %c0_i32_0 = arith.constant 0 : i32
    %c0_i32_1 = arith.constant 0 : i32
    return %c0_i32, %c0_i32_0 : i32, i32
  }
  func.func @transform_8(%arg0: i32) -> (i32, i32) {
    %c0_i32 = arith.constant 0 : i32
    %c0_i32_0 = arith.constant 0 : i32
    %c0_i32_1 = arith.constant 0 : i32
    return %c0_i32, %c0_i32_0 : i32, i32
  }
  func.func @transform_9(%arg0: i32) -> (i32, i32) {
    %c0_i32 = arith.constant 0 : i32
    %c0_i32_0 = arith.constant 0 : i32
    %c0_i32_1 = arith.constant 0 : i32
    return %c0_i32, %c0_i32_0 : i32, i32
  }
  func.func @transform_10(%arg0: i32) -> (i32, i32) {
    %c0_i32 = arith.constant 0 : i32
    %c0_i32_0 = arith.constant 0 : i32
    %c0_i32_1 = arith.constant 0 : i32
    return %c0_i32, %c0_i32_0 : i32, i32
  }
  func.func @transform_11(%arg0: i32) -> (i32, i32) {
    %c0_i32 = arith.constant 0 : i32
    %c0_i32_0 = arith.constant 0 : i32
    %c0_i32_1 = arith.constant 0 : i32
    return %c0_i32, %c0_i32_0 : i32, i32
  }
  func.func @transform_12(%arg0: i32) -> (i32, i32) {
    %c0_i32 = arith.constant 0 : i32
    %c0_i32_0 = arith.constant 0 : i32
    %c0_i32_1 = arith.constant 0 : i32
    return %c0_i32, %c0_i32_0 : i32, i32
  }
  func.func @transform_13(%arg0: i32) -> (i32, i32) {
    %c0_i32 = arith.constant 0 : i32
    %c0_i32_0 = arith.constant 0 : i32
    %c0_i32_1 = arith.constant 0 : i32
    return %c0_i32, %c0_i32_0 : i32, i32
  }
  func.func @transform_14(%arg0: i32) -> (i32, i32) {
    %c0_i32 = arith.constant 0 : i32
    %c0_i32_0 = arith.constant 0 : i32
    %c0_i32_1 = arith.constant 0 : i32
    return %c0_i32, %c0_i32_0 : i32, i32
  }
  func.func @transform_15(%arg0: i32) -> (i32, i32) {
    %c0_i32 = arith.constant 0 : i32
    %c0_i32_0 = arith.constant 0 : i32
    %c0_i32_1 = arith.constant 0 : i32
    return %c0_i32, %c0_i32_0 : i32, i32
  }
  func.func @transform_16(%arg0: i32) -> (i32, i32) {
    %c0_i32 = arith.constant 0 : i32
    %c0_i32_0 = arith.constant 0 : i32
    %c0_i32_1 = arith.constant 0 : i32
    return %c0_i32, %c0_i32_0 : i32, i32
  }
  func.func @transform_17(%arg0: i32) -> (i32, i32) {
    %c0_i32 = arith.constant 0 : i32
    %c0_i32_0 = arith.constant 0 : i32
    %c0_i32_1 = arith.constant 0 : i32
    return %c0_i32, %c0_i32_0 : i32, i32
  }
  func.func @transform_18(%arg0: i32) -> (i32, i32) {
    %c0_i32 = arith.constant 0 : i32
    %c0_i32_0 = arith.constant 0 : i32
    %c0_i32_1 = arith.constant 0 : i32
    return %c0_i32, %c0_i32_0 : i32, i32
  }
  func.func @transform_19(%arg0: i32) -> (i32, i32) {
    %c0_i32 = arith.constant 0 : i32
    %c0_i32_0 = arith.constant 0 : i32
    %c0_i32_1 = arith.constant 0 : i32
    return %c0_i32, %c0_i32_0 : i32, i32
  }
  func.func @transform_20(%arg0: i32) -> (i32, i32) {
    %c0_i32 = arith.constant 0 : i32
    %c0_i32_0 = arith.constant 0 : i32
    %c0_i32_1 = arith.constant 0 : i32
    return %c0_i32, %c0_i32_0 : i32, i32
  }
  func.func @transform_21(%arg0: i32) -> (i32, i32) {
    %c0_i32 = arith.constant 0 : i32
    %c0_i32_0 = arith.constant 0 : i32
    %c0_i32_1 = arith.constant 0 : i32
    return %c0_i32, %c0_i32_0 : i32, i32
  }
  func.func @transform_22(%arg0: i32) -> (i32, i32) {
    %c0_i32 = arith.constant 0 : i32
    %c0_i32_0 = arith.constant 0 : i32
    %c0_i32_1 = arith.constant 0 : i32
    return %c0_i32, %c0_i32_0 : i32, i32
  }
  func.func @transform_23(%arg0: i32) -> (i32, i32) {
    %c0_i32 = arith.constant 0 : i32
    %c0_i32_0 = arith.constant 0 : i32
    %c0_i32_1 = arith.constant 0 : i32
    return %c0_i32, %c0_i32_0 : i32, i32
  }
  func.func @transform_24(%arg0: i32) -> (i32, i32) {
    %c0_i32 = arith.constant 0 : i32
    %c0_i32_0 = arith.constant 0 : i32
    %c0_i32_1 = arith.constant 0 : i32
    return %c0_i32, %c0_i32_0 : i32, i32
  }
  func.func @transform_25(%arg0: i32) -> (i32, i32) {
    %c0_i32 = arith.constant 0 : i32
    %c0_i32_0 = arith.constant 0 : i32
    %c0_i32_1 = arith.constant 0 : i32
    return %c0_i32, %c0_i32_0 : i32, i32
  }
  func.func @transform_26(%arg0: i32) -> (i32, i32) {
    %c0_i32 = arith.constant 0 : i32
    %c0_i32_0 = arith.constant 0 : i32
    %c0_i32_1 = arith.constant 0 : i32
    return %c0_i32, %c0_i32_0 : i32, i32
  }
  func.func @transform_27(%arg0: i32) -> (i32, i32) {
    %c0_i32 = arith.constant 0 : i32
    %c0_i32_0 = arith.constant 0 : i32
    %c0_i32_1 = arith.constant 0 : i32
    return %c0_i32, %c0_i32_0 : i32, i32
  }
  func.func @transform_28(%arg0: i32) -> (i32, i32) {
    %c0_i32 = arith.constant 0 : i32
    %c0_i32_0 = arith.constant 0 : i32
    %c0_i32_1 = arith.constant 0 : i32
    return %c0_i32, %c0_i32_0 : i32, i32
  }
  func.func @transform_29(%arg0: i32) -> (i32, i32) {
    %c0_i32 = arith.constant 0 : i32
    %c0_i32_0 = arith.constant 0 : i32
    %c0_i32_1 = arith.constant 0 : i32
    return %c0_i32, %c0_i32_0 : i32, i32
  }
  func.func @transform_30(%arg0: i32) -> (i32, i32) {
    %c0_i32 = arith.constant 0 : i32
    %c0_i32_0 = arith.constant 0 : i32
    %c0_i32_1 = arith.constant 0 : i32
    return %c0_i32, %c0_i32_0 : i32, i32
  }
  func.func @transform_31(%arg0: i32) -> (i32, i32) {
    %c0_i32 = arith.constant 0 : i32
    %c0_i32_0 = arith.constant 0 : i32
    return %arg0, %c0_i32 : i32, i32
  }
}

</mosaic_0001>

<llo_original>
// kernel: tpu_custom_call.1
$region0: #{tpu_custom_call.1}
  #allocation0 [shape = 'u32[]', space=smem, size = 0x4, offset = 0x4, fixed_abs, tag = 'smem constant byte address 0x4 - core index']
  #allocation1 [shape = 'u32[144,128]{1,0:T(1,128)}', space=vmem, size = 0x12000, scoped, tag = 'internal scratch']
  %s0 = inlined_call_operand.smem [shape: u32[32], index: -1, kind: input, shape index: {}]
  %s1 = sld [smem:[%s0]]
  %s2 = scalar_lea.smem %s0, 1
  %s3 = sld [smem:[%s2]]
  %s4 = scalar_lea.smem %s0, 2
  %s5 = sld [smem:[%s4]]
  %s6 = scalar_lea.smem %s0, 3
  %s7 = sld [smem:[%s6]]
  %s8 = scalar_lea.smem %s0, 4
  %s9 = sld [smem:[%s8]]
  %s10 = scalar_lea.smem %s0, 5
  %s11 = sld [smem:[%s10]]
  %s12 = scalar_lea.smem %s0, 6
  %s13 = sld [smem:[%s12]]
  %s14 = scalar_lea.smem %s0, 7
  %s15 = sld [smem:[%s14]]
  %s16 = scalar_lea.smem %s0, 8
  %s17 = sld [smem:[%s16]]
  %s18 = scalar_lea.smem %s0, 9
  %s19 = sld [smem:[%s18]]
  %s20 = scalar_lea.smem %s0, 10
  %s21 = sld [smem:[%s20]]
  %s22 = scalar_lea.smem %s0, 11
  %s23 = sld [smem:[%s22]]
  %s24 = scalar_lea.smem %s0, 12
  %s25 = sld [smem:[%s24]]
  %s26 = scalar_lea.smem %s0, 13
  %s27 = sld [smem:[%s26]]
  %s28 = scalar_lea.smem %s0, 14
  %s29 = sld [smem:[%s28]]
  %s30 = scalar_lea.smem %s0, 15
  %s31 = sld [smem:[%s30]]
  %s32 = scalar_lea.smem %s0, 16
  %s33 = sld [smem:[%s32]]
  %s34 = scalar_lea.smem %s0, 17
  %s35 = sld [smem:[%s34]]
  %s36 = scalar_lea.smem %s0, 18
  %s37 = sld [smem:[%s36]]
  %s38 = scalar_lea.smem %s0, 19
  %s39 = sld [smem:[%s38]]
  %s40 = scalar_lea.smem %s0, 20
  %s41 = sld [smem:[%s40]]
  %s42 = scalar_lea.smem %s0, 21
  %s43 = sld [smem:[%s42]]
  %s44 = scalar_lea.smem %s0, 22
  %s45 = sld [smem:[%s44]]
  %s46 = scalar_lea.smem %s0, 23
  %s47 = sld [smem:[%s46]]
  %s48 = scalar_lea.smem %s0, 24
  %s49 = sld [smem:[%s48]]
  %s50 = scalar_lea.smem %s0, 25
  %s51 = sld [smem:[%s50]]
  %s52 = scalar_lea.smem %s0, 26
  %s53 = sld [smem:[%s52]]
  %s54 = scalar_lea.smem %s0, 27
  %s55 = sld [smem:[%s54]]
  %s56 = scalar_lea.smem %s0, 28
  %s57 = sld [smem:[%s56]]
  %s58 = scalar_lea.smem %s0, 29
  %s59 = sld [smem:[%s58]]
  %s60 = scalar_lea.smem %s0, 30
  %s61 = sld [smem:[%s60]]
  %s62 = scalar_lea.smem %s0, 31
  %s63 = sld [smem:[%s62]]
  %s64 = sld [smem:[#allocation0]]
  $region134: #{tpu_custom_call.1} parent=0
    _
  %s66 = ssub.s32 1, %s64
  %s67 = scalar_select 0, %s66, %s64
  $region1: #{tpu_custom_call.1} parent=0
    #allocation2 [shape = 'u8[2048]{0}', space=vmem, size = 0x800, scoped, tag = 'output window, operand 0, single buffered']
    #allocation3 [shape = 's32[1]{0}', space=sflag, size = 0x4, scoped, tag = 'scoped memory for tpu_custom_call.1']
    %68 = vsyncpa [#allocation3], 0
    // Predicated region
    $region2: #{tpu_custom_call.1} parent=1 // pred_check
      _
    $region3: #{tpu_custom_call.1} parent=1 // pred_check_branch
      %70 = sbr.rel (0) target = $region5
    $region4: #{tpu_custom_call.1} parent=1 // pred_region
      _
    $region5: #{tpu_custom_call.1} parent=1 // pred_fallthru
      _
    // Predicated region
    $region6: #{tpu_custom_call.1} parent=1 // pred_check
      _
    $region7: #{tpu_custom_call.1} parent=1 // pred_check_branch
      %72 = sbr.rel (0) target = $region9
    $region8: #{tpu_custom_call.1} parent=1 // pred_region
      _
    $region9: #{tpu_custom_call.1} parent=1 // pred_fallthru
      _
    // Predicated region
    $region10: #{tpu_custom_call.1} parent=1 // pred_check
      _
    $region11: #{tpu_custom_call.1} parent=1 // pred_check_branch
      %74 = sbr.rel (0) target = $region13
    $region12: #{tpu_custom_call.1} parent=1 // pred_region
      _
    $region13: #{tpu_custom_call.1} parent=1 // pred_fallthru
      _
    // Predicated region
    $region14: #{tpu_custom_call.1} parent=1 // pred_check
      _
    $region15: #{tpu_custom_call.1} parent=1 // pred_check_branch
      %76 = sbr.rel (0) target = $region17
    $region16: #{tpu_custom_call.1} parent=1 // pred_region
      _
    $region17: #{tpu_custom_call.1} parent=1 // pred_fallthru
      _
    // Predicated region
    $region18: #{tpu_custom_call.1} parent=1 // pred_check
      _
    $region19: #{tpu_custom_call.1} parent=1 // pred_check_branch
      %78 = sbr.rel (0) target = $region21
    $region20: #{tpu_custom_call.1} parent=1 // pred_region
      _
    $region21: #{tpu_custom_call.1} parent=1 // pred_fallthru
      _
    // Predicated region
    $region22: #{tpu_custom_call.1} parent=1 // pred_check
      _
    $region23: #{tpu_custom_call.1} parent=1 // pred_check_branch
      %80 = sbr.rel (0) target = $region25
    $region24: #{tpu_custom_call.1} parent=1 // pred_region
      _
    $region25: #{tpu_custom_call.1} parent=1 // pred_fallthru
      _
    // Predicated region
    $region26: #{tpu_custom_call.1} parent=1 // pred_check
      _
    $region27: #{tpu_custom_call.1} parent=1 // pred_check_branch
      %82 = sbr.rel (0) target = $region29
    $region28: #{tpu_custom_call.1} parent=1 // pred_region
      _
    $region29: #{tpu_custom_call.1} parent=1 // pred_fallthru
      _
    // Predicated region
    $region30: #{tpu_custom_call.1} parent=1 // pred_check
      _
    $region31: #{tpu_custom_call.1} parent=1 // pred_check_branch
      %84 = sbr.rel (0) target = $region33
    $region32: #{tpu_custom_call.1} parent=1 // pred_region
      _
    $region33: #{tpu_custom_call.1} parent=1 // pred_fallthru
      _
    // Predicated region
    $region34: #{tpu_custom_call.1} parent=1 // pred_check
      _
    $region35: #{tpu_custom_call.1} parent=1 // pred_check_branch
      %86 = sbr.rel (0) target = $region37
    $region36: #{tpu_custom_call.1} parent=1 // pred_region
      _
    $region37: #{tpu_custom_call.1} parent=1 // pred_fallthru
      _
    // Predicated region
    $region38: #{tpu_custom_call.1} parent=1 // pred_check
      _
    $region39: #{tpu_custom_call.1} parent=1 // pred_check_branch
      %88 = sbr.rel (0) target = $region41
    $region40: #{tpu_custom_call.1} parent=1 // pred_region
      _
    $region41: #{tpu_custom_call.1} parent=1 // pred_fallthru
      _
    // Predicated region
    $region42: #{tpu_custom_call.1} parent=1 // pred_check
      _
    $region43: #{tpu_custom_call.1} parent=1 // pred_check_branch
      %90 = sbr.rel (0) target = $region45
    $region44: #{tpu_custom_call.1} parent=1 // pred_region
      _
    $region45: #{tpu_custom_call.1} parent=1 // pred_fallthru
      _
    // Predicated region
    $region46: #{tpu_custom_call.1} parent=1 // pred_check
      _
    $region47: #{tpu_custom_call.1} parent=1 // pred_check_branch
      %92 = sbr.rel (0) target = $region49
    $region48: #{tpu_custom_call.1} parent=1 // pred_region
      _
    $region49: #{tpu_custom_call.1} parent=1 // pred_fallthru
      _
    // Predicated region
    $region50: #{tpu_custom_call.1} parent=1 // pred_check
      _
    $region51: #{tpu_custom_call.1} parent=1 // pred_check_branch
      %94 = sbr.rel (0) target = $region53
    $region52: #{tpu_custom_call.1} parent=1 // pred_region
      _
    $region53: #{tpu_custom_call.1} parent=1 // pred_fallthru
      _
    // Predicated region
    $region54: #{tpu_custom_call.1} parent=1 // pred_check
      _
    $region55: #{tpu_custom_call.1} parent=1 // pred_check_branch
      %96 = sbr.rel (0) target = $region57
    $region56: #{tpu_custom_call.1} parent=1 // pred_region
      _
    $region57: #{tpu_custom_call.1} parent=1 // pred_fallthru
      _
    // Predicated region
    $region58: #{tpu_custom_call.1} parent=1 // pred_check
      _
    $region59: #{tpu_custom_call.1} parent=1 // pred_check_branch
      %98 = sbr.rel (0) target = $region61
    $region60: #{tpu_custom_call.1} parent=1 // pred_region
      _
    $region61: #{tpu_custom_call.1} parent=1 // pred_fallthru
      _
    // Predicated region
    $region62: #{tpu_custom_call.1} parent=1 // pred_check
      _
    $region63: #{tpu_custom_call.1} parent=1 // pred_check_branch
      %100 = sbr.rel (0) target = $region65
    $region64: #{tpu_custom_call.1} parent=1 // pred_region
      _
    $region65: #{tpu_custom_call.1} parent=1 // pred_fallthru
      _
    // Predicated region
    $region66: #{tpu_custom_call.1} parent=1 // pred_check
      _
    $region67: #{tpu_custom_call.1} parent=1 // pred_check_branch
      %102 = sbr.rel (0) target = $region69
    $region68: #{tpu_custom_call.1} parent=1 // pred_region
      _
    $region69: #{tpu_custom_call.1} parent=1 // pred_fallthru
      _
    // Predicated region
    $region70: #{tpu_custom_call.1} parent=1 // pred_check
      _
    $region71: #{tpu_custom_call.1} parent=1 // pred_check_branch
      %104 = sbr.rel (0) target = $region73
    $region72: #{tpu_custom_call.1} parent=1 // pred_region
      _
    $region73: #{tpu_custom_call.1} parent=1 // pred_fallthru
      _
    // Predicated region
    $region74: #{tpu_custom_call.1} parent=1 // pred_check
      _
    $region75: #{tpu_custom_call.1} parent=1 // pred_check_branch
      %106 = sbr.rel (0) target = $region77
    $region76: #{tpu_custom_call.1} parent=1 // pred_region
      _
    $region77: #{tpu_custom_call.1} parent=1 // pred_fallthru
      _
    // Predicated region
    $region78: #{tpu_custom_call.1} parent=1 // pred_check
      _
    $region79: #{tpu_custom_call.1} parent=1 // pred_check_branch
      %108 = sbr.rel (0) target = $region81
    $region80: #{tpu_custom_call.1} parent=1 // pred_region
      _
    $region81: #{tpu_custom_call.1} parent=1 // pred_fallthru
      _
    // Predicated region
    $region82: #{tpu_custom_call.1} parent=1 // pred_check
      _
    $region83: #{tpu_custom_call.1} parent=1 // pred_check_branch
      %110 = sbr.rel (0) target = $region85
    $region84: #{tpu_custom_call.1} parent=1 // pred_region
      _
    $region85: #{tpu_custom_call.1} parent=1 // pred_fallthru
      _
    // Predicated region
    $region86: #{tpu_custom_call.1} parent=1 // pred_check
      _
    $region87: #{tpu_custom_call.1} parent=1 // pred_check_branch
      %112 = sbr.rel (0) target = $region89
    $region88: #{tpu_custom_call.1} parent=1 // pred_region
      _
    $region89: #{tpu_custom_call.1} parent=1 // pred_fallthru
      _
    // Predicated region
    $region90: #{tpu_custom_call.1} parent=1 // pred_check
      _
    $region91: #{tpu_custom_call.1} parent=1 // pred_check_branch
      %114 = sbr.rel (0) target = $region93
    $region92: #{tpu_custom_call.1} parent=1 // pred_region
      _
    $region93: #{tpu_custom_call.1} parent=1 // pred_fallthru
      _
    // Predicated region
    $region94: #{tpu_custom_call.1} parent=1 // pred_check
      _
    $region95: #{tpu_custom_call.1} parent=1 // pred_check_branch
      %116 = sbr.rel (0) target = $region97
    $region96: #{tpu_custom_call.1} parent=1 // pred_region
      _
    $region97: #{tpu_custom_call.1} parent=1 // pred_fallthru
      _
    // Predicated region
    $region98: #{tpu_custom_call.1} parent=1 // pred_check
      _
    $region99: #{tpu_custom_call.1} parent=1 // pred_check_branch
      %118 = sbr.rel (0) target = $region101
    $region100: #{tpu_custom_call.1} parent=1 // pred_region
      _
    $region101: #{tpu_custom_call.1} parent=1 // pred_fallthru
      _
    // Predicated region
    $region102: #{tpu_custom_call.1} parent=1 // pred_check
      _
    $region103: #{tpu_custom_call.1} parent=1 // pred_check_branch
      %120 = sbr.rel (0) target = $region105
    $region104: #{tpu_custom_call.1} parent=1 // pred_region
      _
    $region105: #{tpu_custom_call.1} parent=1 // pred_fallthru
      _
    // Predicated region
    $region106: #{tpu_custom_call.1} parent=1 // pred_check
      _
    $region107: #{tpu_custom_call.1} parent=1 // pred_check_branch
      %122 = sbr.rel (0) target = $region109
    $region108: #{tpu_custom_call.1} parent=1 // pred_region
      _
    $region109: #{tpu_custom_call.1} parent=1 // pred_fallthru
      _
    // Predicated region
    $region110: #{tpu_custom_call.1} parent=1 // pred_check
      _
    $region111: #{tpu_custom_call.1} parent=1 // pred_check_branch
      %124 = sbr.rel (0) target = $region113
    $region112: #{tpu_custom_call.1} parent=1 // pred_region
      _
    $region113: #{tpu_custom_call.1} parent=1 // pred_fallthru
      _
    // Predicated region
    $region114: #{tpu_custom_call.1} parent=1 // pred_check
      _
    $region115: #{tpu_custom_call.1} parent=1 // pred_check_branch
      %126 = sbr.rel (0) target = $region117
    $region116: #{tpu_custom_call.1} parent=1 // pred_region
      _
    $region117: #{tpu_custom_call.1} parent=1 // pred_fallthru
      _
    // Predicated region
    $region118: #{tpu_custom_call.1} parent=1 // pred_check
      _
    $region119: #{tpu_custom_call.1} parent=1 // pred_check_branch
      %128 = sbr.rel (0) target = $region121
    $region120: #{tpu_custom_call.1} parent=1 // pred_region
      _
    $region121: #{tpu_custom_call.1} parent=1 // pred_fallthru
      _
    // Predicated region
    $region122: #{tpu_custom_call.1} parent=1 // pred_check
      _
    $region123: #{tpu_custom_call.1} parent=1 // pred_check_branch
      %130 = sbr.rel (0) target = $region125
    $region124: #{tpu_custom_call.1} parent=1 // pred_region
      _
    $region125: #{tpu_custom_call.1} parent=1 // pred_fallthru
      _
    %v132 = vld [vmem:[%s1] sm:$0xff]
    %v133 = vld [vmem:[%s1 + $0x8] sm:$0xff]
    %v134 = vld [vmem:[%s1 + $0x10] sm:$0xff]
    %v135 = vld [vmem:[%s1 + $0x18] sm:$0xff]
    %v136 = vld [vmem:[%s1 + $0x20] sm:$0xff]
    %v137 = vld [vmem:[%s1 + $0x28] sm:$0xff]
    %v138 = vld [vmem:[%s1 + $0x30] sm:$0xff]
    %v139 = vld [vmem:[%s1 + $0x38] sm:$0xff]
    %v140 = vld [vmem:[%s1 + $0x40] sm:$0xff]
    %v141 = vld [vmem:[%s1 + $0x48] sm:$0xff]
    %v142 = vld [vmem:[%s1 + $0x50] sm:$0xff]
    %v143 = vld [vmem:[%s1 + $0x58] sm:$0xff]
    %v144 = vld [vmem:[%s1 + $0x60] sm:$0xff]
    %v145 = vld [vmem:[%s1 + $0x68] sm:$0xff]
    %v146 = vld [vmem:[%s1 + $0x70] sm:$0xff]
    %v147 = vld [vmem:[%s1 + $0x78] sm:$0xff]
    %v148 = vld [vmem:[%s1 + $0x80] sm:$0xff]
    %v149 = vld [vmem:[%s1 + $0x88] sm:$0xff]
    %v150 = vld [vmem:[%s3] sm:$0xf]
    %v151 = vld [vmem:[%s3 + $0x4] sm:$0xf]
    %v152 = vld [vmem:[%s3 + $0x8] sm:$0xf]
    %v153 = vld [vmem:[%s3 + $0xc] sm:$0xf]
    %v154 = vld [vmem:[%s3 + $0x10] sm:$0xf]
    %v155 = vld [vmem:[%s3 + $0x14] sm:$0xf]
    %v156 = vld [vmem:[%s3 + $0x18] sm:$0xf]
    %v157 = vld [vmem:[%s3 + $0x1c] sm:$0xf]
    %v158 = vld [vmem:[%s3 + $0x20] sm:$0xf]
    %v159 = vld [vmem:[%s3 + $0x24] sm:$0xf]
    %v160 = vld [vmem:[%s3 + $0x28] sm:$0xf]
    %v161 = vld [vmem:[%s3 + $0x2c] sm:$0xf]
    %v162 = vld [vmem:[%s3 + $0x30] sm:$0xf]
    %v163 = vld [vmem:[%s3 + $0x34] sm:$0xf]
    %v164 = vld [vmem:[%s3 + $0x38] sm:$0xf]
    %v165 = vld [vmem:[%s3 + $0x3c] sm:$0xf]
    %v166 = vld [vmem:[%s3 + $0x40] sm:$0xf]
    %v167 = vld [vmem:[%s3 + $0x44] sm:$0xf]
    %v168 = vld [vmem:[%s3 + $0x48] sm:$0xf]
    %v169 = vld [vmem:[%s3 + $0x4c] sm:$0xf]
    %v170 = vld [vmem:[%s3 + $0x50] sm:$0xf]
    %v171 = vld [vmem:[%s3 + $0x54] sm:$0xf]
    %v172 = vld [vmem:[%s3 + $0x58] sm:$0xf]
    %v173 = vld [vmem:[%s3 + $0x5c] sm:$0xf]
    %v174 = vld [vmem:[%s3 + $0x60] sm:$0xf]
    %v175 = vld [vmem:[%s3 + $0x64] sm:$0xf]
    %v176 = vld [vmem:[%s3 + $0x68] sm:$0xf]
    %v177 = vld [vmem:[%s3 + $0x6c] sm:$0xf]
    %v178 = vld [vmem:[%s3 + $0x70] sm:$0xf]
    %v179 = vld [vmem:[%s3 + $0x74] sm:$0xf]
    %v180 = vld [vmem:[%s3 + $0x78] sm:$0xf]
    %v181 = vld [vmem:[%s3 + $0x7c] sm:$0xf]
    %v182 = vld [vmem:[%s3 + $0x80] sm:$0xf]
    %v183 = vld [vmem:[%s3 + $0x84] sm:$0xf]
    %v184 = vld [vmem:[%s3 + $0x88] sm:$0xf]
    %v185 = vld [vmem:[%s3 + $0x8c] sm:$0xf]
    %v186 = vld [vmem:[%s3 + $0x90] sm:$0xf]
    %v187 = vld [vmem:[%s3 + $0x94] sm:$0xf]
    %v188 = vld [vmem:[%s3 + $0x98] sm:$0xf]
    %v189 = vld [vmem:[%s3 + $0x9c] sm:$0xf]
    %v190 = vld [vmem:[%s3 + $0xa0] sm:$0xf]
    %v191 = vld [vmem:[%s3 + $0xa4] sm:$0xf]
    %v192 = vld [vmem:[%s3 + $0xa8] sm:$0xf]
    %v193 = vld [vmem:[%s3 + $0xac] sm:$0xf]
    %v194 = vld [vmem:[%s3 + $0xb0] sm:$0xf]
    %v195 = vld [vmem:[%s3 + $0xb4] sm:$0xf]
    %v196 = vld [vmem:[%s3 + $0xb8] sm:$0xf]
    %v197 = vld [vmem:[%s3 + $0xbc] sm:$0xf]
    %v198 = vld [vmem:[%s3 + $0xc0] sm:$0xf]
    %v199 = vld [vmem:[%s3 + $0xc4] sm:$0xf]
    %v200 = vld [vmem:[%s3 + $0xc8] sm:$0xf]
    %v201 = vld [vmem:[%s3 + $0xcc] sm:$0xf]
    %v202 = vld [vmem:[%s3 + $0xd0] sm:$0xf]
    %v203 = vld [vmem:[%s3 + $0xd4] sm:$0xf]
    %v204 = vld [vmem:[%s3 + $0xd8] sm:$0xf]
    %v205 = vld [vmem:[%s3 + $0xdc] sm:$0xf]
    %v206 = vld [vmem:[%s3 + $0xe0] sm:$0xf]
    %v207 = vld [vmem:[%s3 + $0xe4] sm:$0xf]
    %v208 = vld [vmem:[%s3 + $0xe8] sm:$0xf]
    %v209 = vld [vmem:[%s3 + $0xec] sm:$0xf]
    %v210 = vld [vmem:[%s3 + $0xf0] sm:$0xf]
    %v211 = vld [vmem:[%s3 + $0xf4] sm:$0xf]
    %v212 = vld [vmem:[%s3 + $0xf8] sm:$0xf]
    %v213 = vld [vmem:[%s3 + $0xfc] sm:$0xf]
    %v214 = vld [vmem:[%s3 + $0x100] sm:$0xf]
    %v215 = vld [vmem:[%s3 + $0x104] sm:$0xf]
    %v216 = vld [vmem:[%s3 + $0x108] sm:$0xf]
    %v217 = vld [vmem:[%s3 + $0x10c] sm:$0xf]
    %v218 = vld [vmem:[%s3 + $0x110] sm:$0xf]
    %v219 = vld [vmem:[%s3 + $0x114] sm:$0xf]
    %v220 = vld [vmem:[%s3 + $0x118] sm:$0xf]
    %v221 = vld [vmem:[%s3 + $0x11c] sm:$0xf]
    %v222 = vld [vmem:[%s3 + $0x120] sm:$0xf]
    %v223 = vld [vmem:[%s3 + $0x124] sm:$0xf]
    %v224 = vld [vmem:[%s3 + $0x128] sm:$0xf]
    %v225 = vld [vmem:[%s3 + $0x12c] sm:$0xf]
    %v226 = vld [vmem:[%s3 + $0x130] sm:$0xf]
    %v227 = vld [vmem:[%s3 + $0x134] sm:$0xf]
    %v228 = vld [vmem:[%s3 + $0x138] sm:$0xf]
    %v229 = vld [vmem:[%s3 + $0x13c] sm:$0xf]
    %v230 = vld [vmem:[%s3 + $0x140] sm:$0xf]
    %v231 = vld [vmem:[%s3 + $0x144] sm:$0xf]
    %v232 = vld [vmem:[%s3 + $0x148] sm:$0xf]
    %v233 = vld [vmem:[%s3 + $0x14c] sm:$0xf]
    %v234 = vld [vmem:[%s3 + $0x150] sm:$0xf]
    %v235 = vld [vmem:[%s3 + $0x154] sm:$0xf]
    %v236 = vld [vmem:[%s3 + $0x158] sm:$0xf]
    %v237 = vld [vmem:[%s3 + $0x15c] sm:$0xf]
    %v238 = vld [vmem:[%s3 + $0x160] sm:$0xf]
    %v239 = vld [vmem:[%s3 + $0x164] sm:$0xf]
    %v240 = vld [vmem:[%s3 + $0x168] sm:$0xf]
    %v241 = vld [vmem:[%s3 + $0x16c] sm:$0xf]
    %v242 = vld [vmem:[%s3 + $0x170] sm:$0xf]
    %v243 = vld [vmem:[%s3 + $0x174] sm:$0xf]
    %v244 = vld [vmem:[%s3 + $0x178] sm:$0xf]
    %v245 = vld [vmem:[%s3 + $0x17c] sm:$0xf]
    %v246 = vld [vmem:[%s3 + $0x180] sm:$0xf]
    %v247 = vld [vmem:[%s3 + $0x184] sm:$0xf]
    %v248 = vld [vmem:[%s3 + $0x188] sm:$0xf]
    %v249 = vld [vmem:[%s3 + $0x18c] sm:$0xf]
    %v250 = vld [vmem:[%s3 + $0x190] sm:$0xf]
    %v251 = vld [vmem:[%s3 + $0x194] sm:$0xf]
    %v252 = vld [vmem:[%s3 + $0x198] sm:$0xf]
    %v253 = vld [vmem:[%s3 + $0x19c] sm:$0xf]
    %v254 = vld [vmem:[%s3 + $0x1a0] sm:$0xf]
    %v255 = vld [vmem:[%s3 + $0x1a4] sm:$0xf]
    %v256 = vld [vmem:[%s3 + $0x1a8] sm:$0xf]
    %v257 = vld [vmem:[%s3 + $0x1ac] sm:$0xf]
    %v258 = vld [vmem:[%s3 + $0x1b0] sm:$0xf]
    %v259 = vld [vmem:[%s3 + $0x1b4] sm:$0xf]
    %v260 = vld [vmem:[%s3 + $0x1b8] sm:$0xf]
    %v261 = vld [vmem:[%s3 + $0x1bc] sm:$0xf]
    %v262 = vld [vmem:[%s3 + $0x1c0] sm:$0xf]
    %v263 = vld [vmem:[%s3 + $0x1c4] sm:$0xf]
    %v264 = vld [vmem:[%s3 + $0x1c8] sm:$0xf]
    %v265 = vld [vmem:[%s3 + $0x1cc] sm:$0xf]
    %v266 = vld [vmem:[%s3 + $0x1d0] sm:$0xf]
    %v267 = vld [vmem:[%s3 + $0x1d4] sm:$0xf]
    %v268 = vld [vmem:[%s3 + $0x1d8] sm:$0xf]
    %v269 = vld [vmem:[%s3 + $0x1dc] sm:$0xf]
    %v270 = vld [vmem:[%s3 + $0x1e0] sm:$0xf]
    %v271 = vld [vmem:[%s3 + $0x1e4] sm:$0xf]
    %v272 = vld [vmem:[%s3 + $0x1e8] sm:$0xf]
    %v273 = vld [vmem:[%s3 + $0x1ec] sm:$0xf]
    %v274 = vld [vmem:[%s3 + $0x1f0] sm:$0xf]
    %v275 = vld [vmem:[%s3 + $0x1f4] sm:$0xf]
    %v276 = vld [vmem:[%s3 + $0x1f8] sm:$0xf]
    %v277 = vld [vmem:[%s3 + $0x1fc] sm:$0xf]
    %v278 = vld [vmem:[%s3 + $0x200] sm:$0xf]
    %v279 = vld [vmem:[%s3 + $0x204] sm:$0xf]
    %v280 = vld [vmem:[%s3 + $0x208] sm:$0xf]
    %v281 = vld [vmem:[%s3 + $0x20c] sm:$0xf]
    %v282 = vld [vmem:[%s3 + $0x210] sm:$0xf]
    %v283 = vld [vmem:[%s3 + $0x214] sm:$0xf]
    %v284 = vld [vmem:[%s3 + $0x218] sm:$0xf]
    %v285 = vld [vmem:[%s3 + $0x21c] sm:$0xf]
    %v286 = vld [vmem:[%s3 + $0x220] sm:$0xf]
    %v287 = vld [vmem:[%s3 + $0x224] sm:$0xf]
    %v288 = vld [vmem:[%s3 + $0x228] sm:$0xf]
    %v289 = vld [vmem:[%s3 + $0x22c] sm:$0xf]
    %v290 = vld [vmem:[%s3 + $0x230] sm:$0xf]
    %v291 = vld [vmem:[%s3 + $0x234] sm:$0xf]
    %v292 = vld [vmem:[%s3 + $0x238] sm:$0xf]
    %v293 = vld [vmem:[%s3 + $0x23c] sm:$0xf]
    %v294 = vld [vmem:[%s3 + $0x240] sm:$0xf]
    %v295 = vld [vmem:[%s3 + $0x244] sm:$0xf]
    %v296 = vld [vmem:[%s3 + $0x248] sm:$0xf]
    %v297 = vld [vmem:[%s3 + $0x24c] sm:$0xf]
    %v298 = vld [vmem:[%s3 + $0x250] sm:$0xf]
    %v299 = vld [vmem:[%s3 + $0x254] sm:$0xf]
    %v300 = vld [vmem:[%s3 + $0x258] sm:$0xf]
    %v301 = vld [vmem:[%s3 + $0x25c] sm:$0xf]
    %v302 = vld [vmem:[%s3 + $0x260] sm:$0xf]
    %v303 = vld [vmem:[%s3 + $0x264] sm:$0xf]
    %v304 = vld [vmem:[%s3 + $0x268] sm:$0xf]
    %v305 = vld [vmem:[%s3 + $0x26c] sm:$0xf]
    %v306 = vld [vmem:[%s3 + $0x270] sm:$0xf]
    %v307 = vld [vmem:[%s3 + $0x274] sm:$0xf]
    %v308 = vld [vmem:[%s3 + $0x278] sm:$0xf]
    %v309 = vld [vmem:[%s3 + $0x27c] sm:$0xf]
    %v310 = vld [vmem:[%s3 + $0x280] sm:$0xf]
    %v311 = vld [vmem:[%s3 + $0x284] sm:$0xf]
    %v312 = vld [vmem:[%s3 + $0x288] sm:$0xf]
    %v313 = vld [vmem:[%s3 + $0x28c] sm:$0xf]
    %v314 = vld [vmem:[%s3 + $0x290] sm:$0xf]
    %v315 = vld [vmem:[%s3 + $0x294] sm:$0xf]
    %v316 = vld [vmem:[%s3 + $0x298] sm:$0xf]
    %v317 = vld [vmem:[%s3 + $0x29c] sm:$0xf]
    %v318 = vld [vmem:[%s3 + $0x2a0] sm:$0xf]
    %v319 = vld [vmem:[%s3 + $0x2a4] sm:$0xf]
    %v320 = vld [vmem:[%s3 + $0x2a8] sm:$0xf]
    %v321 = vld [vmem:[%s3 + $0x2ac] sm:$0xf]
    %v322 = vld [vmem:[%s3 + $0x2b0] sm:$0xf]
    %v323 = vld [vmem:[%s3 + $0x2b4] sm:$0xf]
    %v324 = vld [vmem:[%s3 + $0x2b8] sm:$0xf]
    %v325 = vld [vmem:[%s3 + $0x2bc] sm:$0xf]
    %v326 = vld [vmem:[%s3 + $0x2c0] sm:$0xf]
    %v327 = vld [vmem:[%s3 + $0x2c4] sm:$0xf]
    %v328 = vld [vmem:[%s3 + $0x2c8] sm:$0xf]
    %v329 = vld [vmem:[%s3 + $0x2cc] sm:$0xf]
    %v330 = vld [vmem:[%s3 + $0x2d0] sm:$0xf]
    %v331 = vld [vmem:[%s3 + $0x2d4] sm:$0xf]
    %v332 = vld [vmem:[%s3 + $0x2d8] sm:$0xf]
    %v333 = vld [vmem:[%s3 + $0x2dc] sm:$0xf]
    %v334 = vld [vmem:[%s3 + $0x2e0] sm:$0xf]
    %v335 = vld [vmem:[%s3 + $0x2e4] sm:$0xf]
    %v336 = vld [vmem:[%s3 + $0x2e8] sm:$0xf]
    %v337 = vld [vmem:[%s3 + $0x2ec] sm:$0xf]
    %v338 = vld [vmem:[%s3 + $0x2f0] sm:$0xf]
    %v339 = vld [vmem:[%s3 + $0x2f4] sm:$0xf]
    %v340 = vld [vmem:[%s3 + $0x2f8] sm:$0xf]
    %v341 = vld [vmem:[%s3 + $0x2fc] sm:$0xf]
    %v342 = vld [vmem:[%s5] sm:$0x1]
    %v344 = vlaneseq
    %v345 = vshrl.u32 %v344, 7
    %v346 = vsub.s32 0, %v345
    %v347 = vrot.slane %v342, %v346
    %v367 = vunpack.c.l.b16 %v132
    %v368 = vunpack.c.h.b16 %v132
    %v369 = vunpack.c.l.b16 %v133
    %v370 = vunpack.c.h.b16 %v133
    %v371 = vunpack.c.l.b16 %v134
    %v372 = vunpack.c.h.b16 %v134
    %v373 = vunpack.c.l.b16 %v135
    %v374 = vunpack.c.h.b16 %v135
    %v375 = vunpack.c.l.b16 %v136
    %v376 = vunpack.c.h.b16 %v136
    %v377 = vunpack.c.l.b16 %v137
    %v378 = vunpack.c.h.b16 %v137
    %v379 = vunpack.c.l.b16 %v138
    %v380 = vunpack.c.h.b16 %v138
    %v381 = vunpack.c.l.b16 %v139
    %v382 = vunpack.c.h.b16 %v139
    %v383 = vunpack.c.l.b16 %v140
    %v384 = vunpack.c.h.b16 %v140
    %v385 = vunpack.c.l.b16 %v141
    %v386 = vunpack.c.h.b16 %v141
    %v387 = vunpack.c.l.b16 %v142
    %v388 = vunpack.c.h.b16 %v142
    %v389 = vunpack.c.l.b16 %v143
    %v390 = vunpack.c.h.b16 %v143
    %v391 = vunpack.c.l.b16 %v144
    %v392 = vunpack.c.h.b16 %v144
    %v393 = vunpack.c.l.b16 %v145
    %v394 = vunpack.c.h.b16 %v145
    %v395 = vunpack.c.l.b16 %v146
    %v396 = vunpack.c.h.b16 %v146
    %v397 = vunpack.c.l.b16 %v147
    %v398 = vunpack.c.h.b16 %v147
    %v399 = vunpack.c.l.b16 %v148
    %v400 = vunpack.c.h.b16 %v148
    %v401 = vunpack.c.l.b16 %v149
    %v402 = vunpack.c.h.b16 %v149
    %v403 = vpack.c.b16 %v379, %v367
    %v404 = vpack.c.b16 %v380, %v368
    %v405 = vpack.c.b16 %v381, %v369
    %v406 = vpack.c.b16 %v382, %v370
    %v407 = vpack.c.b16 %v383, %v371
    %v408 = vpack.c.b16 %v384, %v372
    %v409 = vpack.c.b16 %v385, %v373
    %v410 = vpack.c.b16 %v386, %v374
    %v411 = vpack.c.b16 %v387, %v375
    %v412 = vpack.c.b16 %v388, %v376
    %v413 = vpack.c.b16 %v389, %v377
    %v414 = vpack.c.b16 %v390, %v378
    %v415 = vpack.c.b16 %v391, %v391
    %v416 = vpack.c.b16 %v392, %v392
    %v417 = vpack.c.b16 %v393, %v393
    %v418 = vpack.c.b16 %v394, %v394
    %v419 = vpack.c.b16 %v395, %v395
    %v420 = vpack.c.b16 %v396, %v396
    %v421 = vpack.c.b16 %v397, %v397
    %v422 = vpack.c.b16 %v398, %v398
    %v423 = vpack.c.b16 %v399, %v399
    %v424 = vpack.c.b16 %v400, %v400
    %v425 = vpack.c.b16 %v401, %v401
    %v426 = vpack.c.b16 %v402, %v402
    %v643 = vunpack.c.l.b16 %v150
    %v644 = vunpack.c.l.b16 %v151
    %v645 = vunpack.c.l.b16 %v152
    %v646 = vunpack.c.l.b16 %v153
    %v647 = vunpack.c.l.b16 %v154
    %v648 = vunpack.c.l.b16 %v155
    %v649 = vunpack.c.l.b16 %v156
    %v650 = vunpack.c.l.b16 %v157
    %v651 = vunpack.c.l.b16 %v158
    %v652 = vunpack.c.l.b16 %v159
    %v653 = vunpack.c.l.b16 %v160
    %v654 = vunpack.c.l.b16 %v161
    %v655 = vunpack.c.l.b16 %v162
    %v656 = vunpack.c.l.b16 %v163
    %v657 = vunpack.c.l.b16 %v164
    %v658 = vunpack.c.l.b16 %v165
    %v659 = vunpack.c.l.b16 %v166
    %v660 = vunpack.c.l.b16 %v167
    %v661 = vunpack.c.l.b16 %v168
    %v662 = vunpack.c.l.b16 %v169
    %v663 = vunpack.c.l.b16 %v170
    %v664 = vunpack.c.l.b16 %v171
    %v665 = vunpack.c.l.b16 %v172
    %v666 = vunpack.c.l.b16 %v173
    %v667 = vunpack.c.l.b16 %v174
    %v668 = vunpack.c.l.b16 %v175
    %v669 = vunpack.c.l.b16 %v176
    %v670 = vunpack.c.l.b16 %v177
    %v671 = vunpack.c.l.b16 %v178
    %v672 = vunpack.c.l.b16 %v179
    %v673 = vunpack.c.l.b16 %v180
    %v674 = vunpack.c.l.b16 %v181
    %v675 = vunpack.c.l.b16 %v182
    %v676 = vunpack.c.l.b16 %v183
    %v677 = vunpack.c.l.b16 %v184
    %v678 = vunpack.c.l.b16 %v185
    %v679 = vunpack.c.l.b16 %v186
    %v680 = vunpack.c.l.b16 %v187
    %v681 = vunpack.c.l.b16 %v188
    %v682 = vunpack.c.l.b16 %v189
    %v683 = vunpack.c.l.b16 %v190
    %v684 = vunpack.c.l.b16 %v191
    %v685 = vunpack.c.l.b16 %v192
    %v686 = vunpack.c.l.b16 %v193
    %v687 = vunpack.c.l.b16 %v194
    %v688 = vunpack.c.l.b16 %v195
    %v689 = vunpack.c.l.b16 %v196
    %v690 = vunpack.c.l.b16 %v197
    %v691 = vunpack.c.l.b16 %v198
    %v692 = vunpack.c.l.b16 %v199
    %v693 = vunpack.c.l.b16 %v200
    %v694 = vunpack.c.l.b16 %v201
    %v695 = vunpack.c.l.b16 %v202
    %v696 = vunpack.c.l.b16 %v203
    %v697 = vunpack.c.l.b16 %v204
    %v698 = vunpack.c.l.b16 %v205
    %v699 = vunpack.c.l.b16 %v206
    %v700 = vunpack.c.l.b16 %v207
    %v701 = vunpack.c.l.b16 %v208
    %v702 = vunpack.c.l.b16 %v209
    %v703 = vunpack.c.l.b16 %v210
    %v704 = vunpack.c.l.b16 %v211
    %v705 = vunpack.c.l.b16 %v212
    %v706 = vunpack.c.l.b16 %v213
    %v707 = vunpack.c.l.b16 %v214
    %v708 = vunpack.c.l.b16 %v215
    %v709 = vunpack.c.l.b16 %v216
    %v710 = vunpack.c.l.b16 %v217
    %v711 = vunpack.c.l.b16 %v218
    %v712 = vunpack.c.l.b16 %v219
    %v713 = vunpack.c.l.b16 %v220
    %v714 = vunpack.c.l.b16 %v221
    %v715 = vunpack.c.l.b16 %v222
    %v716 = vunpack.c.l.b16 %v223
    %v717 = vunpack.c.l.b16 %v224
    %v718 = vunpack.c.l.b16 %v225
    %v719 = vunpack.c.l.b16 %v226
    %v720 = vunpack.c.l.b16 %v227
    %v721 = vunpack.c.l.b16 %v228
    %v722 = vunpack.c.l.b16 %v229
    %v723 = vunpack.c.l.b16 %v230
    %v724 = vunpack.c.l.b16 %v231
    %v725 = vunpack.c.l.b16 %v232
    %v726 = vunpack.c.l.b16 %v233
    %v727 = vunpack.c.l.b16 %v234
    %v728 = vunpack.c.l.b16 %v235
    %v729 = vunpack.c.l.b16 %v236
    %v730 = vunpack.c.l.b16 %v237
    %v731 = vunpack.c.l.b16 %v238
    %v732 = vunpack.c.l.b16 %v239
    %v733 = vunpack.c.l.b16 %v240
    %v734 = vunpack.c.l.b16 %v241
    %v735 = vunpack.c.l.b16 %v242
    %v736 = vunpack.c.l.b16 %v243
    %v737 = vunpack.c.l.b16 %v244
    %v738 = vunpack.c.l.b16 %v245
    %v739 = vunpack.c.l.b16 %v246
    %v740 = vunpack.c.l.b16 %v247
    %v741 = vunpack.c.l.b16 %v248
    %v742 = vunpack.c.l.b16 %v249
    %v743 = vunpack.c.l.b16 %v250
    %v744 = vunpack.c.l.b16 %v251
    %v745 = vunpack.c.l.b16 %v252
    %v746 = vunpack.c.l.b16 %v253
    %v747 = vunpack.c.l.b16 %v254
    %v748 = vunpack.c.l.b16 %v255
    %v749 = vunpack.c.l.b16 %v256
    %v750 = vunpack.c.l.b16 %v257
    %v751 = vunpack.c.l.b16 %v258
    %v752 = vunpack.c.l.b16 %v259
    %v753 = vunpack.c.l.b16 %v260
    %v754 = vunpack.c.l.b16 %v261
    %v755 = vunpack.c.l.b16 %v262
    %v756 = vunpack.c.l.b16 %v263
    %v757 = vunpack.c.l.b16 %v264
    %v758 = vunpack.c.l.b16 %v265
    %v759 = vunpack.c.l.b16 %v266
    %v760 = vunpack.c.l.b16 %v267
    %v761 = vunpack.c.l.b16 %v268
    %v762 = vunpack.c.l.b16 %v269
    %v763 = vunpack.c.l.b16 %v270
    %v764 = vunpack.c.l.b16 %v271
    %v765 = vunpack.c.l.b16 %v272
    %v766 = vunpack.c.l.b16 %v273
    %v767 = vunpack.c.l.b16 %v274
    %v768 = vunpack.c.l.b16 %v275
    %v769 = vunpack.c.l.b16 %v276
    %v770 = vunpack.c.l.b16 %v277
    %v771 = vunpack.c.l.b16 %v278
    %v772 = vunpack.c.l.b16 %v279
    %v773 = vunpack.c.l.b16 %v280
    %v774 = vunpack.c.l.b16 %v281
    %v775 = vunpack.c.l.b16 %v282
    %v776 = vunpack.c.l.b16 %v283
    %v777 = vunpack.c.l.b16 %v284
    %v778 = vunpack.c.l.b16 %v285
    %v779 = vunpack.c.l.b16 %v286
    %v780 = vunpack.c.l.b16 %v287
    %v781 = vunpack.c.l.b16 %v288
    %v782 = vunpack.c.l.b16 %v289
    %v783 = vunpack.c.l.b16 %v290
    %v784 = vunpack.c.l.b16 %v291
    %v785 = vunpack.c.l.b16 %v292
    %v786 = vunpack.c.l.b16 %v293
    %v787 = vunpack.c.l.b16 %v294
    %v788 = vunpack.c.l.b16 %v295
    %v789 = vunpack.c.l.b16 %v296
    %v790 = vunpack.c.l.b16 %v297
    %v791 = vunpack.c.l.b16 %v298
    %v792 = vunpack.c.l.b16 %v299
    %v793 = vunpack.c.l.b16 %v300
    %v794 = vunpack.c.l.b16 %v301
    %v795 = vunpack.c.l.b16 %v302
    %v796 = vunpack.c.l.b16 %v303
    %v797 = vunpack.c.l.b16 %v304
    %v798 = vunpack.c.l.b16 %v305
    %v799 = vunpack.c.l.b16 %v306
    %v800 = vunpack.c.l.b16 %v307
    %v801 = vunpack.c.l.b16 %v308
    %v802 = vunpack.c.l.b16 %v309
    %v803 = vunpack.c.l.b16 %v310
    %v804 = vunpack.c.l.b16 %v311
    %v805 = vunpack.c.l.b16 %v312
    %v806 = vunpack.c.l.b16 %v313
    %v807 = vunpack.c.l.b16 %v314
    %v808 = vunpack.c.l.b16 %v315
    %v809 = vunpack.c.l.b16 %v316
    %v810 = vunpack.c.l.b16 %v317
    %v811 = vunpack.c.l.b16 %v318
    %v812 = vunpack.c.l.b16 %v319
    %v813 = vunpack.c.l.b16 %v320
    %v814 = vunpack.c.l.b16 %v321
    %v815 = vunpack.c.l.b16 %v322
    %v816 = vunpack.c.l.b16 %v323
    %v817 = vunpack.c.l.b16 %v324
    %v818 = vunpack.c.l.b16 %v325
    %v819 = vunpack.c.l.b16 %v326
    %v820 = vunpack.c.l.b16 %v327
    %v821 = vunpack.c.l.b16 %v328
    %v822 = vunpack.c.l.b16 %v329
    %v823 = vunpack.c.l.b16 %v330
    %v824 = vunpack.c.l.b16 %v331
    %v825 = vunpack.c.l.b16 %v332
    %v826 = vunpack.c.l.b16 %v333
    %v827 = vunpack.c.l.b16 %v334
    %v828 = vunpack.c.l.b16 %v335
    %v829 = vunpack.c.l.b16 %v336
    %v830 = vunpack.c.l.b16 %v337
    %v831 = vunpack.c.l.b16 %v338
    %v832 = vunpack.c.l.b16 %v339
    %v833 = vunpack.c.l.b16 %v340
    %v834 = vunpack.c.l.b16 %v341
    %v835 = vpack.c.b16 %v644, %v643
    %v836 = vpack.c.b16 %v646, %v645
    %v837 = vpack.c.b16 %v648, %v647
    %v838 = vpack.c.b16 %v650, %v649
    %v839 = vpack.c.b16 %v652, %v651
    %v840 = vpack.c.b16 %v654, %v653
    %v841 = vpack.c.b16 %v656, %v655
    %v842 = vpack.c.b16 %v658, %v657
    %v843 = vpack.c.b16 %v660, %v659
    %v844 = vpack.c.b16 %v662, %v661
    %v845 = vpack.c.b16 %v664, %v663
    %v846 = vpack.c.b16 %v666, %v665
    %v847 = vpack.c.b16 %v668, %v667
    %v848 = vpack.c.b16 %v670, %v669
    %v849 = vpack.c.b16 %v672, %v671
    %v850 = vpack.c.b16 %v674, %v673
    %v851 = vpack.c.b16 %v676, %v675
    %v852 = vpack.c.b16 %v678, %v677
    %v853 = vpack.c.b16 %v680, %v679
    %v854 = vpack.c.b16 %v682, %v681
    %v855 = vpack.c.b16 %v684, %v683
    %v856 = vpack.c.b16 %v686, %v685
    %v857 = vpack.c.b16 %v688, %v687
    %v858 = vpack.c.b16 %v690, %v689
    %v859 = vpack.c.b16 %v692, %v691
    %v860 = vpack.c.b16 %v694, %v693
    %v861 = vpack.c.b16 %v696, %v695
    %v862 = vpack.c.b16 %v698, %v697
    %v863 = vpack.c.b16 %v700, %v699
    %v864 = vpack.c.b16 %v702, %v701
    %v865 = vpack.c.b16 %v704, %v703
    %v866 = vpack.c.b16 %v706, %v705
    %v867 = vpack.c.b16 %v708, %v707
    %v868 = vpack.c.b16 %v710, %v709
    %v869 = vpack.c.b16 %v712, %v711
    %v870 = vpack.c.b16 %v714, %v713
    %v871 = vpack.c.b16 %v716, %v715
    %v872 = vpack.c.b16 %v718, %v717
    %v873 = vpack.c.b16 %v720, %v719
    %v874 = vpack.c.b16 %v722, %v721
    %v875 = vpack.c.b16 %v724, %v723
    %v876 = vpack.c.b16 %v726, %v725
    %v877 = vpack.c.b16 %v728, %v727
    %v878 = vpack.c.b16 %v730, %v729
    %v879 = vpack.c.b16 %v732, %v731
    %v880 = vpack.c.b16 %v734, %v733
    %v881 = vpack.c.b16 %v736, %v735
    %v882 = vpack.c.b16 %v738, %v737
    %v883 = vpack.c.b16 %v740, %v739
    %v884 = vpack.c.b16 %v742, %v741
    %v885 = vpack.c.b16 %v744, %v743
    %v886 = vpack.c.b16 %v746, %v745
    %v887 = vpack.c.b16 %v748, %v747
    %v888 = vpack.c.b16 %v750, %v749
    %v889 = vpack.c.b16 %v752, %v751
    %v890 = vpack.c.b16 %v754, %v753
    %v891 = vpack.c.b16 %v756, %v755
    %v892 = vpack.c.b16 %v758, %v757
    %v893 = vpack.c.b16 %v760, %v759
    %v894 = vpack.c.b16 %v762, %v761
    %v895 = vpack.c.b16 %v764, %v763
    %v896 = vpack.c.b16 %v766, %v765
    %v897 = vpack.c.b16 %v768, %v767
    %v898 = vpack.c.b16 %v770, %v769
    %v899 = vpack.c.b16 %v772, %v771
    %v900 = vpack.c.b16 %v774, %v773
    %v901 = vpack.c.b16 %v776, %v775
    %v902 = vpack.c.b16 %v778, %v777
    %v903 = vpack.c.b16 %v780, %v779
    %v904 = vpack.c.b16 %v782, %v781
    %v905 = vpack.c.b16 %v784, %v783
    %v906 = vpack.c.b16 %v786, %v785
    %v907 = vpack.c.b16 %v788, %v787
    %v908 = vpack.c.b16 %v790, %v789
    %v909 = vpack.c.b16 %v792, %v791
    %v910 = vpack.c.b16 %v794, %v793
    %v911 = vpack.c.b16 %v796, %v795
    %v912 = vpack.c.b16 %v798, %v797
    %v913 = vpack.c.b16 %v800, %v799
    %v914 = vpack.c.b16 %v802, %v801
    %v915 = vpack.c.b16 %v804, %v803
    %v916 = vpack.c.b16 %v806, %v805
    %v917 = vpack.c.b16 %v808, %v807
    %v918 = vpack.c.b16 %v810, %v809
    %v919 = vpack.c.b16 %v812, %v811
    %v920 = vpack.c.b16 %v814, %v813
    %v921 = vpack.c.b16 %v816, %v815
    %v922 = vpack.c.b16 %v818, %v817
    %v923 = vpack.c.b16 %v820, %v819
    %v924 = vpack.c.b16 %v822, %v821
    %v925 = vpack.c.b16 %v824, %v823
    %v926 = vpack.c.b16 %v826, %v825
    %v927 = vpack.c.b16 %v828, %v827
    %v928 = vpack.c.b16 %v830, %v829
    %v929 = vpack.c.b16 %v832, %v831
    %v930 = vpack.c.b16 %v834, %v833
    %1027 = vmatprep.subr.bf16.mxu0 0
    %1028 = vmatpush1.bf16.msra.mxu0 %v842
    %1029 = vmatprep.subr.bf16.mxu0 0
    %1030 = vmatpush1.bf16.msra.mxu0 %v841
    %1031 = vmatprep.subr.bf16.mxu0 0
    %1032 = vmatpush1.bf16.msra.mxu0 %v840
    %1033 = vmatprep.subr.bf16.mxu0 0
    %1034 = vmatpush1.bf16.msra.mxu0 %v839
    %1035 = vmatprep.subr.bf16.mxu0 0
    %1036 = vmatpush1.bf16.msra.mxu0 %v838
    %1037 = vmatprep.subr.bf16.mxu0 0
    %1038 = vmatpush1.bf16.msra.mxu0 %v837
    %1039 = vmatprep.subr.bf16.mxu0 0
    %1040 = vmatpush1.bf16.msra.mxu0 %v836
    %1041 = vmatprep.subr.bf16.mxu0 0
    %1042 = vmatpush1.bf16.msra.mxu0 %v835
    %1043 = vmatprep.subr.bf16.mxu0 0
    %1044 = vmatpush2.bf16.msra.mxu0 %v850
    %1045 = vmatprep.subr.bf16.mxu0 0
    %1046 = vmatpush2.bf16.msra.mxu0 %v849
    %1047 = vmatprep.subr.bf16.mxu0 0
    %1048 = vmatpush2.bf16.msra.mxu0 %v848
    %1049 = vmatprep.subr.bf16.mxu0 0
    %1050 = vmatpush2.bf16.msra.mxu0 %v847
    %1051 = vmatprep.subr.bf16.mxu0 0
    %1052 = vmatpush2.bf16.msra.mxu0 %v846
    %1053 = vmatprep.subr.bf16.mxu0 0
    %1054 = vmatpush2.bf16.msra.mxu0 %v845
    %1055 = vmatprep.subr.bf16.mxu0 0
    %1056 = vmatpush2.bf16.msra.mxu0 %v844
    %1057 = vmatprep.subr.bf16.mxu0 0
    %1058 = vmatpush2.bf16.msra.mxu0 %v843
    %1059 = vmatprep.mubr.bf16.mxu0 %v404
    %1060 = vmatmul.mubr.bf16.gmra.mxu0 %v403
    %v1061 = vpop.f32.mrf.mxu0
    %v1062 = vadd.f32 %v347, %v1061
    %v1063 = vpop.f32.mrf.mxu0
    %v1064 = vpop.f32.mrf.mxu0
    %v1065 = vadd.f32 %v347, %v1064
    %v1066 = vpop.f32.mrf.mxu0
    %1067 = vmatprep.mubr.bf16.mxu0 %v416
    %1068 = vmatmul.mubr.bf16.gmra.mxu0 %v415
    %v1069 = vpop.f32.mrf.mxu0
    %v1070 = vadd.f32 %v347, %v1069
    %v1071 = vpop.f32.mrf.mxu0
    %v1072 = vpop.f32.mrf.mxu0
    %v1073 = vpop.f32.mrf.mxu0
    %1074 = vdwg.mxu0
    %1075 = vmatprep.subr.bf16.mxu0 0
    %1076 = vmatpush1.bf16.msra.mxu0 %v858
    %1077 = vmatprep.subr.bf16.mxu0 0
    %1078 = vmatpush1.bf16.msra.mxu0 %v857
    %1079 = vmatprep.subr.bf16.mxu0 0
    %1080 = vmatpush1.bf16.msra.mxu0 %v856
    %1081 = vmatprep.subr.bf16.mxu0 0
    %1082 = vmatpush1.bf16.msra.mxu0 %v855
    %1083 = vmatprep.subr.bf16.mxu0 0
    %1084 = vmatpush1.bf16.msra.mxu0 %v854
    %1085 = vmatprep.subr.bf16.mxu0 0
    %1086 = vmatpush1.bf16.msra.mxu0 %v853
    %1087 = vmatprep.subr.bf16.mxu0 0
    %1088 = vmatpush1.bf16.msra.mxu0 %v852
    %1089 = vmatprep.subr.bf16.mxu0 0
    %1090 = vmatpush1.bf16.msra.mxu0 %v851
    %1091 = vmatprep.subr.bf16.mxu0 0
    %1092 = vmatpush2.bf16.msra.mxu0 %v866
    %1093 = vmatprep.subr.bf16.mxu0 0
    %1094 = vmatpush2.bf16.msra.mxu0 %v865
    %1095 = vmatprep.subr.bf16.mxu0 0
    %1096 = vmatpush2.bf16.msra.mxu0 %v864
    %1097 = vmatprep.subr.bf16.mxu0 0
    %1098 = vmatpush2.bf16.msra.mxu0 %v863
    %1099 = vmatprep.subr.bf16.mxu0 0
    %1100 = vmatpush2.bf16.msra.mxu0 %v862
    %1101 = vmatprep.subr.bf16.mxu0 0
    %1102 = vmatpush2.bf16.msra.mxu0 %v861
    %1103 = vmatprep.subr.bf16.mxu0 0
    %1104 = vmatpush2.bf16.msra.mxu0 %v860
    %1105 = vmatprep.subr.bf16.mxu0 0
    %1106 = vmatpush2.bf16.msra.mxu0 %v859
    %1107 = vmatprep.mubr.bf16.mxu0 %v406
    %1108 = vmatmul.mubr.bf16.gmra.mxu0 %v405
    %v1109 = vpop.f32.mrf.mxu0
    %v1110 = vadd.f32 %v1062, %v1109
    %v1111 = vpop.f32.mrf.mxu0
    %v1112 = vpop.f32.mrf.mxu0
    %v1113 = vadd.f32 %v1065, %v1112
    %v1114 = vpop.f32.mrf.mxu0
    %1115 = vmatprep.mubr.bf16.mxu0 %v418
    %1116 = vmatmul.mubr.bf16.gmra.mxu0 %v417
    %v1117 = vpop.f32.mrf.mxu0
    %v1118 = vadd.f32 %v1070, %v1117
    %v1119 = vpop.f32.mrf.mxu0
    %v1120 = vpop.f32.mrf.mxu0
    %v1121 = vpop.f32.mrf.mxu0
    %1122 = vdwg.mxu0
    %1123 = vmatprep.subr.bf16.mxu0 0
    %1124 = vmatpush1.bf16.msra.mxu0 %v874
    %1125 = vmatprep.subr.bf16.mxu0 0
    %1126 = vmatpush1.bf16.msra.mxu0 %v873
    %1127 = vmatprep.subr.bf16.mxu0 0
    %1128 = vmatpush1.bf16.msra.mxu0 %v872
    %1129 = vmatprep.subr.bf16.mxu0 0
    %1130 = vmatpush1.bf16.msra.mxu0 %v871
    %1131 = vmatprep.subr.bf16.mxu0 0
    %1132 = vmatpush1.bf16.msra.mxu0 %v870
    %1133 = vmatprep.subr.bf16.mxu0 0
    %1134 = vmatpush1.bf16.msra.mxu0 %v869
    %1135 = vmatprep.subr.bf16.mxu0 0
    %1136 = vmatpush1.bf16.msra.mxu0 %v868
    %1137 = vmatprep.subr.bf16.mxu0 0
    %1138 = vmatpush1.bf16.msra.mxu0 %v867
    %1139 = vmatprep.subr.bf16.mxu0 0
    %1140 = vmatpush2.bf16.msra.mxu0 %v882
    %1141 = vmatprep.subr.bf16.mxu0 0
    %1142 = vmatpush2.bf16.msra.mxu0 %v881
    %1143 = vmatprep.subr.bf16.mxu0 0
    %1144 = vmatpush2.bf16.msra.mxu0 %v880
    %1145 = vmatprep.subr.bf16.mxu0 0
    %1146 = vmatpush2.bf16.msra.mxu0 %v879
    %1147 = vmatprep.subr.bf16.mxu0 0
    %1148 = vmatpush2.bf16.msra.mxu0 %v878
    %1149 = vmatprep.subr.bf16.mxu0 0
    %1150 = vmatpush2.bf16.msra.mxu0 %v877
    %1151 = vmatprep.subr.bf16.mxu0 0
    %1152 = vmatpush2.bf16.msra.mxu0 %v876
    %1153 = vmatprep.subr.bf16.mxu0 0
    %1154 = vmatpush2.bf16.msra.mxu0 %v875
    %1155 = vmatprep.mubr.bf16.mxu0 %v408
    %1156 = vmatmul.mubr.bf16.gmra.mxu0 %v407
    %v1157 = vpop.f32.mrf.mxu0
    %v1158 = vadd.f32 %v1110, %v1157
    %v1159 = vpop.f32.mrf.mxu0
    %v1160 = vpop.f32.mrf.mxu0
    %v1161 = vadd.f32 %v1113, %v1160
    %v1162 = vpop.f32.mrf.mxu0
    %1163 = vmatprep.mubr.bf16.mxu0 %v420
    %1164 = vmatmul.mubr.bf16.gmra.mxu0 %v419
    %v1165 = vpop.f32.mrf.mxu0
    %v1166 = vadd.f32 %v1118, %v1165
    %v1167 = vpop.f32.mrf.mxu0
    %v1168 = vpop.f32.mrf.mxu0
    %v1169 = vpop.f32.mrf.mxu0
    %1170 = vdwg.mxu0
    %1171 = vmatprep.subr.bf16.mxu0 0
    %1172 = vmatpush1.bf16.msra.mxu0 %v890
    %1173 = vmatprep.subr.bf16.mxu0 0
    %1174 = vmatpush1.bf16.msra.mxu0 %v889
    %1175 = vmatprep.subr.bf16.mxu0 0
    %1176 = vmatpush1.bf16.msra.mxu0 %v888
    %1177 = vmatprep.subr.bf16.mxu0 0
    %1178 = vmatpush1.bf16.msra.mxu0 %v887
    %1179 = vmatprep.subr.bf16.mxu0 0
    %1180 = vmatpush1.bf16.msra.mxu0 %v886
    %1181 = vmatprep.subr.bf16.mxu0 0
    %1182 = vmatpush1.bf16.msra.mxu0 %v885
    %1183 = vmatprep.subr.bf16.mxu0 0
    %1184 = vmatpush1.bf16.msra.mxu0 %v884
    %1185 = vmatprep.subr.bf16.mxu0 0
    %1186 = vmatpush1.bf16.msra.mxu0 %v883
    %1187 = vmatprep.subr.bf16.mxu0 0
    %1188 = vmatpush2.bf16.msra.mxu0 %v898
    %1189 = vmatprep.subr.bf16.mxu0 0
    %1190 = vmatpush2.bf16.msra.mxu0 %v897
    %1191 = vmatprep.subr.bf16.mxu0 0
    %1192 = vmatpush2.bf16.msra.mxu0 %v896
    %1193 = vmatprep.subr.bf16.mxu0 0
    %1194 = vmatpush2.bf16.msra.mxu0 %v895
    %1195 = vmatprep.subr.bf16.mxu0 0
    %1196 = vmatpush2.bf16.msra.mxu0 %v894
    %1197 = vmatprep.subr.bf16.mxu0 0
    %1198 = vmatpush2.bf16.msra.mxu0 %v893
    %1199 = vmatprep.subr.bf16.mxu0 0
    %1200 = vmatpush2.bf16.msra.mxu0 %v892
    %1201 = vmatprep.subr.bf16.mxu0 0
    %1202 = vmatpush2.bf16.msra.mxu0 %v891
    %1203 = vmatprep.mubr.bf16.mxu0 %v410
    %1204 = vmatmul.mubr.bf16.gmra.mxu0 %v409
    %v1205 = vpop.f32.mrf.mxu0
    %v1206 = vadd.f32 %v1158, %v1205
    %v1207 = vpop.f32.mrf.mxu0
    %v1208 = vpop.f32.mrf.mxu0
    %v1209 = vadd.f32 %v1161, %v1208
    %v1210 = vpop.f32.mrf.mxu0
    %1211 = vmatprep.mubr.bf16.mxu0 %v422
    %1212 = vmatmul.mubr.bf16.gmra.mxu0 %v421
    %v1213 = vpop.f32.mrf.mxu0
    %v1214 = vadd.f32 %v1166, %v1213
    %v1215 = vpop.f32.mrf.mxu0
    %v1216 = vpop.f32.mrf.mxu0
    %v1217 = vpop.f32.mrf.mxu0
    %1218 = vdwg.mxu0
    %1219 = vmatprep.subr.bf16.mxu0 0
    %1220 = vmatpush1.bf16.msra.mxu0 %v906
    %1221 = vmatprep.subr.bf16.mxu0 0
    %1222 = vmatpush1.bf16.msra.mxu0 %v905
    %1223 = vmatprep.subr.bf16.mxu0 0
    %1224 = vmatpush1.bf16.msra.mxu0 %v904
    %1225 = vmatprep.subr.bf16.mxu0 0
    %1226 = vmatpush1.bf16.msra.mxu0 %v903
    %1227 = vmatprep.subr.bf16.mxu0 0
    %1228 = vmatpush1.bf16.msra.mxu0 %v902
    %1229 = vmatprep.subr.bf16.mxu0 0
    %1230 = vmatpush1.bf16.msra.mxu0 %v901
    %1231 = vmatprep.subr.bf16.mxu0 0
    %1232 = vmatpush1.bf16.msra.mxu0 %v900
    %1233 = vmatprep.subr.bf16.mxu0 0
    %1234 = vmatpush1.bf16.msra.mxu0 %v899
    %1235 = vmatprep.subr.bf16.mxu0 0
    %1236 = vmatpush2.bf16.msra.mxu0 %v914
    %1237 = vmatprep.subr.bf16.mxu0 0
    %1238 = vmatpush2.bf16.msra.mxu0 %v913
    %1239 = vmatprep.subr.bf16.mxu0 0
    %1240 = vmatpush2.bf16.msra.mxu0 %v912
    %1241 = vmatprep.subr.bf16.mxu0 0
    %1242 = vmatpush2.bf16.msra.mxu0 %v911
    %1243 = vmatprep.subr.bf16.mxu0 0
    %1244 = vmatpush2.bf16.msra.mxu0 %v910
    %1245 = vmatprep.subr.bf16.mxu0 0
    %1246 = vmatpush2.bf16.msra.mxu0 %v909
    %1247 = vmatprep.subr.bf16.mxu0 0
    %1248 = vmatpush2.bf16.msra.mxu0 %v908
    %1249 = vmatprep.subr.bf16.mxu0 0
    %1250 = vmatpush2.bf16.msra.mxu0 %v907
    %1251 = vmatprep.mubr.bf16.mxu0 %v412
    %1252 = vmatmul.mubr.bf16.gmra.mxu0 %v411
    %v1253 = vpop.f32.mrf.mxu0
    %v1254 = vadd.f32 %v1206, %v1253
    %v1255 = vpop.f32.mrf.mxu0
    %v1256 = vpop.f32.mrf.mxu0
    %v1257 = vadd.f32 %v1209, %v1256
    %v1258 = vpop.f32.mrf.mxu0
    %1259 = vmatprep.mubr.bf16.mxu0 %v424
    %1260 = vmatmul.mubr.bf16.gmra.mxu0 %v423
    %v1261 = vpop.f32.mrf.mxu0
    %v1262 = vadd.f32 %v1214, %v1261
    %v1263 = vpop.f32.mrf.mxu0
    %v1264 = vpop.f32.mrf.mxu0
    %v1265 = vpop.f32.mrf.mxu0
    %1266 = vdwg.mxu0
    %1267 = vmatprep.subr.bf16.mxu0 0
    %1268 = vmatpush1.bf16.msra.mxu0 %v922
    %1269 = vmatprep.subr.bf16.mxu0 0
    %1270 = vmatpush1.bf16.msra.mxu0 %v921
    %1271 = vmatprep.subr.bf16.mxu0 0
    %1272 = vmatpush1.bf16.msra.mxu0 %v920
    %1273 = vmatprep.subr.bf16.mxu0 0
    %1274 = vmatpush1.bf16.msra.mxu0 %v919
    %1275 = vmatprep.subr.bf16.mxu0 0
    %1276 = vmatpush1.bf16.msra.mxu0 %v918
    %1277 = vmatprep.subr.bf16.mxu0 0
    %1278 = vmatpush1.bf16.msra.mxu0 %v917
    %1279 = vmatprep.subr.bf16.mxu0 0
    %1280 = vmatpush1.bf16.msra.mxu0 %v916
    %1281 = vmatprep.subr.bf16.mxu0 0
    %1282 = vmatpush1.bf16.msra.mxu0 %v915
    %1283 = vmatprep.subr.bf16.mxu0 0
    %1284 = vmatpush2.bf16.msra.mxu0 %v930
    %1285 = vmatprep.subr.bf16.mxu0 0
    %1286 = vmatpush2.bf16.msra.mxu0 %v929
    %1287 = vmatprep.subr.bf16.mxu0 0
    %1288 = vmatpush2.bf16.msra.mxu0 %v928
    %1289 = vmatprep.subr.bf16.mxu0 0
    %1290 = vmatpush2.bf16.msra.mxu0 %v927
    %1291 = vmatprep.subr.bf16.mxu0 0
    %1292 = vmatpush2.bf16.msra.mxu0 %v926
    %1293 = vmatprep.subr.bf16.mxu0 0
    %1294 = vmatpush2.bf16.msra.mxu0 %v925
    %1295 = vmatprep.subr.bf16.mxu0 0
    %1296 = vmatpush2.bf16.msra.mxu0 %v924
    %1297 = vmatprep.subr.bf16.mxu0 0
    %1298 = vmatpush2.bf16.msra.mxu0 %v923
    %1299 = vmatprep.mubr.bf16.mxu0 %v414
    %1300 = vmatmul.mubr.bf16.gmra.mxu0 %v413
    %v1301 = vpop.f32.mrf.mxu0
    %v1302 = vadd.f32 %v1254, %v1301
    %v1303 = vpop.f32.mrf.mxu0
    %v1304 = vpop.f32.mrf.mxu0
    %v1305 = vadd.f32 %v1257, %v1304
    %v1306 = vpop.f32.mrf.mxu0
    %1307 = vmatprep.mubr.bf16.mxu0 %v426
    %1308 = vmatmul.mubr.bf16.gmra.mxu0 %v425
    %v1309 = vpop.f32.mrf.mxu0
    %v1310 = vadd.f32 %v1262, %v1309
    %v1311 = vpop.f32.mrf.mxu0
    %v1312 = vpop.f32.mrf.mxu0
    %v1313 = vpop.f32.mrf.mxu0
    %1314 = vdwg.mxu0
    %v1315 = vld [vmem:[%s7] sm:$0xff]
    %v1316 = vld [vmem:[%s7 + $0x8] sm:$0xff]
    %v1317 = vld [vmem:[%s7 + $0x10] sm:$0xff]
    %v1318 = vadd.f32 %v1302, %v1315
    %v1319 = vadd.f32 %v1305, %v1316
    %v1320 = vadd.f32 %v1310, %v1317
    %v1321 = vld [vmem:[%s9] sm:$0x1]
    %v1322 = vld [vmem:[%s11] sm:$0x1]
    %vm1323 = vcmask 654336
    %v1324 = vsel %vm1323, %v1318, 0.0
    %1325 = vadd.xlane.f32.xlu0 %v1324
    %v1326 = vpop.xlane.xlu0 %1325
    %v1327 = vsel %vm1323, %v1319, 0.0
    %1328 = vadd.xlane.f32.xlu0 %v1327
    %v1329 = vpop.xlane.xlu0 %1328
    %v1330 = vsel %vm1323, %v1320, 0.0
    %1331 = vadd.xlane.f32.xlu0 %v1330
    %v1332 = vpop.xlane.xlu0 %1331
    %v1333 = vrcp.pop 80.0
    %v1334 = vmul.f32 %v1326, %v1333
    %v1335 = vmul.f32 %v1329, %v1333
    %v1336 = vmul.f32 %v1332, %v1333
    %v1337 = vsub.f32 %v1318, %v1334
    %v1338 = vsub.f32 %v1319, %v1335
    %v1339 = vsub.f32 %v1320, %v1336
    %v1340 = vmul.f32 %v1337, %v1337
    %v1341 = vmul.f32 %v1338, %v1338
    %v1342 = vmul.f32 %v1339, %v1339
    %v1343 = vsel %vm1323, %v1340, 0.0
    %1344 = vadd.xlane.f32.xlu0 %v1343
    %v1345 = vpop.xlane.xlu0 %1344
    %v1346 = vsel %vm1323, %v1341, 0.0
    %1347 = vadd.xlane.f32.xlu0 %v1346
    %v1348 = vpop.xlane.xlu0 %1347
    %v1349 = vsel %vm1323, %v1342, 0.0
    %1350 = vadd.xlane.f32.xlu0 %v1349
    %v1351 = vpop.xlane.xlu0 %1350
    %v1352 = vmul.f32 %v1345, %v1333
    %v1353 = vmul.f32 %v1348, %v1333
    %v1354 = vmul.f32 %v1351, %v1333
    %v1355 = vadd.f32 %v1352, 1e-05
    %v1356 = vadd.f32 %v1353, 1e-05
    %v1357 = vadd.f32 %v1354, 1e-05
    %v1358 = vrsqrt.pop %v1355
    %v1359 = vrsqrt.pop %v1356
    %v1360 = vrsqrt.pop %v1357
    %v1361 = vmul.f32 %v1337, %v1358
    %v1362 = vmul.f32 %v1338, %v1359
    %v1363 = vmul.f32 %v1339, %v1360
    %v1365 = vlaneseq
    %v1366 = vshrl.u32 %v1365, 7
    %v1367 = vsub.s32 0, %v1366
    %v1368 = vrot.slane %v1321, %v1367
    %v1370 = vmul.f32 %v1361, %v1368
    %v1371 = vmul.f32 %v1362, %v1368
    %v1372 = vmul.f32 %v1363, %v1368
    %v1374 = vlaneseq
    %v1375 = vshrl.u32 %v1374, 7
    %v1376 = vsub.s32 0, %v1375
    %v1377 = vrot.slane %v1322, %v1376
    %v1379 = vadd.f32 %v1370, %v1377
    %v1380 = vadd.f32 %v1371, %v1377
    %v1381 = vadd.f32 %v1372, %v1377
    %v1382 = vld [vmem:[%s13] sm:$0xff]
    %v1383 = vld [vmem:[%s13 + $0x8] sm:$0xff]
    %v1384 = vld [vmem:[%s13 + $0x10] sm:$0xff]
    %v1385 = vld [vmem:[%s13 + $0x18] sm:$0xff]
    %v1386 = vld [vmem:[%s13 + $0x20] sm:$0xff]
    %v1387 = vld [vmem:[%s13 + $0x28] sm:$0xff]
    %v1388 = vld [vmem:[%s13 + $0x30] sm:$0xff]
    %v1389 = vld [vmem:[%s13 + $0x38] sm:$0xff]
    %v1390 = vld [vmem:[%s13 + $0x40] sm:$0xff]
    %v1391 = vld [vmem:[%s13 + $0x48] sm:$0xff]
    %v1393 = vsel %vm1323, %v1379, 0
    %v1396 = vsel %vm1323, %v1380, 0
    %v1399 = vsel %vm1323, %v1381, 0
    %1401 = vmatprep.subr.mxu0 0.0
    %1402 = vmatpush1.msra.mxu0 0.0
    %1403 = vmatprep.subr.mxu0 0.0
    %1404 = vmatpush1.msra.mxu0 0.0
    %1405 = vmatprep.subr.mxu0 0.0
    %1406 = vmatpush1.msra.mxu0 0.0
    %1407 = vmatprep.subr.mxu0 0.0
    %1408 = vmatpush1.msra.mxu0 0.0
    %1409 = vmatprep.subr.mxu0 0.0
    %1410 = vmatpush1.msra.mxu0 0.0
    %1411 = vmatprep.subr.mxu0 0.0
    %1412 = vmatpush1.msra.mxu0 0.0
    %1413 = vmatprep.subr.mxu0 0.0
    %1414 = vmatpush1.msra.mxu0 %v1391
    %1415 = vmatprep.subr.mxu0 0.0
    %1416 = vmatpush1.msra.mxu0 %v1390
    %1417 = vmatprep.subr.mxu0 0.0
    %1418 = vmatpush1.msra.mxu0 %v1389
    %1419 = vmatprep.subr.mxu0 0.0
    %1420 = vmatpush1.msra.mxu0 %v1388
    %1421 = vmatprep.subr.mxu0 0.0
    %1422 = vmatpush1.msra.mxu0 %v1387
    %1423 = vmatprep.subr.mxu0 0.0
    %1424 = vmatpush1.msra.mxu0 %v1386
    %1425 = vmatprep.subr.mxu0 0.0
    %1426 = vmatpush1.msra.mxu0 %v1385
    %1427 = vmatprep.subr.mxu0 0.0
    %1428 = vmatpush1.msra.mxu0 %v1384
    %1429 = vmatprep.subr.mxu0 0.0
    %1430 = vmatpush1.msra.mxu0 %v1383
    %1431 = vmatprep.subr.mxu0 0.0
    %1432 = vmatpush1.msra.mxu0 %v1382
    %1433 = vmatprep.subr.mxu0 0.0
    %1434 = vmatpush2.msra.mxu0 0.0
    %1435 = vmatprep.subr.mxu0 0.0
    %1436 = vmatpush2.msra.mxu0 0.0
    %1437 = vmatprep.subr.mxu0 0.0
    %1438 = vmatpush2.msra.mxu0 0.0
    %1439 = vmatprep.subr.mxu0 0.0
    %1440 = vmatpush2.msra.mxu0 0.0
    %1441 = vmatprep.subr.mxu0 0.0
    %1442 = vmatpush2.msra.mxu0 0.0
    %1443 = vmatprep.subr.mxu0 0.0
    %1444 = vmatpush2.msra.mxu0 0.0
    %1445 = vmatprep.subr.mxu0 0.0
    %1446 = vmatpush2.msra.mxu0 0.0
    %1447 = vmatprep.subr.mxu0 0.0
    %1448 = vmatpush2.msra.mxu0 0.0
    %1449 = vmatprep.subr.mxu0 0.0
    %1450 = vmatpush2.msra.mxu0 0.0
    %1451 = vmatprep.subr.mxu0 0.0
    %1452 = vmatpush2.msra.mxu0 0.0
    %1453 = vmatprep.subr.mxu0 0.0
    %1454 = vmatpush2.msra.mxu0 0.0
    %1455 = vmatprep.subr.mxu0 0.0
    %1456 = vmatpush2.msra.mxu0 0.0
    %1457 = vmatprep.subr.mxu0 0.0
    %1458 = vmatpush2.msra.mxu0 0.0
    %1459 = vmatprep.subr.mxu0 0.0
    %1460 = vmatpush2.msra.mxu0 0.0
    %1461 = vmatprep.subr.mxu0 0.0
    %1462 = vmatpush2.msra.mxu0 0.0
    %1463 = vmatprep.subr.mxu0 0.0
    %1464 = vmatpush2.msra.mxu0 0.0
    %1465 = vmatprep.mubr.f32.mxu0 0.0
    %1466 = vmatmul.mubr.f32.gmra.mxu0 %v1393
    %v1467 = vpop.f32.mrf.mxu0
    %v1468 = vadd.f32 0.0, %v1467
    %v1469 = vpop.f32.mrf.mxu0
    %1470 = vmatprep.mubr.f32.mxu0 0.0
    %1471 = vmatmul.mubr.f32.gmra.mxu0 %v1396
    %v1472 = vpop.f32.mrf.mxu0
    %v1473 = vadd.f32 0.0, %v1472
    %v1474 = vpop.f32.mrf.mxu0
    %1475 = vmatprep.mubr.f32.mxu0 0.0
    %1476 = vmatmul.mubr.f32.gmra.mxu0 %v1399
    %v1477 = vpop.f32.mrf.mxu0
    %v1478 = vadd.f32 0.0, %v1477
    %v1479 = vpop.f32.mrf.mxu0
    %1480 = vdwg.mxu0
    %v1481 = vld [vmem:[%s15] sm:$0xff]
    %v1482 = vld [vmem:[%s15 + $0x8] sm:$0xff]
    %v1483 = vld [vmem:[%s15 + $0x10] sm:$0xff]
    %v1484 = vld [vmem:[%s15 + $0x18] sm:$0xff]
    %v1485 = vld [vmem:[%s15 + $0x20] sm:$0xff]
    %v1486 = vld [vmem:[%s15 + $0x28] sm:$0xff]
    %v1487 = vld [vmem:[%s15 + $0x30] sm:$0xff]
    %v1488 = vld [vmem:[%s15 + $0x38] sm:$0xff]
    %v1489 = vld [vmem:[%s15 + $0x40] sm:$0xff]
    %v1490 = vld [vmem:[%s15 + $0x48] sm:$0xff]
    %1491 = vmatprep.subr.mxu0 0.0
    %1492 = vmatpush1.msra.mxu0 0.0
    %1493 = vmatprep.subr.mxu0 0.0
    %1494 = vmatpush1.msra.mxu0 0.0
    %1495 = vmatprep.subr.mxu0 0.0
    %1496 = vmatpush1.msra.mxu0 0.0
    %1497 = vmatprep.subr.mxu0 0.0
    %1498 = vmatpush1.msra.mxu0 0.0
    %1499 = vmatprep.subr.mxu0 0.0
    %1500 = vmatpush1.msra.mxu0 0.0
    %1501 = vmatprep.subr.mxu0 0.0
    %1502 = vmatpush1.msra.mxu0 0.0
    %1503 = vmatprep.subr.mxu0 0.0
    %1504 = vmatpush1.msra.mxu0 %v1490
    %1505 = vmatprep.subr.mxu0 0.0
    %1506 = vmatpush1.msra.mxu0 %v1489
    %1507 = vmatprep.subr.mxu0 0.0
    %1508 = vmatpush1.msra.mxu0 %v1488
    %1509 = vmatprep.subr.mxu0 0.0
    %1510 = vmatpush1.msra.mxu0 %v1487
    %1511 = vmatprep.subr.mxu0 0.0
    %1512 = vmatpush1.msra.mxu0 %v1486
    %1513 = vmatprep.subr.mxu0 0.0
    %1514 = vmatpush1.msra.mxu0 %v1485
    %1515 = vmatprep.subr.mxu0 0.0
    %1516 = vmatpush1.msra.mxu0 %v1484
    %1517 = vmatprep.subr.mxu0 0.0
    %1518 = vmatpush1.msra.mxu0 %v1483
    %1519 = vmatprep.subr.mxu0 0.0
    %1520 = vmatpush1.msra.mxu0 %v1482
    %1521 = vmatprep.subr.mxu0 0.0
    %1522 = vmatpush1.msra.mxu0 %v1481
    %1523 = vmatprep.subr.mxu0 0.0
    %1524 = vmatpush2.msra.mxu0 0.0
    %1525 = vmatprep.subr.mxu0 0.0
    %1526 = vmatpush2.msra.mxu0 0.0
    %1527 = vmatprep.subr.mxu0 0.0
    %1528 = vmatpush2.msra.mxu0 0.0
    %1529 = vmatprep.subr.mxu0 0.0
    %1530 = vmatpush2.msra.mxu0 0.0
    %1531 = vmatprep.subr.mxu0 0.0
    %1532 = vmatpush2.msra.mxu0 0.0
    %1533 = vmatprep.subr.mxu0 0.0
    %1534 = vmatpush2.msra.mxu0 0.0
    %1535 = vmatprep.subr.mxu0 0.0
    %1536 = vmatpush2.msra.mxu0 0.0
    %1537 = vmatprep.subr.mxu0 0.0
    %1538 = vmatpush2.msra.mxu0 0.0
    %1539 = vmatprep.subr.mxu0 0.0
    %1540 = vmatpush2.msra.mxu0 0.0
    %1541 = vmatprep.subr.mxu0 0.0
    %1542 = vmatpush2.msra.mxu0 0.0
    %1543 = vmatprep.subr.mxu0 0.0
    %1544 = vmatpush2.msra.mxu0 0.0
    %1545 = vmatprep.subr.mxu0 0.0
    %1546 = vmatpush2.msra.mxu0 0.0
    %1547 = vmatprep.subr.mxu0 0.0
    %1548 = vmatpush2.msra.mxu0 0.0
    %1549 = vmatprep.subr.mxu0 0.0
    %1550 = vmatpush2.msra.mxu0 0.0
    %1551 = vmatprep.subr.mxu0 0.0
    %1552 = vmatpush2.msra.mxu0 0.0
    %1553 = vmatprep.subr.mxu0 0.0
    %1554 = vmatpush2.msra.mxu0 0.0
    %1555 = vmatprep.mubr.f32.mxu0 0.0
    %1556 = vmatmul.mubr.f32.gmra.mxu0 %v1393
    %v1557 = vpop.f32.mrf.mxu0
    %v1558 = vadd.f32 0.0, %v1557
    %v1559 = vpop.f32.mrf.mxu0
    %1560 = vmatprep.mubr.f32.mxu0 0.0
    %1561 = vmatmul.mubr.f32.gmra.mxu0 %v1396
    %v1562 = vpop.f32.mrf.mxu0
    %v1563 = vadd.f32 0.0, %v1562
    %v1564 = vpop.f32.mrf.mxu0
    %1565 = vmatprep.mubr.f32.mxu0 0.0
    %1566 = vmatmul.mubr.f32.gmra.mxu0 %v1399
    %v1567 = vpop.f32.mrf.mxu0
    %v1568 = vadd.f32 0.0, %v1567
    %v1569 = vpop.f32.mrf.mxu0
    %1570 = vdwg.mxu0
    %v1571 = vld [vmem:[%s17] sm:$0xff]
    %v1572 = vld [vmem:[%s17 + $0x8] sm:$0xff]
    %v1573 = vld [vmem:[%s17 + $0x10] sm:$0xff]
    %v1574 = vld [vmem:[%s17 + $0x18] sm:$0xff]
    %v1575 = vld [vmem:[%s17 + $0x20] sm:$0xff]
    %v1576 = vld [vmem:[%s17 + $0x28] sm:$0xff]
    %v1577 = vld [vmem:[%s17 + $0x30] sm:$0xff]
    %v1578 = vld [vmem:[%s17 + $0x38] sm:$0xff]
    %v1579 = vld [vmem:[%s17 + $0x40] sm:$0xff]
    %v1580 = vld [vmem:[%s17 + $0x48] sm:$0xff]
    %1581 = vmatprep.subr.mxu0 0.0
    %1582 = vmatpush1.msra.mxu0 0.0
    %1583 = vmatprep.subr.mxu0 0.0
    %1584 = vmatpush1.msra.mxu0 0.0
    %1585 = vmatprep.subr.mxu0 0.0
    %1586 = vmatpush1.msra.mxu0 0.0
    %1587 = vmatprep.subr.mxu0 0.0
    %1588 = vmatpush1.msra.mxu0 0.0
    %1589 = vmatprep.subr.mxu0 0.0
    %1590 = vmatpush1.msra.mxu0 0.0
    %1591 = vmatprep.subr.mxu0 0.0
    %1592 = vmatpush1.msra.mxu0 0.0
    %1593 = vmatprep.subr.mxu0 0.0
    %1594 = vmatpush1.msra.mxu0 %v1580
    %1595 = vmatprep.subr.mxu0 0.0
    %1596 = vmatpush1.msra.mxu0 %v1579
    %1597 = vmatprep.subr.mxu0 0.0
    %1598 = vmatpush1.msra.mxu0 %v1578
    %1599 = vmatprep.subr.mxu0 0.0
    %1600 = vmatpush1.msra.mxu0 %v1577
    %1601 = vmatprep.subr.mxu0 0.0
    %1602 = vmatpush1.msra.mxu0 %v1576
    %1603 = vmatprep.subr.mxu0 0.0
    %1604 = vmatpush1.msra.mxu0 %v1575
    %1605 = vmatprep.subr.mxu0 0.0
    %1606 = vmatpush1.msra.mxu0 %v1574
    %1607 = vmatprep.subr.mxu0 0.0
    %1608 = vmatpush1.msra.mxu0 %v1573
    %1609 = vmatprep.subr.mxu0 0.0
    %1610 = vmatpush1.msra.mxu0 %v1572
    %1611 = vmatprep.subr.mxu0 0.0
    %1612 = vmatpush1.msra.mxu0 %v1571
    %1613 = vmatprep.subr.mxu0 0.0
    %1614 = vmatpush2.msra.mxu0 0.0
    %1615 = vmatprep.subr.mxu0 0.0
    %1616 = vmatpush2.msra.mxu0 0.0
    %1617 = vmatprep.subr.mxu0 0.0
    %1618 = vmatpush2.msra.mxu0 0.0
    %1619 = vmatprep.subr.mxu0 0.0
    %1620 = vmatpush2.msra.mxu0 0.0
    %1621 = vmatprep.subr.mxu0 0.0
    %1622 = vmatpush2.msra.mxu0 0.0
    %1623 = vmatprep.subr.mxu0 0.0
    %1624 = vmatpush2.msra.mxu0 0.0
    %1625 = vmatprep.subr.mxu0 0.0
    %1626 = vmatpush2.msra.mxu0 0.0
    %1627 = vmatprep.subr.mxu0 0.0
    %1628 = vmatpush2.msra.mxu0 0.0
    %1629 = vmatprep.subr.mxu0 0.0
    %1630 = vmatpush2.msra.mxu0 0.0
    %1631 = vmatprep.subr.mxu0 0.0
    %1632 = vmatpush2.msra.mxu0 0.0
    %1633 = vmatprep.subr.mxu0 0.0
    %1634 = vmatpush2.msra.mxu0 0.0
    %1635 = vmatprep.subr.mxu0 0.0
    %1636 = vmatpush2.msra.mxu0 0.0
    %1637 = vmatprep.subr.mxu0 0.0
    %1638 = vmatpush2.msra.mxu0 0.0
    %1639 = vmatprep.subr.mxu0 0.0
    %1640 = vmatpush2.msra.mxu0 0.0
    %1641 = vmatprep.subr.mxu0 0.0
    %1642 = vmatpush2.msra.mxu0 0.0
    %1643 = vmatprep.subr.mxu0 0.0
    %1644 = vmatpush2.msra.mxu0 0.0
    %1645 = vmatprep.mubr.f32.mxu0 0.0
    %1646 = vmatmul.mubr.f32.gmra.mxu0 %v1393
    %v1647 = vpop.f32.mrf.mxu0
    %v1648 = vadd.f32 0.0, %v1647
    %v1649 = vpop.f32.mrf.mxu0
    %1650 = vmatprep.mubr.f32.mxu0 0.0
    %1651 = vmatmul.mubr.f32.gmra.mxu0 %v1396
    %v1652 = vpop.f32.mrf.mxu0
    %v1653 = vadd.f32 0.0, %v1652
    %v1654 = vpop.f32.mrf.mxu0
    %1655 = vmatprep.mubr.f32.mxu0 0.0
    %1656 = vmatmul.mubr.f32.gmra.mxu0 %v1399
    %v1657 = vpop.f32.mrf.mxu0
    %v1658 = vadd.f32 0.0, %v1657
    %v1659 = vpop.f32.mrf.mxu0
    %1660 = vdwg.mxu0
    %v1661 = vld [vmem:[%s51] sm:$0xff]
    %v1662 = vld [vmem:[%s51 + $0x8] sm:$0xff]
    %v1663 = vld [vmem:[%s51 + $0x10] sm:$0xff]
    %v1664 = vld [vmem:[%s51 + $0x18] sm:$0xff]
    %v1665 = vld [vmem:[%s51 + $0x20] sm:$0xff]
    %v1666 = vld [vmem:[%s51 + $0x28] sm:$0xff]
    %v1667 = vld [vmem:[%s51 + $0x30] sm:$0xff]
    %v1668 = vld [vmem:[%s51 + $0x38] sm:$0xff]
    %v1669 = vld [vmem:[%s51 + $0x40] sm:$0xff]
    %v1670 = vld [vmem:[%s51 + $0x48] sm:$0xff]
    %v1671 = vld [vmem:[%s51 + $0x50] sm:$0xff]
    %v1672 = vld [vmem:[%s51 + $0x58] sm:$0xff]
    %v1673 = vld [vmem:[%s51 + $0x60] sm:$0xff]
    %v1674 = vld [vmem:[%s51 + $0x68] sm:$0xff]
    %v1675 = vld [vmem:[%s51 + $0x70] sm:$0xff]
    %v1676 = vld [vmem:[%s51 + $0x78] sm:$0xff]
    %v1677 = vld [vmem:[%s51 + $0x80] sm:$0xff]
    %v1678 = vld [vmem:[%s51 + $0x88] sm:$0xff]
    %v1679 = vld [vmem:[%s51 + $0x90] sm:$0xff]
    %v1680 = vld [vmem:[%s51 + $0x98] sm:$0xff]
    %v1681 = vld [vmem:[%s51 + $0xa0] sm:$0xff]
    %v1682 = vld [vmem:[%s51 + $0xa8] sm:$0xff]
    %v1683 = vld [vmem:[%s51 + $0xb0] sm:$0xff]
    %v1684 = vld [vmem:[%s51 + $0xb8] sm:$0xff]
    %v1685 = vld [vmem:[%s51 + $0xc0] sm:$0xff]
    %v1686 = vld [vmem:[%s51 + $0xc8] sm:$0xff]
    %v1687 = vld [vmem:[%s51 + $0xd0] sm:$0xff]
    %v1688 = vld [vmem:[%s51 + $0xd8] sm:$0xff]
    %v1689 = vld [vmem:[%s51 + $0xe0] sm:$0xff]
    %v1690 = vld [vmem:[%s51 + $0xe8] sm:$0xff]
    %v1691 = vmul.f32 %v1558, %v1661
    %v1692 = vmul.f32 %v1563, %v1662
    %v1693 = vmul.f32 %v1568, %v1663
    %v1694 = vmul.f32 %v1558, %v1664
    %v1695 = vmul.f32 %v1563, %v1665
    %v1696 = vmul.f32 %v1568, %v1666
    %v1697 = vmul.f32 %v1558, %v1667
    %v1698 = vmul.f32 %v1563, %v1668
    %v1699 = vmul.f32 %v1568, %v1669
    %v1700 = vmul.f32 %v1558, %v1670
    %v1701 = vmul.f32 %v1563, %v1671
    %v1702 = vmul.f32 %v1568, %v1672
    %v1703 = vmul.f32 %v1558, %v1673
    %v1704 = vmul.f32 %v1563, %v1674
    %v1705 = vmul.f32 %v1568, %v1675
    %v1706 = vmul.f32 %v1558, %v1676
    %v1707 = vmul.f32 %v1563, %v1677
    %v1708 = vmul.f32 %v1568, %v1678
    %v1709 = vmul.f32 %v1558, %v1679
    %v1710 = vmul.f32 %v1563, %v1680
    %v1711 = vmul.f32 %v1568, %v1681
    %v1712 = vmul.f32 %v1558, %v1682
    %v1713 = vmul.f32 %v1563, %v1683
    %v1714 = vmul.f32 %v1568, %v1684
    %v1715 = vmul.f32 %v1558, %v1685
    %v1716 = vmul.f32 %v1563, %v1686
    %v1717 = vmul.f32 %v1568, %v1687
    %v1718 = vmul.f32 %v1558, %v1688
    %v1719 = vmul.f32 %v1563, %v1689
    %v1720 = vmul.f32 %v1568, %v1690
    %v1722 = vsel %vm1323, %v1691, 0
    %v1725 = vsel %vm1323, %v1692, 0
    %v1728 = vsel %vm1323, %v1693, 0
    %v1731 = vsel %vm1323, %v1694, 0
    %v1734 = vsel %vm1323, %v1695, 0
    %v1737 = vsel %vm1323, %v1696, 0
    %v1740 = vsel %vm1323, %v1697, 0
    %v1743 = vsel %vm1323, %v1698, 0
    %v1746 = vsel %vm1323, %v1699, 0
    %v1749 = vsel %vm1323, %v1700, 0
    %v1752 = vsel %vm1323, %v1701, 0
    %v1755 = vsel %vm1323, %v1702, 0
    %v1758 = vsel %vm1323, %v1703, 0
    %v1761 = vsel %vm1323, %v1704, 0
    %v1764 = vsel %vm1323, %v1705, 0
    %v1767 = vsel %vm1323, %v1706, 0
    %v1770 = vsel %vm1323, %v1707, 0
    %v1773 = vsel %vm1323, %v1708, 0
    %v1776 = vsel %vm1323, %v1709, 0
    %v1779 = vsel %vm1323, %v1710, 0
    %v1782 = vsel %vm1323, %v1711, 0
    %v1785 = vsel %vm1323, %v1712, 0
    %v1788 = vsel %vm1323, %v1713, 0
    %v1791 = vsel %vm1323, %v1714, 0
    %v1794 = vsel %vm1323, %v1715, 0
    %v1797 = vsel %vm1323, %v1716, 0
    %v1800 = vsel %vm1323, %v1717, 0
    %v1803 = vsel %vm1323, %v1718, 0
    %v1806 = vsel %vm1323, %v1719, 0
    %v1809 = vsel %vm1323, %v1720, 0
    %v1812 = vsel %vm1323, %v1468, 0
    %v1815 = vsel %vm1323, %v1473, 0
    %v1818 = vsel %vm1323, %v1478, 0
    %1820 = vmatprep.subr.mxu0 0.0
    %1821 = vmatpush1.xpose.msra.mxu0 0.0
    %1822 = vmatprep.subr.mxu0 0.0
    %1823 = vmatpush1.xpose.msra.mxu0 0.0
    %1824 = vmatprep.subr.mxu0 0.0
    %1825 = vmatpush1.xpose.msra.mxu0 0.0
    %1826 = vmatprep.subr.mxu0 0.0
    %1827 = vmatpush1.xpose.msra.mxu0 0.0
    %1828 = vmatprep.subr.mxu0 0.0
    %1829 = vmatpush1.xpose.msra.mxu0 0.0
    %1830 = vmatprep.subr.mxu0 0.0
    %1831 = vmatpush1.xpose.msra.mxu0 0.0
    %1832 = vmatprep.subr.mxu0 0.0
    %1833 = vmatpush1.xpose.msra.mxu0 0.0
    %1834 = vmatprep.subr.mxu0 0.0
    %1835 = vmatpush1.xpose.msra.mxu0 0.0
    %1836 = vmatprep.subr.mxu0 0.0
    %1837 = vmatpush1.xpose.msra.mxu0 0.0
    %1838 = vmatprep.subr.mxu0 0.0
    %1839 = vmatpush1.xpose.msra.mxu0 0.0
    %1840 = vmatprep.subr.mxu0 0.0
    %1841 = vmatpush1.xpose.msra.mxu0 0.0
    %1842 = vmatprep.subr.mxu0 0.0
    %1843 = vmatpush1.xpose.msra.mxu0 0.0
    %1844 = vmatprep.subr.mxu0 0.0
    %1845 = vmatpush1.xpose.msra.mxu0 0.0
    %1846 = vmatprep.subr.mxu0 0.0
    %1847 = vmatpush1.xpose.msra.mxu0 %v1818
    %1848 = vmatprep.subr.mxu0 0.0
    %1849 = vmatpush1.xpose.msra.mxu0 %v1815
    %1850 = vmatprep.subr.mxu0 0.0
    %1851 = vmatpush1.xpose.msra.mxu0 %v1812
    %1852 = vmatprep.subr.mxu0 0.0
    %1853 = vmatpush2.xpose.msra.mxu0 0.0
    %1854 = vmatprep.subr.mxu0 0.0
    %1855 = vmatpush2.xpose.msra.mxu0 0.0
    %1856 = vmatprep.subr.mxu0 0.0
    %1857 = vmatpush2.xpose.msra.mxu0 0.0
    %1858 = vmatprep.subr.mxu0 0.0
    %1859 = vmatpush2.xpose.msra.mxu0 0.0
    %1860 = vmatprep.subr.mxu0 0.0
    %1861 = vmatpush2.xpose.msra.mxu0 0.0
    %1862 = vmatprep.subr.mxu0 0.0
    %1863 = vmatpush2.xpose.msra.mxu0 0.0
    %1864 = vmatprep.subr.mxu0 0.0
    %1865 = vmatpush2.xpose.msra.mxu0 0.0
    %1866 = vmatprep.subr.mxu0 0.0
    %1867 = vmatpush2.xpose.msra.mxu0 0.0
    %1868 = vmatprep.subr.mxu0 0.0
    %1869 = vmatpush2.xpose.msra.mxu0 0.0
    %1870 = vmatprep.subr.mxu0 0.0
    %1871 = vmatpush2.xpose.msra.mxu0 0.0
    %1872 = vmatprep.subr.mxu0 0.0
    %1873 = vmatpush2.xpose.msra.mxu0 0.0
    %1874 = vmatprep.subr.mxu0 0.0
    %1875 = vmatpush2.xpose.msra.mxu0 0.0
    %1876 = vmatprep.subr.mxu0 0.0
    %1877 = vmatpush2.xpose.msra.mxu0 0.0
    %1878 = vmatprep.subr.mxu0 0.0
    %1879 = vmatpush2.xpose.msra.mxu0 0.0
    %1880 = vmatprep.subr.mxu0 0.0
    %1881 = vmatpush2.xpose.msra.mxu0 0.0
    %1882 = vmatprep.subr.mxu0 0.0
    %1883 = vmatpush2.xpose.msra.mxu0 0.0
    %1884 = vmatprep.mubr.f32.mxu0 0.0
    %1885 = vmatmul.mubr.f32.gmra.mxu0 %v1722
    %v1886 = vpop.f32.mrf.mxu0
    %v1887 = vadd.f32 0.0, %v1886
    %v1888 = vpop.f32.mrf.mxu0
    %1889 = vmatprep.mubr.f32.mxu0 0.0
    %1890 = vmatmul.mubr.f32.gmra.mxu0 %v1725
    %v1891 = vpop.f32.mrf.mxu0
    %v1892 = vadd.f32 0.0, %v1891
    %v1893 = vpop.f32.mrf.mxu0
    %1894 = vmatprep.mubr.f32.mxu0 0.0
    %1895 = vmatmul.mubr.f32.gmra.mxu0 %v1728
    %v1896 = vpop.f32.mrf.mxu0
    %v1897 = vadd.f32 0.0, %v1896
    %v1898 = vpop.f32.mrf.mxu0
    %1899 = vmatprep.mubr.f32.mxu0 0.0
    %1900 = vmatmul.mubr.f32.gmra.mxu0 %v1731
    %v1901 = vpop.f32.mrf.mxu0
    %v1902 = vadd.f32 0.0, %v1901
    %v1903 = vpop.f32.mrf.mxu0
    %1904 = vmatprep.mubr.f32.mxu0 0.0
    %1905 = vmatmul.mubr.f32.gmra.mxu0 %v1734
    %v1906 = vpop.f32.mrf.mxu0
    %v1907 = vadd.f32 0.0, %v1906
    %v1908 = vpop.f32.mrf.mxu0
    %1909 = vmatprep.mubr.f32.mxu0 0.0
    %1910 = vmatmul.mubr.f32.gmra.mxu0 %v1737
    %v1911 = vpop.f32.mrf.mxu0
    %v1912 = vadd.f32 0.0, %v1911
    %v1913 = vpop.f32.mrf.mxu0
    %1914 = vmatprep.mubr.f32.mxu0 0.0
    %1915 = vmatmul.mubr.f32.gmra.mxu0 %v1740
    %v1916 = vpop.f32.mrf.mxu0
    %v1917 = vadd.f32 0.0, %v1916
    %v1918 = vpop.f32.mrf.mxu0
    %1919 = vmatprep.mubr.f32.mxu0 0.0
    %1920 = vmatmul.mubr.f32.gmra.mxu0 %v1743
    %v1921 = vpop.f32.mrf.mxu0
    %v1922 = vadd.f32 0.0, %v1921
    %v1923 = vpop.f32.mrf.mxu0
    %1924 = vmatprep.mubr.f32.mxu0 0.0
    %1925 = vmatmul.mubr.f32.gmra.mxu0 %v1746
    %v1926 = vpop.f32.mrf.mxu0
    %v1927 = vadd.f32 0.0, %v1926
    %v1928 = vpop.f32.mrf.mxu0
    %1929 = vmatprep.mubr.f32.mxu0 0.0
    %1930 = vmatmul.mubr.f32.gmra.mxu0 %v1749
    %v1931 = vpop.f32.mrf.mxu0
    %v1932 = vadd.f32 0.0, %v1931
    %v1933 = vpop.f32.mrf.mxu0
    %1934 = vmatprep.mubr.f32.mxu0 0.0
    %1935 = vmatmul.mubr.f32.gmra.mxu0 %v1752
    %v1936 = vpop.f32.mrf.mxu0
    %v1937 = vadd.f32 0.0, %v1936
    %v1938 = vpop.f32.mrf.mxu0
    %1939 = vmatprep.mubr.f32.mxu0 0.0
    %1940 = vmatmul.mubr.f32.gmra.mxu0 %v1755
    %v1941 = vpop.f32.mrf.mxu0
    %v1942 = vadd.f32 0.0, %v1941
    %v1943 = vpop.f32.mrf.mxu0
    %1944 = vmatprep.mubr.f32.mxu0 0.0
    %1945 = vmatmul.mubr.f32.gmra.mxu0 %v1758
    %v1946 = vpop.f32.mrf.mxu0
    %v1947 = vadd.f32 0.0, %v1946
    %v1948 = vpop.f32.mrf.mxu0
    %1949 = vmatprep.mubr.f32.mxu0 0.0
    %1950 = vmatmul.mubr.f32.gmra.mxu0 %v1761
    %v1951 = vpop.f32.mrf.mxu0
    %v1952 = vadd.f32 0.0, %v1951
    %v1953 = vpop.f32.mrf.mxu0
    %1954 = vmatprep.mubr.f32.mxu0 0.0
    %1955 = vmatmul.mubr.f32.gmra.mxu0 %v1764
    %v1956 = vpop.f32.mrf.mxu0
    %v1957 = vadd.f32 0.0, %v1956
    %v1958 = vpop.f32.mrf.mxu0
    %1959 = vmatprep.mubr.f32.mxu0 0.0
    %1960 = vmatmul.mubr.f32.gmra.mxu0 %v1767
    %v1961 = vpop.f32.mrf.mxu0
    %v1962 = vadd.f32 0.0, %v1961
    %v1963 = vpop.f32.mrf.mxu0
    %1964 = vmatprep.mubr.f32.mxu0 0.0
    %1965 = vmatmul.mubr.f32.gmra.mxu0 %v1770
    %v1966 = vpop.f32.mrf.mxu0
    %v1967 = vadd.f32 0.0, %v1966
    %v1968 = vpop.f32.mrf.mxu0
    %1969 = vmatprep.mubr.f32.mxu0 0.0
    %1970 = vmatmul.mubr.f32.gmra.mxu0 %v1773
    %v1971 = vpop.f32.mrf.mxu0
    %v1972 = vadd.f32 0.0, %v1971
    %v1973 = vpop.f32.mrf.mxu0
    %1974 = vmatprep.mubr.f32.mxu0 0.0
    %1975 = vmatmul.mubr.f32.gmra.mxu0 %v1776
    %v1976 = vpop.f32.mrf.mxu0
    %v1977 = vadd.f32 0.0, %v1976
    %v1978 = vpop.f32.mrf.mxu0
    %1979 = vmatprep.mubr.f32.mxu0 0.0
    %1980 = vmatmul.mubr.f32.gmra.mxu0 %v1779
    %v1981 = vpop.f32.mrf.mxu0
    %v1982 = vadd.f32 0.0, %v1981
    %v1983 = vpop.f32.mrf.mxu0
    %1984 = vmatprep.mubr.f32.mxu0 0.0
    %1985 = vmatmul.mubr.f32.gmra.mxu0 %v1782
    %v1986 = vpop.f32.mrf.mxu0
    %v1987 = vadd.f32 0.0, %v1986
    %v1988 = vpop.f32.mrf.mxu0
    %1989 = vmatprep.mubr.f32.mxu0 0.0
    %1990 = vmatmul.mubr.f32.gmra.mxu0 %v1785
    %v1991 = vpop.f32.mrf.mxu0
    %v1992 = vadd.f32 0.0, %v1991
    %v1993 = vpop.f32.mrf.mxu0
    %1994 = vmatprep.mubr.f32.mxu0 0.0
    %1995 = vmatmul.mubr.f32.gmra.mxu0 %v1788
    %v1996 = vpop.f32.mrf.mxu0
    %v1997 = vadd.f32 0.0, %v1996
    %v1998 = vpop.f32.mrf.mxu0
    %1999 = vmatprep.mubr.f32.mxu0 0.0
    %2000 = vmatmul.mubr.f32.gmra.mxu0 %v1791
    %v2001 = vpop.f32.mrf.mxu0
    %v2002 = vadd.f32 0.0, %v2001
    %v2003 = vpop.f32.mrf.mxu0
    %2004 = vmatprep.mubr.f32.mxu0 0.0
    %2005 = vmatmul.mubr.f32.gmra.mxu0 %v1794
    %v2006 = vpop.f32.mrf.mxu0
    %v2007 = vadd.f32 0.0, %v2006
    %v2008 = vpop.f32.mrf.mxu0
    %2009 = vmatprep.mubr.f32.mxu0 0.0
    %2010 = vmatmul.mubr.f32.gmra.mxu0 %v1797
    %v2011 = vpop.f32.mrf.mxu0
    %v2012 = vadd.f32 0.0, %v2011
    %v2013 = vpop.f32.mrf.mxu0
    %2014 = vmatprep.mubr.f32.mxu0 0.0
    %2015 = vmatmul.mubr.f32.gmra.mxu0 %v1800
    %v2016 = vpop.f32.mrf.mxu0
    %v2017 = vadd.f32 0.0, %v2016
    %v2018 = vpop.f32.mrf.mxu0
    %2019 = vmatprep.mubr.f32.mxu0 0.0
    %2020 = vmatmul.mubr.f32.gmra.mxu0 %v1803
    %v2021 = vpop.f32.mrf.mxu0
    %v2022 = vadd.f32 0.0, %v2021
    %v2023 = vpop.f32.mrf.mxu0
    %2024 = vmatprep.mubr.f32.mxu0 0.0
    %2025 = vmatmul.mubr.f32.gmra.mxu0 %v1806
    %v2026 = vpop.f32.mrf.mxu0
    %v2027 = vadd.f32 0.0, %v2026
    %v2028 = vpop.f32.mrf.mxu0
    %2029 = vmatprep.mubr.f32.mxu0 0.0
    %2030 = vmatmul.mubr.f32.gmra.mxu0 %v1809
    %v2031 = vpop.f32.mrf.mxu0
    %v2032 = vadd.f32 0.0, %v2031
    %v2033 = vpop.f32.mrf.mxu0
    %2034 = vdwg.mxu0
    %v2035 = vmul.f32 %v1887, 0.1118034
    %v2036 = vmul.f32 %v1892, 0.1118034
    %v2037 = vmul.f32 %v1897, 0.1118034
    %v2038 = vmul.f32 %v1902, 0.1118034
    %v2039 = vmul.f32 %v1907, 0.1118034
    %v2040 = vmul.f32 %v1912, 0.1118034
    %v2041 = vmul.f32 %v1917, 0.1118034
    %v2042 = vmul.f32 %v1922, 0.1118034
    %v2043 = vmul.f32 %v1927, 0.1118034
    %v2044 = vmul.f32 %v1932, 0.1118034
    %v2045 = vmul.f32 %v1937, 0.1118034
    %v2046 = vmul.f32 %v1942, 0.1118034
    %v2047 = vmul.f32 %v1947, 0.1118034
    %v2048 = vmul.f32 %v1952, 0.1118034
    %v2049 = vmul.f32 %v1957, 0.1118034
    %v2050 = vmul.f32 %v1962, 0.1118034
    %v2051 = vmul.f32 %v1967, 0.1118034
    %v2052 = vmul.f32 %v1972, 0.1118034
    %v2053 = vmul.f32 %v1977, 0.1118034
    %v2054 = vmul.f32 %v1982, 0.1118034
    %v2055 = vmul.f32 %v1987, 0.1118034
    %v2056 = vmul.f32 %v1992, 0.1118034
    %v2057 = vmul.f32 %v1997, 0.1118034
    %v2058 = vmul.f32 %v2002, 0.1118034
    %v2059 = vmul.f32 %v2007, 0.1118034
    %v2060 = vmul.f32 %v2012, 0.1118034
    %v2061 = vmul.f32 %v2017, 0.1118034
    %v2062 = vmul.f32 %v2022, 0.1118034
    %v2063 = vmul.f32 %v2027, 0.1118034
    %v2064 = vmul.f32 %v2032, 0.1118034
    %v2065 = vld [vmem:[%s53] sm:$0xff]
    %v2066 = vld [vmem:[%s53 + $0x8] sm:$0xff]
    %v2067 = vld [vmem:[%s53 + $0x10] sm:$0xff]
    %v2068 = vld [vmem:[%s53 + $0x18] sm:$0xff]
    %v2069 = vld [vmem:[%s53 + $0x20] sm:$0xff]
    %v2070 = vld [vmem:[%s53 + $0x28] sm:$0xff]
    %v2071 = vld [vmem:[%s53 + $0x30] sm:$0xff]
    %v2072 = vld [vmem:[%s53 + $0x38] sm:$0xff]
    %v2073 = vld [vmem:[%s53 + $0x40] sm:$0xff]
    %v2074 = vld [vmem:[%s53 + $0x48] sm:$0xff]
    %v2075 = vld [vmem:[%s53 + $0x50] sm:$0xff]
    %v2076 = vld [vmem:[%s53 + $0x58] sm:$0xff]
    %v2077 = vld [vmem:[%s53 + $0x60] sm:$0xff]
    %v2078 = vld [vmem:[%s53 + $0x68] sm:$0xff]
    %v2079 = vld [vmem:[%s53 + $0x70] sm:$0xff]
    %v2080 = vld [vmem:[%s53 + $0x78] sm:$0xff]
    %v2081 = vld [vmem:[%s53 + $0x80] sm:$0xff]
    %v2082 = vld [vmem:[%s53 + $0x88] sm:$0xff]
    %v2083 = vld [vmem:[%s53 + $0x90] sm:$0xff]
    %v2084 = vld [vmem:[%s53 + $0x98] sm:$0xff]
    %v2085 = vld [vmem:[%s53 + $0xa0] sm:$0xff]
    %v2086 = vld [vmem:[%s53 + $0xa8] sm:$0xff]
    %v2087 = vld [vmem:[%s53 + $0xb0] sm:$0xff]
    %v2088 = vld [vmem:[%s53 + $0xb8] sm:$0xff]
    %v2089 = vld [vmem:[%s53 + $0xc0] sm:$0xff]
    %v2090 = vld [vmem:[%s53 + $0xc8] sm:$0xff]
    %v2091 = vld [vmem:[%s53 + $0xd0] sm:$0xff]
    %v2092 = vld [vmem:[%s53 + $0xd8] sm:$0xff]
    %v2093 = vld [vmem:[%s53 + $0xe0] sm:$0xff]
    %v2094 = vld [vmem:[%s53 + $0xe8] sm:$0xff]
    %v2095 = vadd.f32 %v2035, %v2065
    %v2096 = vadd.f32 %v2036, %v2066
    %v2097 = vadd.f32 %v2037, %v2067
    %v2098 = vadd.f32 %v2038, %v2068
    %v2099 = vadd.f32 %v2039, %v2069
    %v2100 = vadd.f32 %v2040, %v2070
    %v2101 = vadd.f32 %v2041, %v2071
    %v2102 = vadd.f32 %v2042, %v2072
    %v2103 = vadd.f32 %v2043, %v2073
    %v2104 = vadd.f32 %v2044, %v2074
    %v2105 = vadd.f32 %v2045, %v2075
    %v2106 = vadd.f32 %v2046, %v2076
    %v2107 = vadd.f32 %v2047, %v2077
    %v2108 = vadd.f32 %v2048, %v2078
    %v2109 = vadd.f32 %v2049, %v2079
    %v2110 = vadd.f32 %v2050, %v2080
    %v2111 = vadd.f32 %v2051, %v2081
    %v2112 = vadd.f32 %v2052, %v2082
    %v2113 = vadd.f32 %v2053, %v2083
    %v2114 = vadd.f32 %v2054, %v2084
    %v2115 = vadd.f32 %v2055, %v2085
    %v2116 = vadd.f32 %v2056, %v2086
    %v2117 = vadd.f32 %v2057, %v2087
    %v2118 = vadd.f32 %v2058, %v2088
    %v2119 = vadd.f32 %v2059, %v2089
    %v2120 = vadd.f32 %v2060, %v2090
    %v2121 = vadd.f32 %v2061, %v2091
    %v2122 = vadd.f32 %v2062, %v2092
    %v2123 = vadd.f32 %v2063, %v2093
    %v2124 = vadd.f32 %v2064, %v2094
    %vm2125 = vcmask 195584
    %v2126 = vsel %vm2125, %v2095, -inf
    %2127 = vmax.xlane.f32.xlu0 %v2126
    %v2128 = vpop.xlane.xlu0 %2127
    %v2129 = vsel %vm2125, %v2096, -inf
    %2130 = vmax.xlane.f32.xlu0 %v2129
    %v2131 = vpop.xlane.xlu0 %2130
    %v2132 = vsel %vm2125, %v2097, -inf
    %2133 = vmax.xlane.f32.xlu0 %v2132
    %v2134 = vpop.xlane.xlu0 %2133
    %v2135 = vsel %vm2125, %v2098, -inf
    %2136 = vmax.xlane.f32.xlu0 %v2135
    %v2137 = vpop.xlane.xlu0 %2136
    %v2138 = vsel %vm2125, %v2099, -inf
    %2139 = vmax.xlane.f32.xlu0 %v2138
    %v2140 = vpop.xlane.xlu0 %2139
    %v2141 = vsel %vm2125, %v2100, -inf
    %2142 = vmax.xlane.f32.xlu0 %v2141
    %v2143 = vpop.xlane.xlu0 %2142
    %v2144 = vsel %vm2125, %v2101, -inf
    %2145 = vmax.xlane.f32.xlu0 %v2144
    %v2146 = vpop.xlane.xlu0 %2145
    %v2147 = vsel %vm2125, %v2102, -inf
    %2148 = vmax.xlane.f32.xlu0 %v2147
    %v2149 = vpop.xlane.xlu0 %2148
    %v2150 = vsel %vm2125, %v2103, -inf
    %2151 = vmax.xlane.f32.xlu0 %v2150
    %v2152 = vpop.xlane.xlu0 %2151
    %v2153 = vsel %vm2125, %v2104, -inf
    %2154 = vmax.xlane.f32.xlu0 %v2153
    %v2155 = vpop.xlane.xlu0 %2154
    %v2156 = vsel %vm2125, %v2105, -inf
    %2157 = vmax.xlane.f32.xlu0 %v2156
    %v2158 = vpop.xlane.xlu0 %2157
    %v2159 = vsel %vm2125, %v2106, -inf
    %2160 = vmax.xlane.f32.xlu0 %v2159
    %v2161 = vpop.xlane.xlu0 %2160
    %v2162 = vsel %vm2125, %v2107, -inf
    %2163 = vmax.xlane.f32.xlu0 %v2162
    %v2164 = vpop.xlane.xlu0 %2163
    %v2165 = vsel %vm2125, %v2108, -inf
    %2166 = vmax.xlane.f32.xlu0 %v2165
    %v2167 = vpop.xlane.xlu0 %2166
    %v2168 = vsel %vm2125, %v2109, -inf
    %2169 = vmax.xlane.f32.xlu0 %v2168
    %v2170 = vpop.xlane.xlu0 %2169
    %v2171 = vsel %vm2125, %v2110, -inf
    %2172 = vmax.xlane.f32.xlu0 %v2171
    %v2173 = vpop.xlane.xlu0 %2172
    %v2174 = vsel %vm2125, %v2111, -inf
    %2175 = vmax.xlane.f32.xlu0 %v2174
    %v2176 = vpop.xlane.xlu0 %2175
    %v2177 = vsel %vm2125, %v2112, -inf
    %2178 = vmax.xlane.f32.xlu0 %v2177
    %v2179 = vpop.xlane.xlu0 %2178
    %v2180 = vsel %vm2125, %v2113, -inf
    %2181 = vmax.xlane.f32.xlu0 %v2180
    %v2182 = vpop.xlane.xlu0 %2181
    %v2183 = vsel %vm2125, %v2114, -inf
    %2184 = vmax.xlane.f32.xlu0 %v2183
    %v2185 = vpop.xlane.xlu0 %2184
    %v2186 = vsel %vm2125, %v2115, -inf
    %2187 = vmax.xlane.f32.xlu0 %v2186
    %v2188 = vpop.xlane.xlu0 %2187
    %v2189 = vsel %vm2125, %v2116, -inf
    %2190 = vmax.xlane.f32.xlu0 %v2189
    %v2191 = vpop.xlane.xlu0 %2190
    %v2192 = vsel %vm2125, %v2117, -inf
    %2193 = vmax.xlane.f32.xlu0 %v2192
    %v2194 = vpop.xlane.xlu0 %2193
    %v2195 = vsel %vm2125, %v2118, -inf
    %2196 = vmax.xlane.f32.xlu0 %v2195
    %v2197 = vpop.xlane.xlu0 %2196
    %v2198 = vsel %vm2125, %v2119, -inf
    %2199 = vmax.xlane.f32.xlu0 %v2198
    %v2200 = vpop.xlane.xlu0 %2199
    %v2201 = vsel %vm2125, %v2120, -inf
    %2202 = vmax.xlane.f32.xlu0 %v2201
    %v2203 = vpop.xlane.xlu0 %2202
    %v2204 = vsel %vm2125, %v2121, -inf
    %2205 = vmax.xlane.f32.xlu0 %v2204
    %v2206 = vpop.xlane.xlu0 %2205
    %v2207 = vsel %vm2125, %v2122, -inf
    %2208 = vmax.xlane.f32.xlu0 %v2207
    %v2209 = vpop.xlane.xlu0 %2208
    %v2210 = vsel %vm2125, %v2123, -inf
    %2211 = vmax.xlane.f32.xlu0 %v2210
    %v2212 = vpop.xlane.xlu0 %2211
    %v2213 = vsel %vm2125, %v2124, -inf
    %2214 = vmax.xlane.f32.xlu0 %v2213
    %v2215 = vpop.xlane.xlu0 %2214
    %v2216 = vsub.f32 %v2095, %v2128
    %v2217 = vsub.f32 %v2096, %v2131
    %v2218 = vsub.f32 %v2097, %v2134
    %v2219 = vsub.f32 %v2098, %v2137
    %v2220 = vsub.f32 %v2099, %v2140
    %v2221 = vsub.f32 %v2100, %v2143
    %v2222 = vsub.f32 %v2101, %v2146
    %v2223 = vsub.f32 %v2102, %v2149
    %v2224 = vsub.f32 %v2103, %v2152
    %v2225 = vsub.f32 %v2104, %v2155
    %v2226 = vsub.f32 %v2105, %v2158
    %v2227 = vsub.f32 %v2106, %v2161
    %v2228 = vsub.f32 %v2107, %v2164
    %v2229 = vsub.f32 %v2108, %v2167
    %v2230 = vsub.f32 %v2109, %v2170
    %v2231 = vsub.f32 %v2110, %v2173
    %v2232 = vsub.f32 %v2111, %v2176
    %v2233 = vsub.f32 %v2112, %v2179
    %v2234 = vsub.f32 %v2113, %v2182
    %v2235 = vsub.f32 %v2114, %v2185
    %v2236 = vsub.f32 %v2115, %v2188
    %v2237 = vsub.f32 %v2116, %v2191
    %v2238 = vsub.f32 %v2117, %v2194
    %v2239 = vsub.f32 %v2118, %v2197
    %v2240 = vsub.f32 %v2119, %v2200
    %v2241 = vsub.f32 %v2120, %v2203
    %v2242 = vsub.f32 %v2121, %v2206
    %v2243 = vsub.f32 %v2122, %v2209
    %v2244 = vsub.f32 %v2123, %v2212
    %v2245 = vsub.f32 %v2124, %v2215
    %v2246 = vmul.f32 %v2216, 1.442695
    %v2247 = vpow.pop %v2246
    %v2248 = vmul.f32 %v2217, 1.442695
    %v2249 = vpow.pop %v2248
    %v2250 = vmul.f32 %v2218, 1.442695
    %v2251 = vpow.pop %v2250
    %v2252 = vmul.f32 %v2219, 1.442695
    %v2253 = vpow.pop %v2252
    %v2254 = vmul.f32 %v2220, 1.442695
    %v2255 = vpow.pop %v2254
    %v2256 = vmul.f32 %v2221, 1.442695
    %v2257 = vpow.pop %v2256
    %v2258 = vmul.f32 %v2222, 1.442695
    %v2259 = vpow.pop %v2258
    %v2260 = vmul.f32 %v2223, 1.442695
    %v2261 = vpow.pop %v2260
    %v2262 = vmul.f32 %v2224, 1.442695
    %v2263 = vpow.pop %v2262
    %v2264 = vmul.f32 %v2225, 1.442695
    %v2265 = vpow.pop %v2264
    %v2266 = vmul.f32 %v2226, 1.442695
    %v2267 = vpow.pop %v2266
    %v2268 = vmul.f32 %v2227, 1.442695
    %v2269 = vpow.pop %v2268
    %v2270 = vmul.f32 %v2228, 1.442695
    %v2271 = vpow.pop %v2270
    %v2272 = vmul.f32 %v2229, 1.442695
    %v2273 = vpow.pop %v2272
    %v2274 = vmul.f32 %v2230, 1.442695
    %v2275 = vpow.pop %v2274
    %v2276 = vmul.f32 %v2231, 1.442695
    %v2277 = vpow.pop %v2276
    %v2278 = vmul.f32 %v2232, 1.442695
    %v2279 = vpow.pop %v2278
    %v2280 = vmul.f32 %v2233, 1.442695
    %v2281 = vpow.pop %v2280
    %v2282 = vmul.f32 %v2234, 1.442695
    %v2283 = vpow.pop %v2282
    %v2284 = vmul.f32 %v2235, 1.442695
    %v2285 = vpow.pop %v2284
    %v2286 = vmul.f32 %v2236, 1.442695
    %v2287 = vpow.pop %v2286
    %v2288 = vmul.f32 %v2237, 1.442695
    %v2289 = vpow.pop %v2288
    %v2290 = vmul.f32 %v2238, 1.442695
    %v2291 = vpow.pop %v2290
    %v2292 = vmul.f32 %v2239, 1.442695
    %v2293 = vpow.pop %v2292
    %v2294 = vmul.f32 %v2240, 1.442695
    %v2295 = vpow.pop %v2294
    %v2296 = vmul.f32 %v2241, 1.442695
    %v2297 = vpow.pop %v2296
    %v2298 = vmul.f32 %v2242, 1.442695
    %v2299 = vpow.pop %v2298
    %v2300 = vmul.f32 %v2243, 1.442695
    %v2301 = vpow.pop %v2300
    %v2302 = vmul.f32 %v2244, 1.442695
    %v2303 = vpow.pop %v2302
    %v2304 = vmul.f32 %v2245, 1.442695
    %v2305 = vpow.pop %v2304
    %v2306 = vsel %vm2125, %v2247, 0.0
    %2307 = vadd.xlane.f32.xlu0 %v2306
    %v2308 = vpop.xlane.xlu0 %2307
    %v2309 = vsel %vm2125, %v2249, 0.0
    %2310 = vadd.xlane.f32.xlu0 %v2309
    %v2311 = vpop.xlane.xlu0 %2310
    %v2312 = vsel %vm2125, %v2251, 0.0
    %2313 = vadd.xlane.f32.xlu0 %v2312
    %v2314 = vpop.xlane.xlu0 %2313
    %v2315 = vsel %vm2125, %v2253, 0.0
    %2316 = vadd.xlane.f32.xlu0 %v2315
    %v2317 = vpop.xlane.xlu0 %2316
    %v2318 = vsel %vm2125, %v2255, 0.0
    %2319 = vadd.xlane.f32.xlu0 %v2318
    %v2320 = vpop.xlane.xlu0 %2319
    %v2321 = vsel %vm2125, %v2257, 0.0
    %2322 = vadd.xlane.f32.xlu0 %v2321
    %v2323 = vpop.xlane.xlu0 %2322
    %v2324 = vsel %vm2125, %v2259, 0.0
    %2325 = vadd.xlane.f32.xlu0 %v2324
    %v2326 = vpop.xlane.xlu0 %2325
    %v2327 = vsel %vm2125, %v2261, 0.0
    %2328 = vadd.xlane.f32.xlu0 %v2327
    %v2329 = vpop.xlane.xlu0 %2328
    %v2330 = vsel %vm2125, %v2263, 0.0
    %2331 = vadd.xlane.f32.xlu0 %v2330
    %v2332 = vpop.xlane.xlu0 %2331
    %v2333 = vsel %vm2125, %v2265, 0.0
    %2334 = vadd.xlane.f32.xlu0 %v2333
    %v2335 = vpop.xlane.xlu0 %2334
    %v2336 = vsel %vm2125, %v2267, 0.0
    %2337 = vadd.xlane.f32.xlu0 %v2336
    %v2338 = vpop.xlane.xlu0 %2337
    %v2339 = vsel %vm2125, %v2269, 0.0
    %2340 = vadd.xlane.f32.xlu0 %v2339
    %v2341 = vpop.xlane.xlu0 %2340
    %v2342 = vsel %vm2125, %v2271, 0.0
    %2343 = vadd.xlane.f32.xlu0 %v2342
    %v2344 = vpop.xlane.xlu0 %2343
    %v2345 = vsel %vm2125, %v2273, 0.0
    %2346 = vadd.xlane.f32.xlu0 %v2345
    %v2347 = vpop.xlane.xlu0 %2346
    %v2348 = vsel %vm2125, %v2275, 0.0
    %2349 = vadd.xlane.f32.xlu0 %v2348
    %v2350 = vpop.xlane.xlu0 %2349
    %v2351 = vsel %vm2125, %v2277, 0.0
    %2352 = vadd.xlane.f32.xlu0 %v2351
    %v2353 = vpop.xlane.xlu0 %2352
    %v2354 = vsel %vm2125, %v2279, 0.0
    %2355 = vadd.xlane.f32.xlu0 %v2354
    %v2356 = vpop.xlane.xlu0 %2355
    %v2357 = vsel %vm2125, %v2281, 0.0
    %2358 = vadd.xlane.f32.xlu0 %v2357
    %v2359 = vpop.xlane.xlu0 %2358
    %v2360 = vsel %vm2125, %v2283, 0.0
    %2361 = vadd.xlane.f32.xlu0 %v2360
    %v2362 = vpop.xlane.xlu0 %2361
    %v2363 = vsel %vm2125, %v2285, 0.0
    %2364 = vadd.xlane.f32.xlu0 %v2363
    %v2365 = vpop.xlane.xlu0 %2364
    %v2366 = vsel %vm2125, %v2287, 0.0
    %2367 = vadd.xlane.f32.xlu0 %v2366
    %v2368 = vpop.xlane.xlu0 %2367
    %v2369 = vsel %vm2125, %v2289, 0.0
    %2370 = vadd.xlane.f32.xlu0 %v2369
    %v2371 = vpop.xlane.xlu0 %2370
    %v2372 = vsel %vm2125, %v2291, 0.0
    %2373 = vadd.xlane.f32.xlu0 %v2372
    %v2374 = vpop.xlane.xlu0 %2373
    %v2375 = vsel %vm2125, %v2293, 0.0
    %2376 = vadd.xlane.f32.xlu0 %v2375
    %v2377 = vpop.xlane.xlu0 %2376
    %v2378 = vsel %vm2125, %v2295, 0.0
    %2379 = vadd.xlane.f32.xlu0 %v2378
    %v2380 = vpop.xlane.xlu0 %2379
    %v2381 = vsel %vm2125, %v2297, 0.0
    %2382 = vadd.xlane.f32.xlu0 %v2381
    %v2383 = vpop.xlane.xlu0 %2382
    %v2384 = vsel %vm2125, %v2299, 0.0
    %2385 = vadd.xlane.f32.xlu0 %v2384
    %v2386 = vpop.xlane.xlu0 %2385
    %v2387 = vsel %vm2125, %v2301, 0.0
    %2388 = vadd.xlane.f32.xlu0 %v2387
    %v2389 = vpop.xlane.xlu0 %2388
    %v2390 = vsel %vm2125, %v2303, 0.0
    %2391 = vadd.xlane.f32.xlu0 %v2390
    %v2392 = vpop.xlane.xlu0 %2391
    %v2393 = vsel %vm2125, %v2305, 0.0
    %2394 = vadd.xlane.f32.xlu0 %v2393
    %v2395 = vpop.xlane.xlu0 %2394
    %v2396 = vrcp.pop %v2308
    %v2397 = vmul.f32 %v2247, %v2396
    %v2398 = vrcp.pop %v2311
    %v2399 = vmul.f32 %v2249, %v2398
    %v2400 = vrcp.pop %v2314
    %v2401 = vmul.f32 %v2251, %v2400
    %v2402 = vrcp.pop %v2317
    %v2403 = vmul.f32 %v2253, %v2402
    %v2404 = vrcp.pop %v2320
    %v2405 = vmul.f32 %v2255, %v2404
    %v2406 = vrcp.pop %v2323
    %v2407 = vmul.f32 %v2257, %v2406
    %v2408 = vrcp.pop %v2326
    %v2409 = vmul.f32 %v2259, %v2408
    %v2410 = vrcp.pop %v2329
    %v2411 = vmul.f32 %v2261, %v2410
    %v2412 = vrcp.pop %v2332
    %v2413 = vmul.f32 %v2263, %v2412
    %v2414 = vrcp.pop %v2335
    %v2415 = vmul.f32 %v2265, %v2414
    %v2416 = vrcp.pop %v2338
    %v2417 = vmul.f32 %v2267, %v2416
    %v2418 = vrcp.pop %v2341
    %v2419 = vmul.f32 %v2269, %v2418
    %v2420 = vrcp.pop %v2344
    %v2421 = vmul.f32 %v2271, %v2420
    %v2422 = vrcp.pop %v2347
    %v2423 = vmul.f32 %v2273, %v2422
    %v2424 = vrcp.pop %v2350
    %v2425 = vmul.f32 %v2275, %v2424
    %v2426 = vrcp.pop %v2353
    %v2427 = vmul.f32 %v2277, %v2426
    %v2428 = vrcp.pop %v2356
    %v2429 = vmul.f32 %v2279, %v2428
    %v2430 = vrcp.pop %v2359
    %v2431 = vmul.f32 %v2281, %v2430
    %v2432 = vrcp.pop %v2362
    %v2433 = vmul.f32 %v2283, %v2432
    %v2434 = vrcp.pop %v2365
    %v2435 = vmul.f32 %v2285, %v2434
    %v2436 = vrcp.pop %v2368
    %v2437 = vmul.f32 %v2287, %v2436
    %v2438 = vrcp.pop %v2371
    %v2439 = vmul.f32 %v2289, %v2438
    %v2440 = vrcp.pop %v2374
    %v2441 = vmul.f32 %v2291, %v2440
    %v2442 = vrcp.pop %v2377
    %v2443 = vmul.f32 %v2293, %v2442
    %v2444 = vrcp.pop %v2380
    %v2445 = vmul.f32 %v2295, %v2444
    %v2446 = vrcp.pop %v2383
    %v2447 = vmul.f32 %v2297, %v2446
    %v2448 = vrcp.pop %v2386
    %v2449 = vmul.f32 %v2299, %v2448
    %v2450 = vrcp.pop %v2389
    %v2451 = vmul.f32 %v2301, %v2450
    %v2452 = vrcp.pop %v2392
    %v2453 = vmul.f32 %v2303, %v2452
    %v2454 = vrcp.pop %v2395
    %v2455 = vmul.f32 %v2305, %v2454
    %v2457 = vsel %vm2125, %v2397, 0
    %v2460 = vsel %vm2125, %v2399, 0
    %v2463 = vsel %vm2125, %v2401, 0
    %v2466 = vsel %vm2125, %v2403, 0
    %v2469 = vsel %vm2125, %v2405, 0
    %v2472 = vsel %vm2125, %v2407, 0
    %v2475 = vsel %vm2125, %v2409, 0
    %v2478 = vsel %vm2125, %v2411, 0
    %v2481 = vsel %vm2125, %v2413, 0
    %v2484 = vsel %vm2125, %v2415, 0
    %v2487 = vsel %vm2125, %v2417, 0
    %v2490 = vsel %vm2125, %v2419, 0
    %v2493 = vsel %vm2125, %v2421, 0
    %v2496 = vsel %vm2125, %v2423, 0
    %v2499 = vsel %vm2125, %v2425, 0
    %v2502 = vsel %vm2125, %v2427, 0
    %v2505 = vsel %vm2125, %v2429, 0
    %v2508 = vsel %vm2125, %v2431, 0
    %v2511 = vsel %vm2125, %v2433, 0
    %v2514 = vsel %vm2125, %v2435, 0
    %v2517 = vsel %vm2125, %v2437, 0
    %v2520 = vsel %vm2125, %v2439, 0
    %v2523 = vsel %vm2125, %v2441, 0
    %v2526 = vsel %vm2125, %v2443, 0
    %v2529 = vsel %vm2125, %v2445, 0
    %v2532 = vsel %vm2125, %v2447, 0
    %v2535 = vsel %vm2125, %v2449, 0
    %v2538 = vsel %vm2125, %v2451, 0
    %v2541 = vsel %vm2125, %v2453, 0
    %v2544 = vsel %vm2125, %v2455, 0
    %2546 = vmatprep.subr.mxu0 0.0
    %2547 = vmatpush1.msra.mxu0 0.0
    %2548 = vmatprep.subr.mxu0 0.0
    %2549 = vmatpush1.msra.mxu0 0.0
    %2550 = vmatprep.subr.mxu0 0.0
    %2551 = vmatpush1.msra.mxu0 0.0
    %2552 = vmatprep.subr.mxu0 0.0
    %2553 = vmatpush1.msra.mxu0 0.0
    %2554 = vmatprep.subr.mxu0 0.0
    %2555 = vmatpush1.msra.mxu0 0.0
    %2556 = vmatprep.subr.mxu0 0.0
    %2557 = vmatpush1.msra.mxu0 0.0
    %2558 = vmatprep.subr.mxu0 0.0
    %2559 = vmatpush1.msra.mxu0 0.0
    %2560 = vmatprep.subr.mxu0 0.0
    %2561 = vmatpush1.msra.mxu0 0.0
    %2562 = vmatprep.subr.mxu0 0.0
    %2563 = vmatpush1.msra.mxu0 0.0
    %2564 = vmatprep.subr.mxu0 0.0
    %2565 = vmatpush1.msra.mxu0 0.0
    %2566 = vmatprep.subr.mxu0 0.0
    %2567 = vmatpush1.msra.mxu0 0.0
    %2568 = vmatprep.subr.mxu0 0.0
    %2569 = vmatpush1.msra.mxu0 0.0
    %2570 = vmatprep.subr.mxu0 0.0
    %2571 = vmatpush1.msra.mxu0 0.0
    %2572 = vmatprep.subr.mxu0 0.0
    %2573 = vmatpush1.msra.mxu0 %v1658
    %2574 = vmatprep.subr.mxu0 0.0
    %2575 = vmatpush1.msra.mxu0 %v1653
    %2576 = vmatprep.subr.mxu0 0.0
    %2577 = vmatpush1.msra.mxu0 %v1648
    %2578 = vmatprep.subr.mxu0 0.0
    %2579 = vmatpush2.msra.mxu0 0.0
    %2580 = vmatprep.subr.mxu0 0.0
    %2581 = vmatpush2.msra.mxu0 0.0
    %2582 = vmatprep.subr.mxu0 0.0
    %2583 = vmatpush2.msra.mxu0 0.0
    %2584 = vmatprep.subr.mxu0 0.0
    %2585 = vmatpush2.msra.mxu0 0.0
    %2586 = vmatprep.subr.mxu0 0.0
    %2587 = vmatpush2.msra.mxu0 0.0
    %2588 = vmatprep.subr.mxu0 0.0
    %2589 = vmatpush2.msra.mxu0 0.0
    %2590 = vmatprep.subr.mxu0 0.0
    %2591 = vmatpush2.msra.mxu0 0.0
    %2592 = vmatprep.subr.mxu0 0.0
    %2593 = vmatpush2.msra.mxu0 0.0
    %2594 = vmatprep.subr.mxu0 0.0
    %2595 = vmatpush2.msra.mxu0 0.0
    %2596 = vmatprep.subr.mxu0 0.0
    %2597 = vmatpush2.msra.mxu0 0.0
    %2598 = vmatprep.subr.mxu0 0.0
    %2599 = vmatpush2.msra.mxu0 0.0
    %2600 = vmatprep.subr.mxu0 0.0
    %2601 = vmatpush2.msra.mxu0 0.0
    %2602 = vmatprep.subr.mxu0 0.0
    %2603 = vmatpush2.msra.mxu0 0.0
    %2604 = vmatprep.subr.mxu0 0.0
    %2605 = vmatpush2.msra.mxu0 0.0
    %2606 = vmatprep.subr.mxu0 0.0
    %2607 = vmatpush2.msra.mxu0 0.0
    %2608 = vmatprep.subr.mxu0 0.0
    %2609 = vmatpush2.msra.mxu0 0.0
    %2610 = vmatprep.mubr.f32.mxu0 0.0
    %2611 = vmatmul.mubr.f32.gmra.mxu0 %v2457
    %v2612 = vpop.f32.mrf.mxu0
    %v2613 = vadd.f32 0.0, %v2612
    %v2614 = vpop.f32.mrf.mxu0
    %2615 = vmatprep.mubr.f32.mxu0 0.0
    %2616 = vmatmul.mubr.f32.gmra.mxu0 %v2460
    %v2617 = vpop.f32.mrf.mxu0
    %v2618 = vadd.f32 0.0, %v2617
    %v2619 = vpop.f32.mrf.mxu0
    %2620 = vmatprep.mubr.f32.mxu0 0.0
    %2621 = vmatmul.mubr.f32.gmra.mxu0 %v2463
    %v2622 = vpop.f32.mrf.mxu0
    %v2623 = vadd.f32 0.0, %v2622
    %v2624 = vpop.f32.mrf.mxu0
    %2625 = vmatprep.mubr.f32.mxu0 0.0
    %2626 = vmatmul.mubr.f32.gmra.mxu0 %v2466
    %v2627 = vpop.f32.mrf.mxu0
    %v2628 = vadd.f32 0.0, %v2627
    %v2629 = vpop.f32.mrf.mxu0
    %2630 = vmatprep.mubr.f32.mxu0 0.0
    %2631 = vmatmul.mubr.f32.gmra.mxu0 %v2469
    %v2632 = vpop.f32.mrf.mxu0
    %v2633 = vadd.f32 0.0, %v2632
    %v2634 = vpop.f32.mrf.mxu0
    %2635 = vmatprep.mubr.f32.mxu0 0.0
    %2636 = vmatmul.mubr.f32.gmra.mxu0 %v2472
    %v2637 = vpop.f32.mrf.mxu0
    %v2638 = vadd.f32 0.0, %v2637
    %v2639 = vpop.f32.mrf.mxu0
    %2640 = vmatprep.mubr.f32.mxu0 0.0
    %2641 = vmatmul.mubr.f32.gmra.mxu0 %v2475
    %v2642 = vpop.f32.mrf.mxu0
    %v2643 = vadd.f32 0.0, %v2642
    %v2644 = vpop.f32.mrf.mxu0
    %2645 = vmatprep.mubr.f32.mxu0 0.0
    %2646 = vmatmul.mubr.f32.gmra.mxu0 %v2478
    %v2647 = vpop.f32.mrf.mxu0
    %v2648 = vadd.f32 0.0, %v2647
    %v2649 = vpop.f32.mrf.mxu0
    %2650 = vmatprep.mubr.f32.mxu0 0.0
    %2651 = vmatmul.mubr.f32.gmra.mxu0 %v2481
    %v2652 = vpop.f32.mrf.mxu0
    %v2653 = vadd.f32 0.0, %v2652
    %v2654 = vpop.f32.mrf.mxu0
    %2655 = vmatprep.mubr.f32.mxu0 0.0
    %2656 = vmatmul.mubr.f32.gmra.mxu0 %v2484
    %v2657 = vpop.f32.mrf.mxu0
    %v2658 = vadd.f32 0.0, %v2657
    %v2659 = vpop.f32.mrf.mxu0
    %2660 = vmatprep.mubr.f32.mxu0 0.0
    %2661 = vmatmul.mubr.f32.gmra.mxu0 %v2487
    %v2662 = vpop.f32.mrf.mxu0
    %v2663 = vadd.f32 0.0, %v2662
    %v2664 = vpop.f32.mrf.mxu0
    %2665 = vmatprep.mubr.f32.mxu0 0.0
    %2666 = vmatmul.mubr.f32.gmra.mxu0 %v2490
    %v2667 = vpop.f32.mrf.mxu0
    %v2668 = vadd.f32 0.0, %v2667
    %v2669 = vpop.f32.mrf.mxu0
    %2670 = vmatprep.mubr.f32.mxu0 0.0
    %2671 = vmatmul.mubr.f32.gmra.mxu0 %v2493
    %v2672 = vpop.f32.mrf.mxu0
    %v2673 = vadd.f32 0.0, %v2672
    %v2674 = vpop.f32.mrf.mxu0
    %2675 = vmatprep.mubr.f32.mxu0 0.0
    %2676 = vmatmul.mubr.f32.gmra.mxu0 %v2496
    %v2677 = vpop.f32.mrf.mxu0
    %v2678 = vadd.f32 0.0, %v2677
    %v2679 = vpop.f32.mrf.mxu0
    %2680 = vmatprep.mubr.f32.mxu0 0.0
    %2681 = vmatmul.mubr.f32.gmra.mxu0 %v2499
    %v2682 = vpop.f32.mrf.mxu0
    %v2683 = vadd.f32 0.0, %v2682
    %v2684 = vpop.f32.mrf.mxu0
    %2685 = vmatprep.mubr.f32.mxu0 0.0
    %2686 = vmatmul.mubr.f32.gmra.mxu0 %v2502
    %v2687 = vpop.f32.mrf.mxu0
    %v2688 = vadd.f32 0.0, %v2687
    %v2689 = vpop.f32.mrf.mxu0
    %2690 = vmatprep.mubr.f32.mxu0 0.0
    %2691 = vmatmul.mubr.f32.gmra.mxu0 %v2505
    %v2692 = vpop.f32.mrf.mxu0
    %v2693 = vadd.f32 0.0, %v2692
    %v2694 = vpop.f32.mrf.mxu0
    %2695 = vmatprep.mubr.f32.mxu0 0.0
    %2696 = vmatmul.mubr.f32.gmra.mxu0 %v2508
    %v2697 = vpop.f32.mrf.mxu0
    %v2698 = vadd.f32 0.0, %v2697
    %v2699 = vpop.f32.mrf.mxu0
    %2700 = vmatprep.mubr.f32.mxu0 0.0
    %2701 = vmatmul.mubr.f32.gmra.mxu0 %v2511
    %v2702 = vpop.f32.mrf.mxu0
    %v2703 = vadd.f32 0.0, %v2702
    %v2704 = vpop.f32.mrf.mxu0
    %2705 = vmatprep.mubr.f32.mxu0 0.0
    %2706 = vmatmul.mubr.f32.gmra.mxu0 %v2514
    %v2707 = vpop.f32.mrf.mxu0
    %v2708 = vadd.f32 0.0, %v2707
    %v2709 = vpop.f32.mrf.mxu0
    %2710 = vmatprep.mubr.f32.mxu0 0.0
    %2711 = vmatmul.mubr.f32.gmra.mxu0 %v2517
    %v2712 = vpop.f32.mrf.mxu0
    %v2713 = vadd.f32 0.0, %v2712
    %v2714 = vpop.f32.mrf.mxu0
    %2715 = vmatprep.mubr.f32.mxu0 0.0
    %2716 = vmatmul.mubr.f32.gmra.mxu0 %v2520
    %v2717 = vpop.f32.mrf.mxu0
    %v2718 = vadd.f32 0.0, %v2717
    %v2719 = vpop.f32.mrf.mxu0
    %2720 = vmatprep.mubr.f32.mxu0 0.0
    %2721 = vmatmul.mubr.f32.gmra.mxu0 %v2523
    %v2722 = vpop.f32.mrf.mxu0
    %v2723 = vadd.f32 0.0, %v2722
    %v2724 = vpop.f32.mrf.mxu0
    %2725 = vmatprep.mubr.f32.mxu0 0.0
    %2726 = vmatmul.mubr.f32.gmra.mxu0 %v2526
    %v2727 = vpop.f32.mrf.mxu0
    %v2728 = vadd.f32 0.0, %v2727
    %v2729 = vpop.f32.mrf.mxu0
    %2730 = vmatprep.mubr.f32.mxu0 0.0
    %2731 = vmatmul.mubr.f32.gmra.mxu0 %v2529
    %v2732 = vpop.f32.mrf.mxu0
    %v2733 = vadd.f32 0.0, %v2732
    %v2734 = vpop.f32.mrf.mxu0
    %2735 = vmatprep.mubr.f32.mxu0 0.0
    %2736 = vmatmul.mubr.f32.gmra.mxu0 %v2532
    %v2737 = vpop.f32.mrf.mxu0
    %v2738 = vadd.f32 0.0, %v2737
    %v2739 = vpop.f32.mrf.mxu0
    %2740 = vmatprep.mubr.f32.mxu0 0.0
    %2741 = vmatmul.mubr.f32.gmra.mxu0 %v2535
    %v2742 = vpop.f32.mrf.mxu0
    %v2743 = vadd.f32 0.0, %v2742
    %v2744 = vpop.f32.mrf.mxu0
    %2745 = vmatprep.mubr.f32.mxu0 0.0
    %2746 = vmatmul.mubr.f32.gmra.mxu0 %v2538
    %v2747 = vpop.f32.mrf.mxu0
    %v2748 = vadd.f32 0.0, %v2747
    %v2749 = vpop.f32.mrf.mxu0
    %2750 = vmatprep.mubr.f32.mxu0 0.0
    %2751 = vmatmul.mubr.f32.gmra.mxu0 %v2541
    %v2752 = vpop.f32.mrf.mxu0
    %v2753 = vadd.f32 0.0, %v2752
    %v2754 = vpop.f32.mrf.mxu0
    %2755 = vmatprep.mubr.f32.mxu0 0.0
    %2756 = vmatmul.mubr.f32.gmra.mxu0 %v2544
    %v2757 = vpop.f32.mrf.mxu0
    %v2758 = vadd.f32 0.0, %v2757
    %v2759 = vpop.f32.mrf.mxu0
    %2760 = vdwg.mxu0
    %v2761 = vmul.f32 %v2613, %v1661
    %v2762 = vmul.f32 %v2618, %v1662
    %v2763 = vmul.f32 %v2623, %v1663
    %v2764 = vmul.f32 %v2628, %v1664
    %v2765 = vmul.f32 %v2633, %v1665
    %v2766 = vmul.f32 %v2638, %v1666
    %v2767 = vmul.f32 %v2643, %v1667
    %v2768 = vmul.f32 %v2648, %v1668
    %v2769 = vmul.f32 %v2653, %v1669
    %v2770 = vmul.f32 %v2658, %v1670
    %v2771 = vmul.f32 %v2663, %v1671
    %v2772 = vmul.f32 %v2668, %v1672
    %v2773 = vmul.f32 %v2673, %v1673
    %v2774 = vmul.f32 %v2678, %v1674
    %v2775 = vmul.f32 %v2683, %v1675
    %v2776 = vmul.f32 %v2688, %v1676
    %v2777 = vmul.f32 %v2693, %v1677
    %v2778 = vmul.f32 %v2698, %v1678
    %v2779 = vmul.f32 %v2703, %v1679
    %v2780 = vmul.f32 %v2708, %v1680
    %v2781 = vmul.f32 %v2713, %v1681
    %v2782 = vmul.f32 %v2718, %v1682
    %v2783 = vmul.f32 %v2723, %v1683
    %v2784 = vmul.f32 %v2728, %v1684
    %v2785 = vmul.f32 %v2733, %v1685
    %v2786 = vmul.f32 %v2738, %v1686
    %v2787 = vmul.f32 %v2743, %v1687
    %v2788 = vmul.f32 %v2748, %v1688
    %v2789 = vmul.f32 %v2753, %v1689
    %v2790 = vmul.f32 %v2758, %v1690
    %v2791 = vadd.f32 %v2761, %v2764
    %v2792 = vadd.f32 %v2762, %v2765
    %v2793 = vadd.f32 %v2763, %v2766
    %v2794 = vadd.f32 %v2791, %v2767
    %v2795 = vadd.f32 %v2792, %v2768
    %v2796 = vadd.f32 %v2793, %v2769
    %v2797 = vadd.f32 %v2794, %v2770
    %v2798 = vadd.f32 %v2795, %v2771
    %v2799 = vadd.f32 %v2796, %v2772
    %v2800 = vadd.f32 %v2797, %v2773
    %v2801 = vadd.f32 %v2798, %v2774
    %v2802 = vadd.f32 %v2799, %v2775
    %v2803 = vadd.f32 %v2800, %v2776
    %v2804 = vadd.f32 %v2801, %v2777
    %v2805 = vadd.f32 %v2802, %v2778
    %v2806 = vadd.f32 %v2803, %v2779
    %v2807 = vadd.f32 %v2804, %v2780
    %v2808 = vadd.f32 %v2805, %v2781
    %v2809 = vadd.f32 %v2806, %v2782
    %v2810 = vadd.f32 %v2807, %v2783
    %v2811 = vadd.f32 %v2808, %v2784
    %v2812 = vadd.f32 %v2809, %v2785
    %v2813 = vadd.f32 %v2810, %v2786
    %v2814 = vadd.f32 %v2811, %v2787
    %v2815 = vadd.f32 %v2812, %v2788
    %v2816 = vadd.f32 %v2813, %v2789
    %v2817 = vadd.f32 %v2814, %v2790
    %v2818 = vld [vmem:[%s19] sm:$0xff]
    %v2819 = vld [vmem:[%s19 + $0x8] sm:$0xff]
    %v2820 = vld [vmem:[%s19 + $0x10] sm:$0xff]
    %v2821 = vld [vmem:[%s19 + $0x18] sm:$0xff]
    %v2822 = vld [vmem:[%s19 + $0x20] sm:$0xff]
    %v2823 = vld [vmem:[%s19 + $0x28] sm:$0xff]
    %v2824 = vld [vmem:[%s19 + $0x30] sm:$0xff]
    %v2825 = vld [vmem:[%s19 + $0x38] sm:$0xff]
    %v2826 = vld [vmem:[%s19 + $0x40] sm:$0xff]
    %v2827 = vld [vmem:[%s19 + $0x48] sm:$0xff]
    %v2828 = vld [vmem:[%s21] sm:$0x1]
    %v2830 = vlaneseq
    %v2831 = vshrl.u32 %v2830, 7
    %v2832 = vsub.s32 0, %v2831
    %v2833 = vrot.slane %v2828, %v2832
    %v2836 = vsel %vm1323, %v2815, 0
    %v2839 = vsel %vm1323, %v2816, 0
    %v2842 = vsel %vm1323, %v2817, 0
    %2844 = vmatprep.subr.mxu0 0.0
    %2845 = vmatpush1.msra.mxu0 0.0
    %2846 = vmatprep.subr.mxu0 0.0
    %2847 = vmatpush1.msra.mxu0 0.0
    %2848 = vmatprep.subr.mxu0 0.0
    %2849 = vmatpush1.msra.mxu0 0.0
    %2850 = vmatprep.subr.mxu0 0.0
    %2851 = vmatpush1.msra.mxu0 0.0
    %2852 = vmatprep.subr.mxu0 0.0
    %2853 = vmatpush1.msra.mxu0 0.0
    %2854 = vmatprep.subr.mxu0 0.0
    %2855 = vmatpush1.msra.mxu0 0.0
    %2856 = vmatprep.subr.mxu0 0.0
    %2857 = vmatpush1.msra.mxu0 %v2827
    %2858 = vmatprep.subr.mxu0 0.0
    %2859 = vmatpush1.msra.mxu0 %v2826
    %2860 = vmatprep.subr.mxu0 0.0
    %2861 = vmatpush1.msra.mxu0 %v2825
    %2862 = vmatprep.subr.mxu0 0.0
    %2863 = vmatpush1.msra.mxu0 %v2824
    %2864 = vmatprep.subr.mxu0 0.0
    %2865 = vmatpush1.msra.mxu0 %v2823
    %2866 = vmatprep.subr.mxu0 0.0
    %2867 = vmatpush1.msra.mxu0 %v2822
    %2868 = vmatprep.subr.mxu0 0.0
    %2869 = vmatpush1.msra.mxu0 %v2821
    %2870 = vmatprep.subr.mxu0 0.0
    %2871 = vmatpush1.msra.mxu0 %v2820
    %2872 = vmatprep.subr.mxu0 0.0
    %2873 = vmatpush1.msra.mxu0 %v2819
    %2874 = vmatprep.subr.mxu0 0.0
    %2875 = vmatpush1.msra.mxu0 %v2818
    %2876 = vmatprep.subr.mxu0 0.0
    %2877 = vmatpush2.msra.mxu0 0.0
    %2878 = vmatprep.subr.mxu0 0.0
    %2879 = vmatpush2.msra.mxu0 0.0
    %2880 = vmatprep.subr.mxu0 0.0
    %2881 = vmatpush2.msra.mxu0 0.0
    %2882 = vmatprep.subr.mxu0 0.0
    %2883 = vmatpush2.msra.mxu0 0.0
    %2884 = vmatprep.subr.mxu0 0.0
    %2885 = vmatpush2.msra.mxu0 0.0
    %2886 = vmatprep.subr.mxu0 0.0
    %2887 = vmatpush2.msra.mxu0 0.0
    %2888 = vmatprep.subr.mxu0 0.0
    %2889 = vmatpush2.msra.mxu0 0.0
    %2890 = vmatprep.subr.mxu0 0.0
    %2891 = vmatpush2.msra.mxu0 0.0
    %2892 = vmatprep.subr.mxu0 0.0
    %2893 = vmatpush2.msra.mxu0 0.0
    %2894 = vmatprep.subr.mxu0 0.0
    %2895 = vmatpush2.msra.mxu0 0.0
    %2896 = vmatprep.subr.mxu0 0.0
    %2897 = vmatpush2.msra.mxu0 0.0
    %2898 = vmatprep.subr.mxu0 0.0
    %2899 = vmatpush2.msra.mxu0 0.0
    %2900 = vmatprep.subr.mxu0 0.0
    %2901 = vmatpush2.msra.mxu0 0.0
    %2902 = vmatprep.subr.mxu0 0.0
    %2903 = vmatpush2.msra.mxu0 0.0
    %2904 = vmatprep.subr.mxu0 0.0
    %2905 = vmatpush2.msra.mxu0 0.0
    %2906 = vmatprep.subr.mxu0 0.0
    %2907 = vmatpush2.msra.mxu0 0.0
    %2908 = vmatprep.mubr.f32.mxu0 0.0
    %2909 = vmatmul.mubr.f32.gmra.mxu0 %v2836
    %v2910 = vpop.f32.mrf.mxu0
    %v2911 = vadd.f32 %v2833, %v2910
    %v2912 = vpop.f32.mrf.mxu0
    %2913 = vmatprep.mubr.f32.mxu0 0.0
    %2914 = vmatmul.mubr.f32.gmra.mxu0 %v2839
    %v2915 = vpop.f32.mrf.mxu0
    %v2916 = vadd.f32 %v2833, %v2915
    %v2917 = vpop.f32.mrf.mxu0
    %2918 = vmatprep.mubr.f32.mxu0 0.0
    %2919 = vmatmul.mubr.f32.gmra.mxu0 %v2842
    %v2920 = vpop.f32.mrf.mxu0
    %v2921 = vadd.f32 %v2833, %v2920
    %v2922 = vpop.f32.mrf.mxu0
    %2923 = vdwg.mxu0
    %v2924 = vadd.f32 %v1318, %v2911
    %v2925 = vadd.f32 %v1319, %v2916
    %v2926 = vadd.f32 %v1320, %v2921
    %v2927 = vld [vmem:[%s23] sm:$0x1]
    %v2928 = vld [vmem:[%s25] sm:$0x1]
    %v2929 = vsel %vm1323, %v2924, 0.0
    %2930 = vadd.xlane.f32.xlu0 %v2929
    %v2931 = vpop.xlane.xlu0 %2930
    %v2932 = vsel %vm1323, %v2925, 0.0
    %2933 = vadd.xlane.f32.xlu0 %v2932
    %v2934 = vpop.xlane.xlu0 %2933
    %v2935 = vsel %vm1323, %v2926, 0.0
    %2936 = vadd.xlane.f32.xlu0 %v2935
    %v2937 = vpop.xlane.xlu0 %2936
    %v2938 = vmul.f32 %v2931, %v1333
    %v2939 = vmul.f32 %v2934, %v1333
    %v2940 = vmul.f32 %v2937, %v1333
    %v2941 = vsub.f32 %v2924, %v2938
    %v2942 = vsub.f32 %v2925, %v2939
    %v2943 = vsub.f32 %v2926, %v2940
    %v2944 = vmul.f32 %v2941, %v2941
    %v2945 = vmul.f32 %v2942, %v2942
    %v2946 = vmul.f32 %v2943, %v2943
    %v2947 = vsel %vm1323, %v2944, 0.0
    %2948 = vadd.xlane.f32.xlu0 %v2947
    %v2949 = vpop.xlane.xlu0 %2948
    %v2950 = vsel %vm1323, %v2945, 0.0
    %2951 = vadd.xlane.f32.xlu0 %v2950
    %v2952 = vpop.xlane.xlu0 %2951
    %v2953 = vsel %vm1323, %v2946, 0.0
    %2954 = vadd.xlane.f32.xlu0 %v2953
    %v2955 = vpop.xlane.xlu0 %2954
    %v2956 = vmul.f32 %v2949, %v1333
    %v2957 = vmul.f32 %v2952, %v1333
    %v2958 = vmul.f32 %v2955, %v1333
    %v2959 = vadd.f32 %v2956, 1e-05
    %v2960 = vadd.f32 %v2957, 1e-05
    %v2961 = vadd.f32 %v2958, 1e-05
    %v2962 = vrsqrt.pop %v2959
    %v2963 = vrsqrt.pop %v2960
    %v2964 = vrsqrt.pop %v2961
    %v2965 = vmul.f32 %v2941, %v2962
    %v2966 = vmul.f32 %v2942, %v2963
    %v2967 = vmul.f32 %v2943, %v2964
    %v2969 = vlaneseq
    %v2970 = vshrl.u32 %v2969, 7
    %v2971 = vsub.s32 0, %v2970
    %v2972 = vrot.slane %v2927, %v2971
    %v2974 = vmul.f32 %v2965, %v2972
    %v2975 = vmul.f32 %v2966, %v2972
    %v2976 = vmul.f32 %v2967, %v2972
    %v2978 = vlaneseq
    %v2979 = vshrl.u32 %v2978, 7
    %v2980 = vsub.s32 0, %v2979
    %v2981 = vrot.slane %v2928, %v2980
    %v2983 = vadd.f32 %v2974, %v2981
    %v2984 = vadd.f32 %v2975, %v2981
    %v2985 = vadd.f32 %v2976, %v2981
    %v2986 = vld [vmem:[%s27] sm:$0xff]
    %v2987 = vld [vmem:[%s27 + $0x8] sm:$0xff]
    %v2988 = vld [vmem:[%s27 + $0x10] sm:$0xff]
    %v2989 = vld [vmem:[%s27 + $0x18] sm:$0xff]
    %v2990 = vld [vmem:[%s27 + $0x20] sm:$0xff]
    %v2991 = vld [vmem:[%s27 + $0x28] sm:$0xff]
    %v2992 = vld [vmem:[%s27 + $0x30] sm:$0xff]
    %v2993 = vld [vmem:[%s27 + $0x38] sm:$0xff]
    %v2994 = vld [vmem:[%s27 + $0x40] sm:$0xff]
    %v2995 = vld [vmem:[%s27 + $0x48] sm:$0xff]
    %v2996 = vld [vmem:[%s27 + $0x50] sm:$0xff]
    %v2997 = vld [vmem:[%s27 + $0x58] sm:$0xff]
    %v2998 = vld [vmem:[%s27 + $0x60] sm:$0xff]
    %v2999 = vld [vmem:[%s27 + $0x68] sm:$0xff]
    %v3000 = vld [vmem:[%s27 + $0x70] sm:$0xff]
    %v3001 = vld [vmem:[%s27 + $0x78] sm:$0xff]
    %v3002 = vld [vmem:[%s27 + $0x80] sm:$0xff]
    %v3003 = vld [vmem:[%s27 + $0x88] sm:$0xff]
    %v3004 = vld [vmem:[%s27 + $0x90] sm:$0xff]
    %v3005 = vld [vmem:[%s27 + $0x98] sm:$0xff]
    %v3006 = vld [vmem:[%s27 + $0xa0] sm:$0xff]
    %v3007 = vld [vmem:[%s27 + $0xa8] sm:$0xff]
    %v3008 = vld [vmem:[%s27 + $0xb0] sm:$0xff]
    %v3009 = vld [vmem:[%s27 + $0xb8] sm:$0xff]
    %v3010 = vld [vmem:[%s27 + $0xc0] sm:$0xff]
    %v3011 = vld [vmem:[%s27 + $0xc8] sm:$0xff]
    %v3012 = vld [vmem:[%s27 + $0xd0] sm:$0xff]
    %v3013 = vld [vmem:[%s27 + $0xd8] sm:$0xff]
    %v3014 = vld [vmem:[%s27 + $0xe0] sm:$0xff]
    %v3015 = vld [vmem:[%s27 + $0xe8] sm:$0xff]
    %v3016 = vld [vmem:[%s29] sm:$0x7]
    %v3018 = vlaneseq
    %v3019 = vshrl.u32 %v3018, 7
    %v3020 = vsub.s32 0, %v3019
    %v3021 = vrot.slane %v3016, %v3020
    %v3022 = vlaneseq
    %v3023 = vshrl.u32 %v3022, 7
    %v3024 = vsub.s32 1, %v3023
    %v3025 = vrot.slane %v3016, %v3024
    %v3026 = vlaneseq
    %v3027 = vshrl.u32 %v3026, 7
    %v3028 = vsub.s32 2, %v3027
    %v3029 = vrot.slane %v3016, %v3028
    %v3034 = vsel %vm1323, %v2983, 0
    %v3037 = vsel %vm1323, %v2984, 0
    %v3040 = vsel %vm1323, %v2985, 0
    %3042 = vmatprep.subr.mxu0 0.0
    %3043 = vmatpush1.msra.mxu0 0.0
    %3044 = vmatprep.subr.mxu0 0.0
    %3045 = vmatpush1.msra.mxu0 0.0
    %3046 = vmatprep.subr.mxu0 0.0
    %3047 = vmatpush1.msra.mxu0 0.0
    %3048 = vmatprep.subr.mxu0 0.0
    %3049 = vmatpush1.msra.mxu0 0.0
    %3050 = vmatprep.subr.mxu0 0.0
    %3051 = vmatpush1.msra.mxu0 0.0
    %3052 = vmatprep.subr.mxu0 0.0
    %3053 = vmatpush1.msra.mxu0 0.0
    %3054 = vmatprep.subr.mxu0 %v3014
    %3055 = vmatpush1.msra.mxu0 %v3013
    %3056 = vmatprep.subr.mxu0 %v3011
    %3057 = vmatpush1.msra.mxu0 %v3010
    %3058 = vmatprep.subr.mxu0 %v3008
    %3059 = vmatpush1.msra.mxu0 %v3007
    %3060 = vmatprep.subr.mxu0 %v3005
    %3061 = vmatpush1.msra.mxu0 %v3004
    %3062 = vmatprep.subr.mxu0 %v3002
    %3063 = vmatpush1.msra.mxu0 %v3001
    %3064 = vmatprep.subr.mxu0 %v2999
    %3065 = vmatpush1.msra.mxu0 %v2998
    %3066 = vmatprep.subr.mxu0 %v2996
    %3067 = vmatpush1.msra.mxu0 %v2995
    %3068 = vmatprep.subr.mxu0 %v2993
    %3069 = vmatpush1.msra.mxu0 %v2992
    %3070 = vmatprep.subr.mxu0 %v2990
    %3071 = vmatpush1.msra.mxu0 %v2989
    %3072 = vmatprep.subr.mxu0 %v2987
    %3073 = vmatpush1.msra.mxu0 %v2986
    %3074 = vmatprep.subr.mxu0 0.0
    %3075 = vmatpush2.msra.mxu0 0.0
    %3076 = vmatprep.subr.mxu0 0.0
    %3077 = vmatpush2.msra.mxu0 0.0
    %3078 = vmatprep.subr.mxu0 0.0
    %3079 = vmatpush2.msra.mxu0 0.0
    %3080 = vmatprep.subr.mxu0 0.0
    %3081 = vmatpush2.msra.mxu0 0.0
    %3082 = vmatprep.subr.mxu0 0.0
    %3083 = vmatpush2.msra.mxu0 0.0
    %3084 = vmatprep.subr.mxu0 0.0
    %3085 = vmatpush2.msra.mxu0 0.0
    %3086 = vmatprep.subr.mxu0 0.0
    %3087 = vmatpush2.msra.mxu0 0.0
    %3088 = vmatprep.subr.mxu0 0.0
    %3089 = vmatpush2.msra.mxu0 0.0
    %3090 = vmatprep.subr.mxu0 0.0
    %3091 = vmatpush2.msra.mxu0 0.0
    %3092 = vmatprep.subr.mxu0 0.0
    %3093 = vmatpush2.msra.mxu0 0.0
    %3094 = vmatprep.subr.mxu0 0.0
    %3095 = vmatpush2.msra.mxu0 0.0
    %3096 = vmatprep.subr.mxu0 0.0
    %3097 = vmatpush2.msra.mxu0 0.0
    %3098 = vmatprep.subr.mxu0 0.0
    %3099 = vmatpush2.msra.mxu0 0.0
    %3100 = vmatprep.subr.mxu0 0.0
    %3101 = vmatpush2.msra.mxu0 0.0
    %3102 = vmatprep.subr.mxu0 0.0
    %3103 = vmatpush2.msra.mxu0 0.0
    %3104 = vmatprep.subr.mxu0 0.0
    %3105 = vmatpush2.msra.mxu0 0.0
    %3106 = vmatprep.mubr.f32.mxu0 0.0
    %3107 = vmatmul.mubr.f32.gmra.mxu0 %v3034
    %v3108 = vpop.f32.mrf.mxu0
    %v3109 = vadd.f32 %v3021, %v3108
    %v3110 = vpop.f32.mrf.mxu0
    %v3111 = vadd.f32 %v3025, %v3110
    %3112 = vmatprep.mubr.f32.mxu0 0.0
    %3113 = vmatmul.mubr.f32.gmra.mxu0 %v3037
    %v3114 = vpop.f32.mrf.mxu0
    %v3115 = vadd.f32 %v3021, %v3114
    %v3116 = vpop.f32.mrf.mxu0
    %v3117 = vadd.f32 %v3025, %v3116
    %3118 = vmatprep.mubr.f32.mxu0 0.0
    %3119 = vmatmul.mubr.f32.gmra.mxu0 %v3040
    %v3120 = vpop.f32.mrf.mxu0
    %v3121 = vadd.f32 %v3021, %v3120
    %v3122 = vpop.f32.mrf.mxu0
    %v3123 = vadd.f32 %v3025, %v3122
    %3124 = vdwg.mxu0
    %3125 = vmatprep.subr.mxu0 0.0
    %3126 = vmatpush1.msra.mxu0 0.0
    %3127 = vmatprep.subr.mxu0 0.0
    %3128 = vmatpush1.msra.mxu0 0.0
    %3129 = vmatprep.subr.mxu0 0.0
    %3130 = vmatpush1.msra.mxu0 0.0
    %3131 = vmatprep.subr.mxu0 0.0
    %3132 = vmatpush1.msra.mxu0 0.0
    %3133 = vmatprep.subr.mxu0 0.0
    %3134 = vmatpush1.msra.mxu0 0.0
    %3135 = vmatprep.subr.mxu0 0.0
    %3136 = vmatpush1.msra.mxu0 0.0
    %3137 = vmatprep.subr.mxu0 0.0
    %3138 = vmatpush1.msra.mxu0 %v3015
    %3139 = vmatprep.subr.mxu0 0.0
    %3140 = vmatpush1.msra.mxu0 %v3012
    %3141 = vmatprep.subr.mxu0 0.0
    %3142 = vmatpush1.msra.mxu0 %v3009
    %3143 = vmatprep.subr.mxu0 0.0
    %3144 = vmatpush1.msra.mxu0 %v3006
    %3145 = vmatprep.subr.mxu0 0.0
    %3146 = vmatpush1.msra.mxu0 %v3003
    %3147 = vmatprep.subr.mxu0 0.0
    %3148 = vmatpush1.msra.mxu0 %v3000
    %3149 = vmatprep.subr.mxu0 0.0
    %3150 = vmatpush1.msra.mxu0 %v2997
    %3151 = vmatprep.subr.mxu0 0.0
    %3152 = vmatpush1.msra.mxu0 %v2994
    %3153 = vmatprep.subr.mxu0 0.0
    %3154 = vmatpush1.msra.mxu0 %v2991
    %3155 = vmatprep.subr.mxu0 0.0
    %3156 = vmatpush1.msra.mxu0 %v2988
    %3157 = vmatprep.subr.mxu0 0.0
    %3158 = vmatpush2.msra.mxu0 0.0
    %3159 = vmatprep.subr.mxu0 0.0
    %3160 = vmatpush2.msra.mxu0 0.0
    %3161 = vmatprep.subr.mxu0 0.0
    %3162 = vmatpush2.msra.mxu0 0.0
    %3163 = vmatprep.subr.mxu0 0.0
    %3164 = vmatpush2.msra.mxu0 0.0
    %3165 = vmatprep.subr.mxu0 0.0
    %3166 = vmatpush2.msra.mxu0 0.0
    %3167 = vmatprep.subr.mxu0 0.0
    %3168 = vmatpush2.msra.mxu0 0.0
    %3169 = vmatprep.subr.mxu0 0.0
    %3170 = vmatpush2.msra.mxu0 0.0
    %3171 = vmatprep.subr.mxu0 0.0
    %3172 = vmatpush2.msra.mxu0 0.0
    %3173 = vmatprep.subr.mxu0 0.0
    %3174 = vmatpush2.msra.mxu0 0.0
    %3175 = vmatprep.subr.mxu0 0.0
    %3176 = vmatpush2.msra.mxu0 0.0
    %3177 = vmatprep.subr.mxu0 0.0
    %3178 = vmatpush2.msra.mxu0 0.0
    %3179 = vmatprep.subr.mxu0 0.0
    %3180 = vmatpush2.msra.mxu0 0.0
    %3181 = vmatprep.subr.mxu0 0.0
    %3182 = vmatpush2.msra.mxu0 0.0
    %3183 = vmatprep.subr.mxu0 0.0
    %3184 = vmatpush2.msra.mxu0 0.0
    %3185 = vmatprep.subr.mxu0 0.0
    %3186 = vmatpush2.msra.mxu0 0.0
    %3187 = vmatprep.subr.mxu0 0.0
    %3188 = vmatpush2.msra.mxu0 0.0
    %3189 = vmatprep.mubr.f32.mxu0 0.0
    %3190 = vmatmul.mubr.f32.gmra.mxu0 %v3034
    %v3191 = vpop.f32.mrf.mxu0
    %v3192 = vadd.f32 %v3029, %v3191
    %v3193 = vpop.f32.mrf.mxu0
    %3194 = vmatprep.mubr.f32.mxu0 0.0
    %3195 = vmatmul.mubr.f32.gmra.mxu0 %v3037
    %v3196 = vpop.f32.mrf.mxu0
    %v3197 = vadd.f32 %v3029, %v3196
    %v3198 = vpop.f32.mrf.mxu0
    %3199 = vmatprep.mubr.f32.mxu0 0.0
    %3200 = vmatmul.mubr.f32.gmra.mxu0 %v3040
    %v3201 = vpop.f32.mrf.mxu0
    %v3202 = vadd.f32 %v3029, %v3201
    %v3203 = vpop.f32.mrf.mxu0
    %3204 = vdwg.mxu0
    %v3205 = vmax.f32 %v3109, 0.0
    %v3206 = vmax.f32 %v3111, 0.0
    %v3207 = vmax.f32 %v3192, 0.0
    %v3208 = vmax.f32 %v3115, 0.0
    %v3209 = vmax.f32 %v3117, 0.0
    %v3210 = vmax.f32 %v3197, 0.0
    %v3211 = vmax.f32 %v3121, 0.0
    %v3212 = vmax.f32 %v3123, 0.0
    %v3213 = vmax.f32 %v3202, 0.0
    %v3214 = vld [vmem:[%s31] sm:$0xff]
    %v3215 = vld [vmem:[%s31 + $0x8] sm:$0xff]
    %v3216 = vld [vmem:[%s31 + $0x10] sm:$0xff]
    %v3217 = vld [vmem:[%s31 + $0x18] sm:$0xff]
    %v3218 = vld [vmem:[%s31 + $0x20] sm:$0xff]
    %v3219 = vld [vmem:[%s31 + $0x28] sm:$0xff]
    %v3220 = vld [vmem:[%s31 + $0x30] sm:$0xff]
    %v3221 = vld [vmem:[%s31 + $0x38] sm:$0xff]
    %v3222 = vld [vmem:[%s31 + $0x40] sm:$0xff]
    %v3223 = vld [vmem:[%s31 + $0x48] sm:$0xff]
    %v3224 = vld [vmem:[%s31 + $0x50] sm:$0xff]
    %v3225 = vld [vmem:[%s31 + $0x58] sm:$0xff]
    %v3226 = vld [vmem:[%s31 + $0x60] sm:$0xff]
    %v3227 = vld [vmem:[%s31 + $0x68] sm:$0xff]
    %v3228 = vld [vmem:[%s31 + $0x70] sm:$0xff]
    %v3229 = vld [vmem:[%s31 + $0x78] sm:$0xff]
    %v3230 = vld [vmem:[%s31 + $0x80] sm:$0xff]
    %v3231 = vld [vmem:[%s31 + $0x88] sm:$0xff]
    %v3232 = vld [vmem:[%s31 + $0x90] sm:$0xff]
    %v3233 = vld [vmem:[%s31 + $0x98] sm:$0xff]
    %v3234 = vld [vmem:[%s31 + $0xa0] sm:$0xff]
    %v3235 = vld [vmem:[%s31 + $0xa8] sm:$0xff]
    %v3236 = vld [vmem:[%s31 + $0xb0] sm:$0xff]
    %v3237 = vld [vmem:[%s31 + $0xb8] sm:$0xff]
    %v3238 = vld [vmem:[%s31 + $0xc0] sm:$0xff]
    %v3239 = vld [vmem:[%s31 + $0xc8] sm:$0xff]
    %v3240 = vld [vmem:[%s31 + $0xd0] sm:$0xff]
    %v3241 = vld [vmem:[%s31 + $0xd8] sm:$0xff]
    %v3242 = vld [vmem:[%s31 + $0xe0] sm:$0xff]
    %v3243 = vld [vmem:[%s31 + $0xe8] sm:$0xff]
    %v3244 = vld [vmem:[%s31 + $0xf0] sm:$0xff]
    %v3245 = vld [vmem:[%s31 + $0xf8] sm:$0xff]
    %v3246 = vld [vmem:[%s31 + $0x100] sm:$0xff]
    %v3247 = vld [vmem:[%s31 + $0x108] sm:$0xff]
    %v3248 = vld [vmem:[%s31 + $0x110] sm:$0xff]
    %v3249 = vld [vmem:[%s31 + $0x118] sm:$0xff]
    %v3250 = vld [vmem:[%s31 + $0x120] sm:$0xff]
    %v3251 = vld [vmem:[%s31 + $0x128] sm:$0xff]
    %v3252 = vld [vmem:[%s31 + $0x130] sm:$0xff]
    %v3253 = vld [vmem:[%s31 + $0x138] sm:$0xff]
    %v3254 = vld [vmem:[%s33] sm:$0x1]
    %v3256 = vlaneseq
    %v3257 = vshrl.u32 %v3256, 7
    %v3258 = vsub.s32 0, %v3257
    %v3259 = vrot.slane %v3254, %v3258
    %vm3261 = vcmask 523264
    %v3263 = vsel %vm3261, %v3207, 0
    %v3266 = vsel %vm3261, %v3210, 0
    %v3269 = vsel %vm3261, %v3213, 0
    %3271 = vmatprep.subr.mxu0 0.0
    %3272 = vmatpush1.msra.mxu0 %v3229
    %3273 = vmatprep.subr.mxu0 0.0
    %3274 = vmatpush1.msra.mxu0 %v3228
    %3275 = vmatprep.subr.mxu0 0.0
    %3276 = vmatpush1.msra.mxu0 %v3227
    %3277 = vmatprep.subr.mxu0 0.0
    %3278 = vmatpush1.msra.mxu0 %v3226
    %3279 = vmatprep.subr.mxu0 0.0
    %3280 = vmatpush1.msra.mxu0 %v3225
    %3281 = vmatprep.subr.mxu0 0.0
    %3282 = vmatpush1.msra.mxu0 %v3224
    %3283 = vmatprep.subr.mxu0 0.0
    %3284 = vmatpush1.msra.mxu0 %v3223
    %3285 = vmatprep.subr.mxu0 0.0
    %3286 = vmatpush1.msra.mxu0 %v3222
    %3287 = vmatprep.subr.mxu0 0.0
    %3288 = vmatpush1.msra.mxu0 %v3221
    %3289 = vmatprep.subr.mxu0 0.0
    %3290 = vmatpush1.msra.mxu0 %v3220
    %3291 = vmatprep.subr.mxu0 0.0
    %3292 = vmatpush1.msra.mxu0 %v3219
    %3293 = vmatprep.subr.mxu0 0.0
    %3294 = vmatpush1.msra.mxu0 %v3218
    %3295 = vmatprep.subr.mxu0 0.0
    %3296 = vmatpush1.msra.mxu0 %v3217
    %3297 = vmatprep.subr.mxu0 0.0
    %3298 = vmatpush1.msra.mxu0 %v3216
    %3299 = vmatprep.subr.mxu0 0.0
    %3300 = vmatpush1.msra.mxu0 %v3215
    %3301 = vmatprep.subr.mxu0 0.0
    %3302 = vmatpush1.msra.mxu0 %v3214
    %3303 = vmatprep.subr.mxu0 0.0
    %3304 = vmatpush2.msra.mxu0 %v3245
    %3305 = vmatprep.subr.mxu0 0.0
    %3306 = vmatpush2.msra.mxu0 %v3244
    %3307 = vmatprep.subr.mxu0 0.0
    %3308 = vmatpush2.msra.mxu0 %v3243
    %3309 = vmatprep.subr.mxu0 0.0
    %3310 = vmatpush2.msra.mxu0 %v3242
    %3311 = vmatprep.subr.mxu0 0.0
    %3312 = vmatpush2.msra.mxu0 %v3241
    %3313 = vmatprep.subr.mxu0 0.0
    %3314 = vmatpush2.msra.mxu0 %v3240
    %3315 = vmatprep.subr.mxu0 0.0
    %3316 = vmatpush2.msra.mxu0 %v3239
    %3317 = vmatprep.subr.mxu0 0.0
    %3318 = vmatpush2.msra.mxu0 %v3238
    %3319 = vmatprep.subr.mxu0 0.0
    %3320 = vmatpush2.msra.mxu0 %v3237
    %3321 = vmatprep.subr.mxu0 0.0
    %3322 = vmatpush2.msra.mxu0 %v3236
    %3323 = vmatprep.subr.mxu0 0.0
    %3324 = vmatpush2.msra.mxu0 %v3235
    %3325 = vmatprep.subr.mxu0 0.0
    %3326 = vmatpush2.msra.mxu0 %v3234
    %3327 = vmatprep.subr.mxu0 0.0
    %3328 = vmatpush2.msra.mxu0 %v3233
    %3329 = vmatprep.subr.mxu0 0.0
    %3330 = vmatpush2.msra.mxu0 %v3232
    %3331 = vmatprep.subr.mxu0 0.0
    %3332 = vmatpush2.msra.mxu0 %v3231
    %3333 = vmatprep.subr.mxu0 0.0
    %3334 = vmatpush2.msra.mxu0 %v3230
    %3335 = vmatprep.mubr.f32.mxu0 %v3206
    %3336 = vmatmul.mubr.f32.gmra.mxu0 %v3205
    %v3337 = vpop.f32.mrf.mxu0
    %v3338 = vadd.f32 %v3259, %v3337
    %v3339 = vpop.f32.mrf.mxu0
    %3340 = vmatprep.mubr.f32.mxu0 %v3209
    %3341 = vmatmul.mubr.f32.gmra.mxu0 %v3208
    %v3342 = vpop.f32.mrf.mxu0
    %v3343 = vadd.f32 %v3259, %v3342
    %v3344 = vpop.f32.mrf.mxu0
    %3345 = vmatprep.mubr.f32.mxu0 %v3212
    %3346 = vmatmul.mubr.f32.gmra.mxu0 %v3211
    %v3347 = vpop.f32.mrf.mxu0
    %v3348 = vadd.f32 %v3259, %v3347
    %v3349 = vpop.f32.mrf.mxu0
    %3350 = vdwg.mxu0
    %3351 = vmatprep.subr.mxu0 0.0
    %3352 = vmatpush1.msra.mxu0 0.0
    %3353 = vmatprep.subr.mxu0 0.0
    %3354 = vmatpush1.msra.mxu0 0.0
    %3355 = vmatprep.subr.mxu0 0.0
    %3356 = vmatpush1.msra.mxu0 0.0
    %3357 = vmatprep.subr.mxu0 0.0
    %3358 = vmatpush1.msra.mxu0 0.0
    %3359 = vmatprep.subr.mxu0 0.0
    %3360 = vmatpush1.msra.mxu0 0.0
    %3361 = vmatprep.subr.mxu0 0.0
    %3362 = vmatpush1.msra.mxu0 0.0
    %3363 = vmatprep.subr.mxu0 0.0
    %3364 = vmatpush1.msra.mxu0 0.0
    %3365 = vmatprep.subr.mxu0 0.0
    %3366 = vmatpush1.msra.mxu0 0.0
    %3367 = vmatprep.subr.mxu0 0.0
    %3368 = vmatpush1.msra.mxu0 %v3253
    %3369 = vmatprep.subr.mxu0 0.0
    %3370 = vmatpush1.msra.mxu0 %v3252
    %3371 = vmatprep.subr.mxu0 0.0
    %3372 = vmatpush1.msra.mxu0 %v3251
    %3373 = vmatprep.subr.mxu0 0.0
    %3374 = vmatpush1.msra.mxu0 %v3250
    %3375 = vmatprep.subr.mxu0 0.0
    %3376 = vmatpush1.msra.mxu0 %v3249
    %3377 = vmatprep.subr.mxu0 0.0
    %3378 = vmatpush1.msra.mxu0 %v3248
    %3379 = vmatprep.subr.mxu0 0.0
    %3380 = vmatpush1.msra.mxu0 %v3247
    %3381 = vmatprep.subr.mxu0 0.0
    %3382 = vmatpush1.msra.mxu0 %v3246
    %3383 = vmatprep.subr.mxu0 0.0
    %3384 = vmatpush2.msra.mxu0 0.0
    %3385 = vmatprep.subr.mxu0 0.0
    %3386 = vmatpush2.msra.mxu0 0.0
    %3387 = vmatprep.subr.mxu0 0.0
    %3388 = vmatpush2.msra.mxu0 0.0
    %3389 = vmatprep.subr.mxu0 0.0
    %3390 = vmatpush2.msra.mxu0 0.0
    %3391 = vmatprep.subr.mxu0 0.0
    %3392 = vmatpush2.msra.mxu0 0.0
    %3393 = vmatprep.subr.mxu0 0.0
    %3394 = vmatpush2.msra.mxu0 0.0
    %3395 = vmatprep.subr.mxu0 0.0
    %3396 = vmatpush2.msra.mxu0 0.0
    %3397 = vmatprep.subr.mxu0 0.0
    %3398 = vmatpush2.msra.mxu0 0.0
    %3399 = vmatprep.subr.mxu0 0.0
    %3400 = vmatpush2.msra.mxu0 0.0
    %3401 = vmatprep.subr.mxu0 0.0
    %3402 = vmatpush2.msra.mxu0 0.0
    %3403 = vmatprep.subr.mxu0 0.0
    %3404 = vmatpush2.msra.mxu0 0.0
    %3405 = vmatprep.subr.mxu0 0.0
    %3406 = vmatpush2.msra.mxu0 0.0
    %3407 = vmatprep.subr.mxu0 0.0
    %3408 = vmatpush2.msra.mxu0 0.0
    %3409 = vmatprep.subr.mxu0 0.0
    %3410 = vmatpush2.msra.mxu0 0.0
    %3411 = vmatprep.subr.mxu0 0.0
    %3412 = vmatpush2.msra.mxu0 0.0
    %3413 = vmatprep.subr.mxu0 0.0
    %3414 = vmatpush2.msra.mxu0 0.0
    %3415 = vmatprep.mubr.f32.mxu0 0.0
    %3416 = vmatmul.mubr.f32.gmra.mxu0 %v3263
    %v3417 = vpop.f32.mrf.mxu0
    %v3418 = vadd.f32 %v3338, %v3417
    %v3419 = vpop.f32.mrf.mxu0
    %3420 = vmatprep.mubr.f32.mxu0 0.0
    %3421 = vmatmul.mubr.f32.gmra.mxu0 %v3266
    %v3422 = vpop.f32.mrf.mxu0
    %v3423 = vadd.f32 %v3343, %v3422
    %v3424 = vpop.f32.mrf.mxu0
    %3425 = vmatprep.mubr.f32.mxu0 0.0
    %3426 = vmatmul.mubr.f32.gmra.mxu0 %v3269
    %v3427 = vpop.f32.mrf.mxu0
    %v3428 = vadd.f32 %v3348, %v3427
    %v3429 = vpop.f32.mrf.mxu0
    %3430 = vdwg.mxu0
    %v3431 = vadd.f32 %v2924, %v3418
    %v3432 = vadd.f32 %v2925, %v3423
    %v3433 = vadd.f32 %v2926, %v3428
    %v3434 = vld [vmem:[%s35] sm:$0xff]
    %v3435 = vld [vmem:[%s35 + $0x8] sm:$0xff]
    %v3436 = vld [vmem:[%s35 + $0x10] sm:$0xff]
    %v3437 = vld [vmem:[%s35 + $0x18] sm:$0xff]
    %v3438 = vld [vmem:[%s35 + $0x20] sm:$0xff]
    %v3439 = vld [vmem:[%s35 + $0x28] sm:$0xff]
    %v3440 = vld [vmem:[%s35 + $0x30] sm:$0xff]
    %v3441 = vld [vmem:[%s35 + $0x38] sm:$0xff]
    %v3442 = vld [vmem:[%s35 + $0x40] sm:$0xff]
    %v3443 = vld [vmem:[%s35 + $0x48] sm:$0xff]
    %v3445 = vsel %vm1323, %v3431, 0
    %v3448 = vsel %vm1323, %v3432, 0
    %v3451 = vsel %vm1323, %v3433, 0
    %3453 = vmatprep.subr.mxu0 0.0
    %3454 = vmatpush1.msra.mxu0 0.0
    %3455 = vmatprep.subr.mxu0 0.0
    %3456 = vmatpush1.msra.mxu0 0.0
    %3457 = vmatprep.subr.mxu0 0.0
    %3458 = vmatpush1.msra.mxu0 0.0
    %3459 = vmatprep.subr.mxu0 0.0
    %3460 = vmatpush1.msra.mxu0 0.0
    %3461 = vmatprep.subr.mxu0 0.0
    %3462 = vmatpush1.msra.mxu0 0.0
    %3463 = vmatprep.subr.mxu0 0.0
    %3464 = vmatpush1.msra.mxu0 0.0
    %3465 = vmatprep.subr.mxu0 0.0
    %3466 = vmatpush1.msra.mxu0 %v3443
    %3467 = vmatprep.subr.mxu0 0.0
    %3468 = vmatpush1.msra.mxu0 %v3442
    %3469 = vmatprep.subr.mxu0 0.0
    %3470 = vmatpush1.msra.mxu0 %v3441
    %3471 = vmatprep.subr.mxu0 0.0
    %3472 = vmatpush1.msra.mxu0 %v3440
    %3473 = vmatprep.subr.mxu0 0.0
    %3474 = vmatpush1.msra.mxu0 %v3439
    %3475 = vmatprep.subr.mxu0 0.0
    %3476 = vmatpush1.msra.mxu0 %v3438
    %3477 = vmatprep.subr.mxu0 0.0
    %3478 = vmatpush1.msra.mxu0 %v3437
    %3479 = vmatprep.subr.mxu0 0.0
    %3480 = vmatpush1.msra.mxu0 %v3436
    %3481 = vmatprep.subr.mxu0 0.0
    %3482 = vmatpush1.msra.mxu0 %v3435
    %3483 = vmatprep.subr.mxu0 0.0
    %3484 = vmatpush1.msra.mxu0 %v3434
    %3485 = vmatprep.subr.mxu0 0.0
    %3486 = vmatpush2.msra.mxu0 0.0
    %3487 = vmatprep.subr.mxu0 0.0
    %3488 = vmatpush2.msra.mxu0 0.0
    %3489 = vmatprep.subr.mxu0 0.0
    %3490 = vmatpush2.msra.mxu0 0.0
    %3491 = vmatprep.subr.mxu0 0.0
    %3492 = vmatpush2.msra.mxu0 0.0
    %3493 = vmatprep.subr.mxu0 0.0
    %3494 = vmatpush2.msra.mxu0 0.0
    %3495 = vmatprep.subr.mxu0 0.0
    %3496 = vmatpush2.msra.mxu0 0.0
    %3497 = vmatprep.subr.mxu0 0.0
    %3498 = vmatpush2.msra.mxu0 0.0
    %3499 = vmatprep.subr.mxu0 0.0
    %3500 = vmatpush2.msra.mxu0 0.0
    %3501 = vmatprep.subr.mxu0 0.0
    %3502 = vmatpush2.msra.mxu0 0.0
    %3503 = vmatprep.subr.mxu0 0.0
    %3504 = vmatpush2.msra.mxu0 0.0
    %3505 = vmatprep.subr.mxu0 0.0
    %3506 = vmatpush2.msra.mxu0 0.0
    %3507 = vmatprep.subr.mxu0 0.0
    %3508 = vmatpush2.msra.mxu0 0.0
    %3509 = vmatprep.subr.mxu0 0.0
    %3510 = vmatpush2.msra.mxu0 0.0
    %3511 = vmatprep.subr.mxu0 0.0
    %3512 = vmatpush2.msra.mxu0 0.0
    %3513 = vmatprep.subr.mxu0 0.0
    %3514 = vmatpush2.msra.mxu0 0.0
    %3515 = vmatprep.subr.mxu0 0.0
    %3516 = vmatpush2.msra.mxu0 0.0
    %3517 = vmatprep.mubr.f32.mxu0 0.0
    %3518 = vmatmul.mubr.f32.gmra.mxu0 %v3445
    %v3519 = vpop.f32.mrf.mxu0
    %v3520 = vadd.f32 0.0, %v3519
    %v3521 = vpop.f32.mrf.mxu0
    %3522 = vmatprep.mubr.f32.mxu0 0.0
    %3523 = vmatmul.mubr.f32.gmra.mxu0 %v3448
    %v3524 = vpop.f32.mrf.mxu0
    %v3525 = vadd.f32 0.0, %v3524
    %v3526 = vpop.f32.mrf.mxu0
    %3527 = vmatprep.mubr.f32.mxu0 0.0
    %3528 = vmatmul.mubr.f32.gmra.mxu0 %v3451
    %v3529 = vpop.f32.mrf.mxu0
    %v3530 = vadd.f32 0.0, %v3529
    %v3531 = vpop.f32.mrf.mxu0
    %3532 = vdwg.mxu0
    %v3533 = vld [vmem:[%s37] sm:$0xff]
    %v3534 = vld [vmem:[%s37 + $0x8] sm:$0xff]
    %v3535 = vld [vmem:[%s37 + $0x10] sm:$0xff]
    %v3536 = vld [vmem:[%s37 + $0x18] sm:$0xff]
    %v3537 = vld [vmem:[%s37 + $0x20] sm:$0xff]
    %v3538 = vld [vmem:[%s37 + $0x28] sm:$0xff]
    %v3539 = vld [vmem:[%s37 + $0x30] sm:$0xff]
    %v3540 = vld [vmem:[%s37 + $0x38] sm:$0xff]
    %v3541 = vld [vmem:[%s37 + $0x40] sm:$0xff]
    %v3542 = vld [vmem:[%s37 + $0x48] sm:$0xff]
    %3543 = vmatprep.subr.mxu0 0.0
    %3544 = vmatpush1.msra.mxu0 0.0
    %3545 = vmatprep.subr.mxu0 0.0
    %3546 = vmatpush1.msra.mxu0 0.0
    %3547 = vmatprep.subr.mxu0 0.0
    %3548 = vmatpush1.msra.mxu0 0.0
    %3549 = vmatprep.subr.mxu0 0.0
    %3550 = vmatpush1.msra.mxu0 0.0
    %3551 = vmatprep.subr.mxu0 0.0
    %3552 = vmatpush1.msra.mxu0 0.0
    %3553 = vmatprep.subr.mxu0 0.0
    %3554 = vmatpush1.msra.mxu0 0.0
    %3555 = vmatprep.subr.mxu0 0.0
    %3556 = vmatpush1.msra.mxu0 %v3542
    %3557 = vmatprep.subr.mxu0 0.0
    %3558 = vmatpush1.msra.mxu0 %v3541
    %3559 = vmatprep.subr.mxu0 0.0
    %3560 = vmatpush1.msra.mxu0 %v3540
    %3561 = vmatprep.subr.mxu0 0.0
    %3562 = vmatpush1.msra.mxu0 %v3539
    %3563 = vmatprep.subr.mxu0 0.0
    %3564 = vmatpush1.msra.mxu0 %v3538
    %3565 = vmatprep.subr.mxu0 0.0
    %3566 = vmatpush1.msra.mxu0 %v3537
    %3567 = vmatprep.subr.mxu0 0.0
    %3568 = vmatpush1.msra.mxu0 %v3536
    %3569 = vmatprep.subr.mxu0 0.0
    %3570 = vmatpush1.msra.mxu0 %v3535
    %3571 = vmatprep.subr.mxu0 0.0
    %3572 = vmatpush1.msra.mxu0 %v3534
    %3573 = vmatprep.subr.mxu0 0.0
    %3574 = vmatpush1.msra.mxu0 %v3533
    %3575 = vmatprep.subr.mxu0 0.0
    %3576 = vmatpush2.msra.mxu0 0.0
    %3577 = vmatprep.subr.mxu0 0.0
    %3578 = vmatpush2.msra.mxu0 0.0
    %3579 = vmatprep.subr.mxu0 0.0
    %3580 = vmatpush2.msra.mxu0 0.0
    %3581 = vmatprep.subr.mxu0 0.0
    %3582 = vmatpush2.msra.mxu0 0.0
    %3583 = vmatprep.subr.mxu0 0.0
    %3584 = vmatpush2.msra.mxu0 0.0
    %3585 = vmatprep.subr.mxu0 0.0
    %3586 = vmatpush2.msra.mxu0 0.0
    %3587 = vmatprep.subr.mxu0 0.0
    %3588 = vmatpush2.msra.mxu0 0.0
    %3589 = vmatprep.subr.mxu0 0.0
    %3590 = vmatpush2.msra.mxu0 0.0
    %3591 = vmatprep.subr.mxu0 0.0
    %3592 = vmatpush2.msra.mxu0 0.0
    %3593 = vmatprep.subr.mxu0 0.0
    %3594 = vmatpush2.msra.mxu0 0.0
    %3595 = vmatprep.subr.mxu0 0.0
    %3596 = vmatpush2.msra.mxu0 0.0
    %3597 = vmatprep.subr.mxu0 0.0
    %3598 = vmatpush2.msra.mxu0 0.0
    %3599 = vmatprep.subr.mxu0 0.0
    %3600 = vmatpush2.msra.mxu0 0.0
    %3601 = vmatprep.subr.mxu0 0.0
    %3602 = vmatpush2.msra.mxu0 0.0
    %3603 = vmatprep.subr.mxu0 0.0
    %3604 = vmatpush2.msra.mxu0 0.0
    %3605 = vmatprep.subr.mxu0 0.0
    %3606 = vmatpush2.msra.mxu0 0.0
    %3607 = vmatprep.mubr.f32.mxu0 0.0
    %3608 = vmatmul.mubr.f32.gmra.mxu0 %v3445
    %v3609 = vpop.f32.mrf.mxu0
    %v3610 = vadd.f32 0.0, %v3609
    %v3611 = vpop.f32.mrf.mxu0
    %3612 = vmatprep.mubr.f32.mxu0 0.0
    %3613 = vmatmul.mubr.f32.gmra.mxu0 %v3448
    %v3614 = vpop.f32.mrf.mxu0
    %v3615 = vadd.f32 0.0, %v3614
    %v3616 = vpop.f32.mrf.mxu0
    %3617 = vmatprep.mubr.f32.mxu0 0.0
    %3618 = vmatmul.mubr.f32.gmra.mxu0 %v3451
    %v3619 = vpop.f32.mrf.mxu0
    %v3620 = vadd.f32 0.0, %v3619
    %v3621 = vpop.f32.mrf.mxu0
    %3622 = vdwg.mxu0
    %v3623 = vld [vmem:[%s55] sm:$0xff]
    %v3624 = vld [vmem:[%s55 + $0x8] sm:$0xff]
    %v3625 = vld [vmem:[%s55 + $0x10] sm:$0xff]
    %v3627 = vsel %vm1323, %v3610, 0
    %v3630 = vsel %vm1323, %v3615, 0
    %v3633 = vsel %vm1323, %v3620, 0
    %v3636 = vsel %vm1323, %v3520, 0
    %v3639 = vsel %vm1323, %v3525, 0
    %v3642 = vsel %vm1323, %v3530, 0
    %3644 = vmatprep.subr.mxu0 0.0
    %3645 = vmatpush1.xpose.msra.mxu0 0.0
    %3646 = vmatprep.subr.mxu0 0.0
    %3647 = vmatpush1.xpose.msra.mxu0 0.0
    %3648 = vmatprep.subr.mxu0 0.0
    %3649 = vmatpush1.xpose.msra.mxu0 0.0
    %3650 = vmatprep.subr.mxu0 0.0
    %3651 = vmatpush1.xpose.msra.mxu0 0.0
    %3652 = vmatprep.subr.mxu0 0.0
    %3653 = vmatpush1.xpose.msra.mxu0 0.0
    %3654 = vmatprep.subr.mxu0 0.0
    %3655 = vmatpush1.xpose.msra.mxu0 0.0
    %3656 = vmatprep.subr.mxu0 0.0
    %3657 = vmatpush1.xpose.msra.mxu0 0.0
    %3658 = vmatprep.subr.mxu0 0.0
    %3659 = vmatpush1.xpose.msra.mxu0 0.0
    %3660 = vmatprep.subr.mxu0 0.0
    %3661 = vmatpush1.xpose.msra.mxu0 0.0
    %3662 = vmatprep.subr.mxu0 0.0
    %3663 = vmatpush1.xpose.msra.mxu0 0.0
    %3664 = vmatprep.subr.mxu0 0.0
    %3665 = vmatpush1.xpose.msra.mxu0 0.0
    %3666 = vmatprep.subr.mxu0 0.0
    %3667 = vmatpush1.xpose.msra.mxu0 0.0
    %3668 = vmatprep.subr.mxu0 0.0
    %3669 = vmatpush1.xpose.msra.mxu0 0.0
    %3670 = vmatprep.subr.mxu0 0.0
    %3671 = vmatpush1.xpose.msra.mxu0 %v3642
    %3672 = vmatprep.subr.mxu0 0.0
    %3673 = vmatpush1.xpose.msra.mxu0 %v3639
    %3674 = vmatprep.subr.mxu0 0.0
    %3675 = vmatpush1.xpose.msra.mxu0 %v3636
    %3676 = vmatprep.subr.mxu0 0.0
    %3677 = vmatpush2.xpose.msra.mxu0 0.0
    %3678 = vmatprep.subr.mxu0 0.0
    %3679 = vmatpush2.xpose.msra.mxu0 0.0
    %3680 = vmatprep.subr.mxu0 0.0
    %3681 = vmatpush2.xpose.msra.mxu0 0.0
    %3682 = vmatprep.subr.mxu0 0.0
    %3683 = vmatpush2.xpose.msra.mxu0 0.0
    %3684 = vmatprep.subr.mxu0 0.0
    %3685 = vmatpush2.xpose.msra.mxu0 0.0
    %3686 = vmatprep.subr.mxu0 0.0
    %3687 = vmatpush2.xpose.msra.mxu0 0.0
    %3688 = vmatprep.subr.mxu0 0.0
    %3689 = vmatpush2.xpose.msra.mxu0 0.0
    %3690 = vmatprep.subr.mxu0 0.0
    %3691 = vmatpush2.xpose.msra.mxu0 0.0
    %3692 = vmatprep.subr.mxu0 0.0
    %3693 = vmatpush2.xpose.msra.mxu0 0.0
    %3694 = vmatprep.subr.mxu0 0.0
    %3695 = vmatpush2.xpose.msra.mxu0 0.0
    %3696 = vmatprep.subr.mxu0 0.0
    %3697 = vmatpush2.xpose.msra.mxu0 0.0
    %3698 = vmatprep.subr.mxu0 0.0
    %3699 = vmatpush2.xpose.msra.mxu0 0.0
    %3700 = vmatprep.subr.mxu0 0.0
    %3701 = vmatpush2.xpose.msra.mxu0 0.0
    %3702 = vmatprep.subr.mxu0 0.0
    %3703 = vmatpush2.xpose.msra.mxu0 0.0
    %3704 = vmatprep.subr.mxu0 0.0
    %3705 = vmatpush2.xpose.msra.mxu0 0.0
    %3706 = vmatprep.subr.mxu0 0.0
    %3707 = vmatpush2.xpose.msra.mxu0 0.0
    %3708 = vmatprep.mubr.f32.mxu0 0.0
    %3709 = vmatmul.mubr.f32.gmra.mxu0 %v3627
    %v3710 = vpop.f32.mrf.mxu0
    %v3711 = vadd.f32 0.0, %v3710
    %v3712 = vpop.f32.mrf.mxu0
    %3713 = vmatprep.mubr.f32.mxu0 0.0
    %3714 = vmatmul.mubr.f32.gmra.mxu0 %v3630
    %v3715 = vpop.f32.mrf.mxu0
    %v3716 = vadd.f32 0.0, %v3715
    %v3717 = vpop.f32.mrf.mxu0
    %3718 = vmatprep.mubr.f32.mxu0 0.0
    %3719 = vmatmul.mubr.f32.gmra.mxu0 %v3633
    %v3720 = vpop.f32.mrf.mxu0
    %v3721 = vadd.f32 0.0, %v3720
    %v3722 = vpop.f32.mrf.mxu0
    %3723 = vdwg.mxu0
    %v3724 = vmul.f32 %v3711, 0.1118034
    %v3725 = vmul.f32 %v3716, 0.1118034
    %v3726 = vmul.f32 %v3721, 0.1118034
    %v3727 = vmul.f32 %v3724, %v3623
    %v3728 = vmul.f32 %v3725, %v3624
    %v3729 = vmul.f32 %v3726, %v3625
    %v3730 = vld [vmem:[%s57] sm:$0xff]
    %v3731 = vld [vmem:[%s57 + $0x8] sm:$0xff]
    %v3732 = vld [vmem:[%s57 + $0x10] sm:$0xff]
    %v3734 = vsel %vm2125, %v3727, 0
    %v3737 = vsel %vm2125, %v3728, 0
    %v3740 = vsel %vm2125, %v3729, 0
    %3742 = vmatprep.subr.mxu0 0.0
    %3743 = vmatpush1.msra.mxu0 0.0
    %3744 = vmatprep.subr.mxu0 0.0
    %3745 = vmatpush1.msra.mxu0 0.0
    %3746 = vmatprep.subr.mxu0 0.0
    %3747 = vmatpush1.msra.mxu0 0.0
    %3748 = vmatprep.subr.mxu0 0.0
    %3749 = vmatpush1.msra.mxu0 0.0
    %3750 = vmatprep.subr.mxu0 0.0
    %3751 = vmatpush1.msra.mxu0 0.0
    %3752 = vmatprep.subr.mxu0 0.0
    %3753 = vmatpush1.msra.mxu0 0.0
    %3754 = vmatprep.subr.mxu0 0.0
    %3755 = vmatpush1.msra.mxu0 0.0
    %3756 = vmatprep.subr.mxu0 0.0
    %3757 = vmatpush1.msra.mxu0 0.0
    %3758 = vmatprep.subr.mxu0 0.0
    %3759 = vmatpush1.msra.mxu0 0.0
    %3760 = vmatprep.subr.mxu0 0.0
    %3761 = vmatpush1.msra.mxu0 0.0
    %3762 = vmatprep.subr.mxu0 0.0
    %3763 = vmatpush1.msra.mxu0 0.0
    %3764 = vmatprep.subr.mxu0 0.0
    %3765 = vmatpush1.msra.mxu0 0.0
    %3766 = vmatprep.subr.mxu0 0.0
    %3767 = vmatpush1.msra.mxu0 0.0
    %3768 = vmatprep.subr.mxu0 0.0
    %3769 = vmatpush1.msra.mxu0 %v3732
    %3770 = vmatprep.subr.mxu0 0.0
    %3771 = vmatpush1.msra.mxu0 %v3731
    %3772 = vmatprep.subr.mxu0 0.0
    %3773 = vmatpush1.msra.mxu0 %v3730
    %3774 = vmatprep.subr.mxu0 0.0
    %3775 = vmatpush2.msra.mxu0 0.0
    %3776 = vmatprep.subr.mxu0 0.0
    %3777 = vmatpush2.msra.mxu0 0.0
    %3778 = vmatprep.subr.mxu0 0.0
    %3779 = vmatpush2.msra.mxu0 0.0
    %3780 = vmatprep.subr.mxu0 0.0
    %3781 = vmatpush2.msra.mxu0 0.0
    %3782 = vmatprep.subr.mxu0 0.0
    %3783 = vmatpush2.msra.mxu0 0.0
    %3784 = vmatprep.subr.mxu0 0.0
    %3785 = vmatpush2.msra.mxu0 0.0
    %3786 = vmatprep.subr.mxu0 0.0
    %3787 = vmatpush2.msra.mxu0 0.0
    %3788 = vmatprep.subr.mxu0 0.0
    %3789 = vmatpush2.msra.mxu0 0.0
    %3790 = vmatprep.subr.mxu0 0.0
    %3791 = vmatpush2.msra.mxu0 0.0
    %3792 = vmatprep.subr.mxu0 0.0
    %3793 = vmatpush2.msra.mxu0 0.0
    %3794 = vmatprep.subr.mxu0 0.0
    %3795 = vmatpush2.msra.mxu0 0.0
    %3796 = vmatprep.subr.mxu0 0.0
    %3797 = vmatpush2.msra.mxu0 0.0
    %3798 = vmatprep.subr.mxu0 0.0
    %3799 = vmatpush2.msra.mxu0 0.0
    %3800 = vmatprep.subr.mxu0 0.0
    %3801 = vmatpush2.msra.mxu0 0.0
    %3802 = vmatprep.subr.mxu0 0.0
    %3803 = vmatpush2.msra.mxu0 0.0
    %3804 = vmatprep.subr.mxu0 0.0
    %3805 = vmatpush2.msra.mxu0 0.0
    %3806 = vmatprep.mubr.f32.mxu0 0.0
    %3807 = vmatmul.mubr.f32.gmra.mxu0 %v3734
    %v3808 = vpop.f32.mrf.mxu0
    %v3809 = vadd.f32 0.0, %v3808
    %v3810 = vpop.f32.mrf.mxu0
    %3811 = vmatprep.mubr.f32.mxu0 0.0
    %3812 = vmatmul.mubr.f32.gmra.mxu0 %v3737
    %v3813 = vpop.f32.mrf.mxu0
    %v3814 = vadd.f32 0.0, %v3813
    %v3815 = vpop.f32.mrf.mxu0
    %3816 = vmatprep.mubr.f32.mxu0 0.0
    %3817 = vmatmul.mubr.f32.gmra.mxu0 %v3740
    %v3818 = vpop.f32.mrf.mxu0
    %v3819 = vadd.f32 0.0, %v3818
    %v3820 = vpop.f32.mrf.mxu0
    %3821 = vdwg.mxu0
    %vm3822 = vcmask 48128
    %v3823 = vsel %vm3822, %v3809, 0.0
    %3824 = vadd.xlane.f32.xlu0 %v3823
    %v3825 = vpop.xlane.xlu0 %3824
    %v3826 = vsel %vm3822, %v3814, 0.0
    %3827 = vadd.xlane.f32.xlu0 %v3826
    %v3828 = vpop.xlane.xlu0 %3827
    %v3829 = vsel %vm3822, %v3819, 0.0
    %3830 = vadd.xlane.f32.xlu0 %v3829
    %v3831 = vpop.xlane.xlu0 %3830
    %v3832 = vmul.f32 %v3809, %v3809
    %v3833 = vmul.f32 %v3814, %v3814
    %v3834 = vmul.f32 %v3819, %v3819
    %v3835 = vsel %vm3822, %v3832, 0.0
    %3836 = vadd.xlane.f32.xlu0 %v3835
    %v3837 = vpop.xlane.xlu0 %3836
    %v3838 = vsel %vm3822, %v3833, 0.0
    %3839 = vadd.xlane.f32.xlu0 %v3838
    %v3840 = vpop.xlane.xlu0 %3839
    %v3841 = vsel %vm3822, %v3834, 0.0
    %3842 = vadd.xlane.f32.xlu0 %v3841
    %v3843 = vpop.xlane.xlu0 %3842
    %v3845 = vsel %vm2125, %v3623, 0
    %v3848 = vsel %vm2125, %v3624, 0
    %v3851 = vsel %vm2125, %v3625, 0
    %3853 = vmatprep.subr.mxu0 0.0
    %3854 = vmatpush1.msra.mxu0 0.0
    %3855 = vmatprep.subr.mxu0 0.0
    %3856 = vmatpush1.msra.mxu0 0.0
    %3857 = vmatprep.subr.mxu0 0.0
    %3858 = vmatpush1.msra.mxu0 0.0
    %3859 = vmatprep.subr.mxu0 0.0
    %3860 = vmatpush1.msra.mxu0 0.0
    %3861 = vmatprep.subr.mxu0 0.0
    %3862 = vmatpush1.msra.mxu0 0.0
    %3863 = vmatprep.subr.mxu0 0.0
    %3864 = vmatpush1.msra.mxu0 0.0
    %3865 = vmatprep.subr.mxu0 0.0
    %3866 = vmatpush1.msra.mxu0 0.0
    %3867 = vmatprep.subr.mxu0 0.0
    %3868 = vmatpush1.msra.mxu0 0.0
    %3869 = vmatprep.subr.mxu0 0.0
    %3870 = vmatpush1.msra.mxu0 0.0
    %3871 = vmatprep.subr.mxu0 0.0
    %3872 = vmatpush1.msra.mxu0 0.0
    %3873 = vmatprep.subr.mxu0 0.0
    %3874 = vmatpush1.msra.mxu0 0.0
    %3875 = vmatprep.subr.mxu0 0.0
    %3876 = vmatpush1.msra.mxu0 0.0
    %3877 = vmatprep.subr.mxu0 0.0
    %3878 = vmatpush1.msra.mxu0 0.0
    %3879 = vmatprep.subr.mxu0 0.0
    %3880 = vmatpush1.msra.mxu0 %v3831
    %3881 = vmatprep.subr.mxu0 0.0
    %3882 = vmatpush1.msra.mxu0 %v3828
    %3883 = vmatprep.subr.mxu0 0.0
    %3884 = vmatpush1.msra.mxu0 %v3825
    %3885 = vmatprep.subr.mxu0 0.0
    %3886 = vmatpush2.msra.mxu0 0.0
    %3887 = vmatprep.subr.mxu0 0.0
    %3888 = vmatpush2.msra.mxu0 0.0
    %3889 = vmatprep.subr.mxu0 0.0
    %3890 = vmatpush2.msra.mxu0 0.0
    %3891 = vmatprep.subr.mxu0 0.0
    %3892 = vmatpush2.msra.mxu0 0.0
    %3893 = vmatprep.subr.mxu0 0.0
    %3894 = vmatpush2.msra.mxu0 0.0
    %3895 = vmatprep.subr.mxu0 0.0
    %3896 = vmatpush2.msra.mxu0 0.0
    %3897 = vmatprep.subr.mxu0 0.0
    %3898 = vmatpush2.msra.mxu0 0.0
    %3899 = vmatprep.subr.mxu0 0.0
    %3900 = vmatpush2.msra.mxu0 0.0
    %3901 = vmatprep.subr.mxu0 0.0
    %3902 = vmatpush2.msra.mxu0 0.0
    %3903 = vmatprep.subr.mxu0 0.0
    %3904 = vmatpush2.msra.mxu0 0.0
    %3905 = vmatprep.subr.mxu0 0.0
    %3906 = vmatpush2.msra.mxu0 0.0
    %3907 = vmatprep.subr.mxu0 0.0
    %3908 = vmatpush2.msra.mxu0 0.0
    %3909 = vmatprep.subr.mxu0 0.0
    %3910 = vmatpush2.msra.mxu0 0.0
    %3911 = vmatprep.subr.mxu0 0.0
    %3912 = vmatpush2.msra.mxu0 0.0
    %3913 = vmatprep.subr.mxu0 0.0
    %3914 = vmatpush2.msra.mxu0 0.0
    %3915 = vmatprep.subr.mxu0 0.0
    %3916 = vmatpush2.msra.mxu0 0.0
    %3917 = vmatprep.mubr.f32.mxu0 0.0
    %3918 = vmatmul.mubr.f32.gmra.mxu0 %v3845
    %v3919 = vpop.f32.mrf.mxu0
    %v3920 = vadd.f32 0.0, %v3919
    %v3921 = vpop.f32.mrf.mxu0
    %3922 = vmatprep.mubr.f32.mxu0 0.0
    %3923 = vmatmul.mubr.f32.gmra.mxu0 %v3848
    %v3924 = vpop.f32.mrf.mxu0
    %v3925 = vadd.f32 0.0, %v3924
    %v3926 = vpop.f32.mrf.mxu0
    %3927 = vmatprep.mubr.f32.mxu0 0.0
    %3928 = vmatmul.mubr.f32.gmra.mxu0 %v3851
    %v3929 = vpop.f32.mrf.mxu0
    %v3930 = vadd.f32 0.0, %v3929
    %v3931 = vpop.f32.mrf.mxu0
    %3932 = vdwg.mxu0
    %v3933 = vmul.f32 %v3920, 0.027777778
    %v3934 = vmul.f32 %v3925, 0.027777778
    %v3935 = vmul.f32 %v3930, 0.027777778
    %3936 = vmatprep.subr.mxu0 0.0
    %3937 = vmatpush1.msra.mxu0 0.0
    %3938 = vmatprep.subr.mxu0 0.0
    %3939 = vmatpush1.msra.mxu0 0.0
    %3940 = vmatprep.subr.mxu0 0.0
    %3941 = vmatpush1.msra.mxu0 0.0
    %3942 = vmatprep.subr.mxu0 0.0
    %3943 = vmatpush1.msra.mxu0 0.0
    %3944 = vmatprep.subr.mxu0 0.0
    %3945 = vmatpush1.msra.mxu0 0.0
    %3946 = vmatprep.subr.mxu0 0.0
    %3947 = vmatpush1.msra.mxu0 0.0
    %3948 = vmatprep.subr.mxu0 0.0
    %3949 = vmatpush1.msra.mxu0 0.0
    %3950 = vmatprep.subr.mxu0 0.0
    %3951 = vmatpush1.msra.mxu0 0.0
    %3952 = vmatprep.subr.mxu0 0.0
    %3953 = vmatpush1.msra.mxu0 0.0
    %3954 = vmatprep.subr.mxu0 0.0
    %3955 = vmatpush1.msra.mxu0 0.0
    %3956 = vmatprep.subr.mxu0 0.0
    %3957 = vmatpush1.msra.mxu0 0.0
    %3958 = vmatprep.subr.mxu0 0.0
    %3959 = vmatpush1.msra.mxu0 0.0
    %3960 = vmatprep.subr.mxu0 0.0
    %3961 = vmatpush1.msra.mxu0 0.0
    %3962 = vmatprep.subr.mxu0 0.0
    %3963 = vmatpush1.msra.mxu0 %v3843
    %3964 = vmatprep.subr.mxu0 0.0
    %3965 = vmatpush1.msra.mxu0 %v3840
    %3966 = vmatprep.subr.mxu0 0.0
    %3967 = vmatpush1.msra.mxu0 %v3837
    %3968 = vmatprep.subr.mxu0 0.0
    %3969 = vmatpush2.msra.mxu0 0.0
    %3970 = vmatprep.subr.mxu0 0.0
    %3971 = vmatpush2.msra.mxu0 0.0
    %3972 = vmatprep.subr.mxu0 0.0
    %3973 = vmatpush2.msra.mxu0 0.0
    %3974 = vmatprep.subr.mxu0 0.0
    %3975 = vmatpush2.msra.mxu0 0.0
    %3976 = vmatprep.subr.mxu0 0.0
    %3977 = vmatpush2.msra.mxu0 0.0
    %3978 = vmatprep.subr.mxu0 0.0
    %3979 = vmatpush2.msra.mxu0 0.0
    %3980 = vmatprep.subr.mxu0 0.0
    %3981 = vmatpush2.msra.mxu0 0.0
    %3982 = vmatprep.subr.mxu0 0.0
    %3983 = vmatpush2.msra.mxu0 0.0
    %3984 = vmatprep.subr.mxu0 0.0
    %3985 = vmatpush2.msra.mxu0 0.0
    %3986 = vmatprep.subr.mxu0 0.0
    %3987 = vmatpush2.msra.mxu0 0.0
    %3988 = vmatprep.subr.mxu0 0.0
    %3989 = vmatpush2.msra.mxu0 0.0
    %3990 = vmatprep.subr.mxu0 0.0
    %3991 = vmatpush2.msra.mxu0 0.0
    %3992 = vmatprep.subr.mxu0 0.0
    %3993 = vmatpush2.msra.mxu0 0.0
    %3994 = vmatprep.subr.mxu0 0.0
    %3995 = vmatpush2.msra.mxu0 0.0
    %3996 = vmatprep.subr.mxu0 0.0
    %3997 = vmatpush2.msra.mxu0 0.0
    %3998 = vmatprep.subr.mxu0 0.0
    %3999 = vmatpush2.msra.mxu0 0.0
    %4000 = vmatprep.mubr.f32.mxu0 0.0
    %4001 = vmatmul.mubr.f32.gmra.mxu0 %v3845
    %v4002 = vpop.f32.mrf.mxu0
    %v4003 = vadd.f32 0.0, %v4002
    %v4004 = vpop.f32.mrf.mxu0
    %4005 = vmatprep.mubr.f32.mxu0 0.0
    %4006 = vmatmul.mubr.f32.gmra.mxu0 %v3848
    %v4007 = vpop.f32.mrf.mxu0
    %v4008 = vadd.f32 0.0, %v4007
    %v4009 = vpop.f32.mrf.mxu0
    %4010 = vmatprep.mubr.f32.mxu0 0.0
    %4011 = vmatmul.mubr.f32.gmra.mxu0 %v3851
    %v4012 = vpop.f32.mrf.mxu0
    %v4013 = vadd.f32 0.0, %v4012
    %v4014 = vpop.f32.mrf.mxu0
    %4015 = vdwg.mxu0
    %v4016 = vmul.f32 %v4003, 0.027777778
    %v4017 = vmul.f32 %v4008, 0.027777778
    %v4018 = vmul.f32 %v4013, 0.027777778
    %v4019 = vmul.f32 %v3933, %v3933
    %v4020 = vmul.f32 %v3934, %v3934
    %v4021 = vmul.f32 %v3935, %v3935
    %v4022 = vsub.f32 %v4016, %v4019
    %v4023 = vsub.f32 %v4017, %v4020
    %v4024 = vsub.f32 %v4018, %v4021
    %v4025 = vmax.f32 %v4022, 0.0
    %v4026 = vmax.f32 %v4023, 0.0
    %v4027 = vmax.f32 %v4024, 0.0
    %4029 = vset.pattern.permute.xlu0 0
    %4030 = vperm.xlu0 %4029, %v3933
    %v4031 = vpop.permute.xlu0 %4030
    %4034 = vset.pattern.permute.xlu0 0
    %4035 = vperm.xlu0 %4034, %v3934
    %v4036 = vpop.permute.xlu0 %4035
    %4039 = vset.pattern.permute.xlu0 0
    %4040 = vperm.xlu0 %4039, %v3935
    %v4041 = vpop.permute.xlu0 %4040
    %v4043 = vsub.f32 %v3809, %v4031
    %v4044 = vsub.f32 %v3814, %v4036
    %v4045 = vsub.f32 %v3819, %v4041
    %v4046 = vadd.f32 %v4025, 1e-05
    %v4047 = vadd.f32 %v4026, 1e-05
    %v4048 = vadd.f32 %v4027, 1e-05
    %v4049 = vrsqrt.pop %v4046
    %v4050 = vrsqrt.pop %v4047
    %v4051 = vrsqrt.pop %v4048
    %4053 = vset.pattern.permute.xlu0 0
    %4054 = vperm.xlu0 %4053, %v4049
    %v4055 = vpop.permute.xlu0 %4054
    %4058 = vset.pattern.permute.xlu0 0
    %4059 = vperm.xlu0 %4058, %v4050
    %v4060 = vpop.permute.xlu0 %4059
    %4063 = vset.pattern.permute.xlu0 0
    %4064 = vperm.xlu0 %4063, %v4051
    %v4065 = vpop.permute.xlu0 %4064
    %v4067 = vmul.f32 %v4043, %v4055
    %v4068 = vmul.f32 %v4044, %v4060
    %v4069 = vmul.f32 %v4045, %v4065
    %4073 = vrot.lane.b32.xlu0 %v4067, 6
    %v4074 = vpop.permute.xlu0 %4073
    %4075 = vrot.lane.b32.xlu0 %v4068, 6
    %v4076 = vpop.permute.xlu0 %4075
    %4077 = vrot.lane.b32.xlu0 %v4069, 6
    %v4078 = vpop.permute.xlu0 %4077
    %4082 = vrot.lane.b32.xlu0 %v4067, 12
    %v4083 = vpop.permute.xlu0 %4082
    %4084 = vrot.lane.b32.xlu0 %v4068, 12
    %v4085 = vpop.permute.xlu0 %4084
    %4086 = vrot.lane.b32.xlu0 %v4069, 12
    %v4087 = vpop.permute.xlu0 %4086
    %4091 = vrot.lane.b32.xlu0 %v4067, 18
    %v4092 = vpop.permute.xlu0 %4091
    %4093 = vrot.lane.b32.xlu0 %v4068, 18
    %v4094 = vpop.permute.xlu0 %4093
    %4095 = vrot.lane.b32.xlu0 %v4069, 18
    %v4096 = vpop.permute.xlu0 %4095
    %4100 = vrot.lane.b32.xlu0 %v4067, 24
    %v4101 = vpop.permute.xlu0 %4100
    %4102 = vrot.lane.b32.xlu0 %v4068, 24
    %v4103 = vpop.permute.xlu0 %4102
    %4104 = vrot.lane.b32.xlu0 %v4069, 24
    %v4105 = vpop.permute.xlu0 %4104
    %4109 = vrot.lane.b32.xlu0 %v4067, 30
    %v4110 = vpop.permute.xlu0 %4109
    %4111 = vrot.lane.b32.xlu0 %v4068, 30
    %v4112 = vpop.permute.xlu0 %4111
    %4113 = vrot.lane.b32.xlu0 %v4069, 30
    %v4114 = vpop.permute.xlu0 %4113
    %v4118 = vsel %vm3822, %v4067, %v4074
    %v4119 = vsel %vm3822, %v4068, %v4076
    %v4120 = vsel %vm3822, %v4069, %v4078
    %vm4121 = vcmask 97280
    %v4122 = vsel %vm4121, %v4118, %v4083
    %v4123 = vsel %vm4121, %v4119, %v4085
    %v4124 = vsel %vm4121, %v4120, %v4087
    %vm4125 = vcmask 146432
    %v4126 = vsel %vm4125, %v4122, %v4092
    %v4127 = vsel %vm4125, %v4123, %v4094
    %v4128 = vsel %vm4125, %v4124, %v4096
    %v4129 = vsel %vm2125, %v4126, %v4101
    %v4130 = vsel %vm2125, %v4127, %v4103
    %v4131 = vsel %vm2125, %v4128, %v4105
    %vm4132 = vcmask 244736
    %v4133 = vsel %vm4132, %v4129, %v4110
    %v4134 = vsel %vm4132, %v4130, %v4112
    %v4135 = vsel %vm4132, %v4131, %v4114
    %v4136 = vld [vmem:[%s59] sm:$0xff]
    %v4137 = vld [vmem:[%s59 + $0x8] sm:$0xff]
    %v4138 = vld [vmem:[%s59 + $0x10] sm:$0xff]
    %v4139 = vmul.f32 %v4133, %v4136
    %v4140 = vmul.f32 %v4134, %v4137
    %v4141 = vmul.f32 %v4135, %v4138
    %v4142 = vld [vmem:[%s39] sm:$0xff]
    %v4143 = vld [vmem:[%s39 + $0x8] sm:$0xff]
    %v4144 = vld [vmem:[%s39 + $0x10] sm:$0xff]
    %v4145 = vld [vmem:[%s39 + $0x18] sm:$0xff]
    %v4146 = vld [vmem:[%s39 + $0x20] sm:$0xf]
    %vm4147 = vcmask 293888
    %v4149 = vsel %vm4147, %v4139, 0
    %v4152 = vsel %vm4147, %v4140, 0
    %v4155 = vsel %vm4147, %v4141, 0
    %vm4157 = vcmask 1043456
    %v4159 = vsel %vm4157, %v4146, 0
    %4161 = vmatprep.subr.mxu0 0.0
    %4162 = vmatpush1.msra.mxu0 0.0
    %4163 = vmatprep.subr.mxu0 0.0
    %4164 = vmatpush1.msra.mxu0 0.0
    %4165 = vmatprep.subr.mxu0 0.0
    %4166 = vmatpush1.msra.mxu0 0.0
    %4167 = vmatprep.subr.mxu0 0.0
    %4168 = vmatpush1.msra.mxu0 0.0
    %4169 = vmatprep.subr.mxu0 0.0
    %4170 = vmatpush1.msra.mxu0 0.0
    %4171 = vmatprep.subr.mxu0 0.0
    %4172 = vmatpush1.msra.mxu0 0.0
    %4173 = vmatprep.subr.mxu0 0.0
    %4174 = vmatpush1.msra.mxu0 0.0
    %4175 = vmatprep.subr.mxu0 0.0
    %4176 = vmatpush1.msra.mxu0 0.0
    %4177 = vmatprep.subr.mxu0 0.0
    %4178 = vmatpush1.msra.mxu0 0.0
    %4179 = vmatprep.subr.mxu0 0.0
    %4180 = vmatpush1.msra.mxu0 0.0
    %4181 = vmatprep.subr.mxu0 0.0
    %4182 = vmatpush1.msra.mxu0 0.0
    %4183 = vmatprep.subr.mxu0 0.0
    %4184 = vmatpush1.msra.mxu0 %v4159
    %4185 = vmatprep.subr.mxu0 0.0
    %4186 = vmatpush1.msra.mxu0 %v4145
    %4187 = vmatprep.subr.mxu0 0.0
    %4188 = vmatpush1.msra.mxu0 %v4144
    %4189 = vmatprep.subr.mxu0 0.0
    %4190 = vmatpush1.msra.mxu0 %v4143
    %4191 = vmatprep.subr.mxu0 0.0
    %4192 = vmatpush1.msra.mxu0 %v4142
    %4193 = vmatprep.subr.mxu0 0.0
    %4194 = vmatpush2.msra.mxu0 0.0
    %4195 = vmatprep.subr.mxu0 0.0
    %4196 = vmatpush2.msra.mxu0 0.0
    %4197 = vmatprep.subr.mxu0 0.0
    %4198 = vmatpush2.msra.mxu0 0.0
    %4199 = vmatprep.subr.mxu0 0.0
    %4200 = vmatpush2.msra.mxu0 0.0
    %4201 = vmatprep.subr.mxu0 0.0
    %4202 = vmatpush2.msra.mxu0 0.0
    %4203 = vmatprep.subr.mxu0 0.0
    %4204 = vmatpush2.msra.mxu0 0.0
    %4205 = vmatprep.subr.mxu0 0.0
    %4206 = vmatpush2.msra.mxu0 0.0
    %4207 = vmatprep.subr.mxu0 0.0
    %4208 = vmatpush2.msra.mxu0 0.0
    %4209 = vmatprep.subr.mxu0 0.0
    %4210 = vmatpush2.msra.mxu0 0.0
    %4211 = vmatprep.subr.mxu0 0.0
    %4212 = vmatpush2.msra.mxu0 0.0
    %4213 = vmatprep.subr.mxu0 0.0
    %4214 = vmatpush2.msra.mxu0 0.0
    %4215 = vmatprep.subr.mxu0 0.0
    %4216 = vmatpush2.msra.mxu0 0.0
    %4217 = vmatprep.subr.mxu0 0.0
    %4218 = vmatpush2.msra.mxu0 0.0
    %4219 = vmatprep.subr.mxu0 0.0
    %4220 = vmatpush2.msra.mxu0 0.0
    %4221 = vmatprep.subr.mxu0 0.0
    %4222 = vmatpush2.msra.mxu0 0.0
    %4223 = vmatprep.subr.mxu0 0.0
    %4224 = vmatpush2.msra.mxu0 0.0
    %4225 = vmatprep.mubr.f32.mxu0 0.0
    %4226 = vmatmul.mubr.f32.gmra.mxu0 %v4149
    %v4227 = vpop.f32.mrf.mxu0
    %v4228 = vadd.f32 0.0, %v4227
    %v4229 = vpop.f32.mrf.mxu0
    %4230 = vmatprep.mubr.f32.mxu0 0.0
    %4231 = vmatmul.mubr.f32.gmra.mxu0 %v4152
    %v4232 = vpop.f32.mrf.mxu0
    %v4233 = vadd.f32 0.0, %v4232
    %v4234 = vpop.f32.mrf.mxu0
    %4235 = vmatprep.mubr.f32.mxu0 0.0
    %4236 = vmatmul.mubr.f32.gmra.mxu0 %v4155
    %v4237 = vpop.f32.mrf.mxu0
    %v4238 = vadd.f32 0.0, %v4237
    %v4239 = vpop.f32.mrf.mxu0
    %4240 = vdwg.mxu0
    %v4241 = vld [vmem:[%s61] sm:$0xf]
    %v4242 = vld [vmem:[%s41] sm:$0x1]
    %v4244 = vlaneseq
    %v4245 = vshrl.u32 %v4244, 7
    %v4246 = vsub.s32 0, %v4245
    %v4247 = vrot.slane %v4242, %v4246
    %v4250 = vsel %vm2125, %v4241, 0
    %4252 = vmatprep.subr.mxu0 0.0
    %4253 = vmatpush1.msra.mxu0 0.0
    %4254 = vmatprep.subr.mxu0 0.0
    %4255 = vmatpush1.msra.mxu0 0.0
    %4256 = vmatprep.subr.mxu0 0.0
    %4257 = vmatpush1.msra.mxu0 0.0
    %4258 = vmatprep.subr.mxu0 0.0
    %4259 = vmatpush1.msra.mxu0 0.0
    %4260 = vmatprep.subr.mxu0 0.0
    %4261 = vmatpush1.msra.mxu0 0.0
    %4262 = vmatprep.subr.mxu0 0.0
    %4263 = vmatpush1.msra.mxu0 0.0
    %4264 = vmatprep.subr.mxu0 0.0
    %4265 = vmatpush1.msra.mxu0 0.0
    %4266 = vmatprep.subr.mxu0 0.0
    %4267 = vmatpush1.msra.mxu0 0.0
    %4268 = vmatprep.subr.mxu0 0.0
    %4269 = vmatpush1.msra.mxu0 0.0
    %4270 = vmatprep.subr.mxu0 0.0
    %4271 = vmatpush1.msra.mxu0 0.0
    %4272 = vmatprep.subr.mxu0 0.0
    %4273 = vmatpush1.msra.mxu0 0.0
    %4274 = vmatprep.subr.mxu0 0.0
    %4275 = vmatpush1.msra.mxu0 0.0
    %4276 = vmatprep.subr.mxu0 0.0
    %4277 = vmatpush1.msra.mxu0 0.0
    %4278 = vmatprep.subr.mxu0 0.0
    %4279 = vmatpush1.msra.mxu0 %v4238
    %4280 = vmatprep.subr.mxu0 0.0
    %4281 = vmatpush1.msra.mxu0 %v4233
    %4282 = vmatprep.subr.mxu0 0.0
    %4283 = vmatpush1.msra.mxu0 %v4228
    %4284 = vmatprep.subr.mxu0 0.0
    %4285 = vmatpush2.msra.mxu0 0.0
    %4286 = vmatprep.subr.mxu0 0.0
    %4287 = vmatpush2.msra.mxu0 0.0
    %4288 = vmatprep.subr.mxu0 0.0
    %4289 = vmatpush2.msra.mxu0 0.0
    %4290 = vmatprep.subr.mxu0 0.0
    %4291 = vmatpush2.msra.mxu0 0.0
    %4292 = vmatprep.subr.mxu0 0.0
    %4293 = vmatpush2.msra.mxu0 0.0
    %4294 = vmatprep.subr.mxu0 0.0
    %4295 = vmatpush2.msra.mxu0 0.0
    %4296 = vmatprep.subr.mxu0 0.0
    %4297 = vmatpush2.msra.mxu0 0.0
    %4298 = vmatprep.subr.mxu0 0.0
    %4299 = vmatpush2.msra.mxu0 0.0
    %4300 = vmatprep.subr.mxu0 0.0
    %4301 = vmatpush2.msra.mxu0 0.0
    %4302 = vmatprep.subr.mxu0 0.0
    %4303 = vmatpush2.msra.mxu0 0.0
    %4304 = vmatprep.subr.mxu0 0.0
    %4305 = vmatpush2.msra.mxu0 0.0
    %4306 = vmatprep.subr.mxu0 0.0
    %4307 = vmatpush2.msra.mxu0 0.0
    %4308 = vmatprep.subr.mxu0 0.0
    %4309 = vmatpush2.msra.mxu0 0.0
    %4310 = vmatprep.subr.mxu0 0.0
    %4311 = vmatpush2.msra.mxu0 0.0
    %4312 = vmatprep.subr.mxu0 0.0
    %4313 = vmatpush2.msra.mxu0 0.0
    %4314 = vmatprep.subr.mxu0 0.0
    %4315 = vmatpush2.msra.mxu0 0.0
    %4316 = vmatprep.mubr.f32.mxu0 0.0
    %4317 = vmatmul.mubr.f32.gmra.mxu0 %v4250
    %v4318 = vpop.f32.mrf.mxu0
    %v4319 = vadd.f32 %v4247, %v4318
    %v4320 = vpop.f32.mrf.mxu0
    %4321 = vdwg.mxu0
    %v4322 = vmax.f32 %v4319, 0.0
    %v4323 = vld [vmem:[%s43] sm:$0x3f]
    %v4324 = vld [vmem:[%s45] sm:$0x1]
    %v4326 = vlaneseq
    %v4327 = vshrl.u32 %v4326, 7
    %v4328 = vsub.s32 0, %v4327
    %v4329 = vrot.slane %v4324, %v4328
    %v4332 = vsel %vm3822, %v4322, 0
    %vm4334 = vcmask 1045504
    %v4336 = vsel %vm4334, %v4323, 0
    %4338 = vmatprep.subr.mxu0 0.0
    %4339 = vmatpush1.msra.mxu0 0.0
    %4340 = vmatprep.subr.mxu0 0.0
    %4341 = vmatpush1.msra.mxu0 0.0
    %4342 = vmatprep.subr.mxu0 0.0
    %4343 = vmatpush1.msra.mxu0 0.0
    %4344 = vmatprep.subr.mxu0 0.0
    %4345 = vmatpush1.msra.mxu0 0.0
    %4346 = vmatprep.subr.mxu0 0.0
    %4347 = vmatpush1.msra.mxu0 0.0
    %4348 = vmatprep.subr.mxu0 0.0
    %4349 = vmatpush1.msra.mxu0 0.0
    %4350 = vmatprep.subr.mxu0 0.0
    %4351 = vmatpush1.msra.mxu0 0.0
    %4352 = vmatprep.subr.mxu0 0.0
    %4353 = vmatpush1.msra.mxu0 0.0
    %4354 = vmatprep.subr.mxu0 0.0
    %4355 = vmatpush1.msra.mxu0 0.0
    %4356 = vmatprep.subr.mxu0 0.0
    %4357 = vmatpush1.msra.mxu0 0.0
    %4358 = vmatprep.subr.mxu0 0.0
    %4359 = vmatpush1.msra.mxu0 0.0
    %4360 = vmatprep.subr.mxu0 0.0
    %4361 = vmatpush1.msra.mxu0 0.0
    %4362 = vmatprep.subr.mxu0 0.0
    %4363 = vmatpush1.msra.mxu0 0.0
    %4364 = vmatprep.subr.mxu0 0.0
    %4365 = vmatpush1.msra.mxu0 0.0
    %4366 = vmatprep.subr.mxu0 0.0
    %4367 = vmatpush1.msra.mxu0 0.0
    %4368 = vmatprep.subr.mxu0 0.0
    %4369 = vmatpush1.msra.mxu0 %v4336
    %4370 = vmatprep.subr.mxu0 0.0
    %4371 = vmatpush2.msra.mxu0 0.0
    %4372 = vmatprep.subr.mxu0 0.0
    %4373 = vmatpush2.msra.mxu0 0.0
    %4374 = vmatprep.subr.mxu0 0.0
    %4375 = vmatpush2.msra.mxu0 0.0
    %4376 = vmatprep.subr.mxu0 0.0
    %4377 = vmatpush2.msra.mxu0 0.0
    %4378 = vmatprep.subr.mxu0 0.0
    %4379 = vmatpush2.msra.mxu0 0.0
    %4380 = vmatprep.subr.mxu0 0.0
    %4381 = vmatpush2.msra.mxu0 0.0
    %4382 = vmatprep.subr.mxu0 0.0
    %4383 = vmatpush2.msra.mxu0 0.0
    %4384 = vmatprep.subr.mxu0 0.0
    %4385 = vmatpush2.msra.mxu0 0.0
    %4386 = vmatprep.subr.mxu0 0.0
    %4387 = vmatpush2.msra.mxu0 0.0
    %4388 = vmatprep.subr.mxu0 0.0
    %4389 = vmatpush2.msra.mxu0 0.0
    %4390 = vmatprep.subr.mxu0 0.0
    %4391 = vmatpush2.msra.mxu0 0.0
    %4392 = vmatprep.subr.mxu0 0.0
    %4393 = vmatpush2.msra.mxu0 0.0
    %4394 = vmatprep.subr.mxu0 0.0
    %4395 = vmatpush2.msra.mxu0 0.0
    %4396 = vmatprep.subr.mxu0 0.0
    %4397 = vmatpush2.msra.mxu0 0.0
    %4398 = vmatprep.subr.mxu0 0.0
    %4399 = vmatpush2.msra.mxu0 0.0
    %4400 = vmatprep.subr.mxu0 0.0
    %4401 = vmatpush2.msra.mxu0 0.0
    %4402 = vmatprep.mubr.f32.mxu0 0.0
    %4403 = vmatmul.mubr.f32.gmra.mxu0 %v4332
    %v4404 = vpop.f32.mrf.mxu0
    %v4405 = vadd.f32 %v4329, %v4404
    %v4406 = vpop.f32.mrf.mxu0
    %4407 = vdwg.mxu0
    %v4408 = vmax.f32 %v4405, 0.0
    %v4409 = vld [vmem:[%s47] sm:$0x1]
    %v4410 = vld [vmem:[%s49] sm:$0x1]
    %vm4411 = vcmask 44032
    %v4412 = vsel %vm4411, %v4408, 0.0
    %4413 = vadd.xlane.f32.xlu0 %v4412
    %v4414 = vpop.xlane.xlu0 %4413
    %v4415 = vrcp.pop 6.0
    %v4416 = vmul.f32 %v4414, %v4415
    %v4417 = vsub.f32 %v4408, %v4416
    %v4418 = vmul.f32 %v4417, %v4417
    %v4419 = vsel %vm4411, %v4418, 0.0
    %4420 = vadd.xlane.f32.xlu0 %v4419
    %v4421 = vpop.xlane.xlu0 %4420
    %v4422 = vmul.f32 %v4421, %v4415
    %v4423 = vadd.f32 %v4422, 1e-05
    %v4424 = vrsqrt.pop %v4423
    %v4425 = vmul.f32 %v4417, %v4424
    %v4427 = vlaneseq
    %v4428 = vshrl.u32 %v4427, 7
    %v4429 = vsub.s32 0, %v4428
    %v4430 = vrot.slane %v4409, %v4429
    %v4432 = vmul.f32 %v4425, %v4430
    %v4434 = vlaneseq
    %v4435 = vshrl.u32 %v4434, 7
    %v4436 = vsub.s32 0, %v4435
    %v4437 = vrot.slane %v4410, %v4436
    %v4439 = vadd.f32 %v4432, %v4437
    %v4440 = vsel %vm4411, %v4439, -inf
    %4441 = vmax.xlane.f32.xlu0 %v4440
    %v4442 = vpop.xlane.xlu0 %4441
    %v4443 = vsub.f32 %v4439, %v4442
    %v4444 = vmul.f32 %v4443, 1.442695
    %v4445 = vpow.pop %v4444
    %v4446 = vsel %vm4411, %v4445, 0.0
    %4447 = vadd.xlane.f32.xlu0 %v4446
    %v4448 = vpop.xlane.xlu0 %4447
    %v4449 = vrcp.pop %v4448
    %v4450 = vmul.f32 %v4445, %v4449
    %4451 = vst.msk [vmem:[#allocation2] sm:$0xf] %vm4411, %v4450
    // Predicated region
    $region126: #{tpu_custom_call.1} parent=1 // pred_check
      _
    $region127: #{tpu_custom_call.1} parent=1 // pred_check_branch
      %4453 = sbr.rel (0) target = $region129
    $region128: #{tpu_custom_call.1} parent=1 // pred_region
      %s4455 = ssub.s32 64, 64
      %4456 = vsyncadd [#allocation3], %s4455
      %s4458 = sshll.u32 [#allocation2], 4
      %s4459 = int_to_ptr.vmem [resolvable:$true] %s4458
      %4461 = dma.vmem_to_hbm [thread:$0]  %s4459, 64, %s63, [#allocation3]
    $region129: #{tpu_custom_call.1} parent=1 // pred_fallthru
      _
    // Predicated region
    $region130: #{tpu_custom_call.1} parent=1 // pred_check
      _
    $region131: #{tpu_custom_call.1} parent=1 // pred_check_branch
      %4463 = sbr.rel (0) target = $region133
    $region132: #{tpu_custom_call.1} parent=1 // pred_region
      %4464 = dma.done [#allocation3], 64
    $region133: #{tpu_custom_call.1} parent=1 // pred_fallthru
      _
    %4465 = vsyncpa [#allocation3], 1

</llo_original>
